<compile_context>
chip_gen: v5e
topology: v5e:2x2
jax: 0.10.0
libtpu: 0.0.40
codegen_flags: <defaults>
</compile_context>

<pallas_src>
import functools

import jax
import jax.numpy as jnp
from jax import lax
from jax.experimental import pallas as pl
from jax.experimental.pallas import tpu as pltpu


CONV_CFG = [  # (cin, cout, k, stride, pad)  -- matches the PyTorch Sequential
    (2, 16, 7, 3, 3),
    (16, 16, 3, 2, 1),
    (16, 16, 5, 3, 2),
    (16, 16, 3, 2, 1),
    (16, 16, 3, 2, 1),
]
N_PALLAS_CONVS = 2          # conv1..conv2 via Pallas; conv3..conv5/fc are tiny
LEAKY_SLOPE = 0.2

_A_TILE_CAP_BYTES = 6 * 1024 * 1024       # per-buffer A tile cap (v7x: 64 MiB VMEM)
_V7X_SPLIT_MIN_TILE = 512 * 1024          # v7x: only add steps while A tile >= this
_SINGLE_CORE_WHOLE_A = 2 * 1024 * 1024    # v5e/v6e: single block if whole A <= this


# ----------------------------------------------------------------------------
# Pallas kernel: fused, lane-dense  out(Cout, tm) = act(W(Cout,K) @ A(K,tm) + b)
#
# Epilogue note (review): the f32 accumulator (16, tm) exceeds the vreg file at
# tm >= 2304, so Mosaic stripmines the bias+LeakyReLU+cast through VMEM.  While
# the layer is HBM-DMA-bound this extra VMEM traffic is hidden (3 vld + 1 vst
# slots/cycle); revisit only if bundle dumps show vld/vst as the binding unit.
# ----------------------------------------------------------------------------
def _wt_mm_bias_act_kernel(w_ref, a_ref, b_ref, o_ref, *, slope):
    acc = jnp.dot(w_ref[...], a_ref[...], preferred_element_type=jnp.float32)
    acc = acc + b_ref[...]                      # (Cout, 1) broadcasts over lanes
    if slope is not None:                       # LeakyReLU(negative_slope=slope)
        acc = jnp.where(acc >= 0, acc, slope * acc)
    o_ref[...] = acc.astype(o_ref.dtype)


@functools.lru_cache(maxsize=None)
def _single_core_chip():
    """True for 1-TensorCore chips (v5e/v6e, 128 MiB VMEM); False for v7x-like
    dual-TC chips (64 MiB VMEM per core).  Conservative default (detection
    failure): assume dual-TC, i.e. keep the v1 multi-step policy."""
    try:
        return pltpu.get_tpu_info().vmem_capacity_bytes > 96 * 1024 * 1024
    except Exception:
        return False


def _pick_tm(m, k_dim, single_core):
    """Pick the M-tile (lane dim of the kernel output), chip-aware.

    Single-TC (v5e/v6e): fewest steps — one full block if the whole A^T fits
    in ~2 MiB, else 2 steps so the i+1 input DMA overlaps step i's compute.
    Dual-TC (v7x): >= 2 steps per core (grid >= 4) while the per-step A tile
    stays >= ~0.5 MiB so each core still double-buffers; otherwise grid = 2
    (one step per core).  A-tile bytes capped at 6 MiB (64 MiB VMEM guardrail).
    """
    if m <= 128 or m % 128 != 0:
        return m                                  # tiny layer: one full block
    a_col_bytes = 2 * k_dim                       # one bf16 A^T column
    if single_core:
        if m * a_col_bytes <= _SINGLE_CORE_WHOLE_A:
            return m
        min_steps = 2
    else:
        min_steps = 4 if (m // 4) * a_col_bytes >= _V7X_SPLIT_MIN_TILE else 2
    for steps in range(min_steps, m // 128 + 1):
        if m % steps != 0:
            continue
        tm = m // steps
        if tm % 128 == 0 and tm * a_col_bytes <= _A_TILE_CAP_BYTES:
            return tm
    return m


def matmul_t_bias_act(w2d, a_t, bias, *, slope, out_dtype=jnp.bfloat16):
    """w2d: (Cout, K) bf16, a_t: (K, M) bf16, bias: (Cout, 1) f32
       -> (Cout, M) out_dtype, lane-dense over M."""
    cout, k = w2d.shape
    k2, m = a_t.shape
    assert k == k2
    tm = _pick_tm(m, k, _single_core_chip())
    grid = (m // tm,)
    kernel = functools.partial(_wt_mm_bias_act_kernel, slope=slope)
    return pl.pallas_call(
        kernel,
        out_shape=jax.ShapeDtypeStruct((cout, m), out_dtype),
        grid=grid,
        in_specs=[
            pl.BlockSpec((cout, k), lambda i: (0, 0)),   # weights: resident
            pl.BlockSpec((k, tm), lambda i: (0, i)),     # A^T tile (lanes = M)
            pl.BlockSpec((cout, 1), lambda i: (0, 0)),   # bias
        ],
        out_specs=pl.BlockSpec((cout, tm), lambda i: (0, i)),
        compiler_params=pltpu.CompilerParams(
            dimension_semantics=("parallel",),
            # Explicit scoped-VMEM budget: >> the double-buffered tiles used
            # here (<= ~4.5 MiB live), >= v5e's 16 MiB default, < v7x's 64 MiB
            # physical per-core VMEM.
            vmem_limit_bytes=32 * 1024 * 1024,
            # Review item: allow XLA to fuse the im2col producer into the A^T
            # operand (removes the (K, M) HBM round-trip when the fusion is
            # accepted; a harmless no-op otherwise).
            allow_input_fusion=[False, True, False],
        ),
    )(w2d, a_t, bias)


# ----------------------------------------------------------------------------
# Glue (plain JAX): transposed im2col on CNHW activations.
#   x: (Cin, N, H, W)  ->  A^T: (Cin*KH*KW, N*OH*OW)
# Column order (Cin-major, then KH, then KW) matches PyTorch's
# weight.reshape(Cout, Cin*KH*KW) flattening; no big transpose is materialized
# (the trailing reshape merges contiguous dims only).
# ----------------------------------------------------------------------------
def im2col_t(x, kh, kw, stride, pad):
    c, n, h, w = x.shape
    xp = jnp.pad(x, ((0, 0), (0, 0), (pad, pad), (pad, pad)))
    oh = (h + 2 * pad - kh) // stride + 1
    ow = (w + 2 * pad - kw) // stride + 1
    cols = []
    for i in range(kh):
        for j in range(kw):
            cols.append(xp[:, :, i:i + stride * oh:stride, j:j + stride * ow:stride])
    cols = jnp.stack(cols, axis=1)               # (Cin, KH*KW, N, OH, OW)
    return cols.reshape(c * kh * kw, n * oh * ow), oh, ow


def conv2d_lrelu_pallas(x_cnhw, w, b, stride, pad, slope=LEAKY_SLOPE):
    """x: (Cin, N, H, W) bf16; w: (Cout, Cin, KH, KW) f32; b: (Cout,) f32
       -> (Cout, N, OH, OW) bf16."""
    cin, n, _, _ = x_cnhw.shape
    cout, cin_w, kh, kw = w.shape
    assert cin == cin_w
    a_t, oh, ow = im2col_t(x_cnhw, kh, kw, stride, pad)          # (K, M) bf16
    w2d = w.reshape(cout, cin * kh * kw).astype(jnp.bfloat16)    # (Cout, K)
    out = matmul_t_bias_act(w2d, a_t, b.reshape(cout, 1), slope=slope)
    return out.reshape(cout, n, oh, ow)          # already CNHW -- no transpose


def conv2d_lrelu_jnp(x_cnhw, w, b, stride, pad, slope=LEAKY_SLOPE):
    """Tail layers (M <= 512): same math in plain JAX, no pallas_call overhead
    (single-block pallas_calls have no pipelining and dispatch cost dominates)."""
    cin, n, _, _ = x_cnhw.shape
    cout, _, kh, kw = w.shape
    a_t, oh, ow = im2col_t(x_cnhw, kh, kw, stride, pad)
    w2d = w.reshape(cout, cin * kh * kw).astype(x_cnhw.dtype)
    out = jnp.dot(w2d, a_t, preferred_element_type=jnp.float32) + b.reshape(cout, 1)
    out = jnp.where(out >= 0, out, slope * out)
    return out.reshape(cout, n, oh, ow).astype(x_cnhw.dtype)


# ----------------------------------------------------------------------------
# STN forward (Pallas path) and a matched-precision reference for validation
# ----------------------------------------------------------------------------
def init_params(key):
    conv_w, conv_b = [], []
    for (cin, cout, k, _, _) in CONV_CFG:
        key, kw_, kb_ = jax.random.split(key, 3)
        fan_in = cin * k * k
        conv_w.append(
            jax.random.normal(kw_, (cout, cin, k, k), jnp.float32) / jnp.sqrt(fan_in))
        conv_b.append(jax.random.normal(kb_, (cout,), jnp.float32) * 0.01)
    key, kfc = jax.random.split(key)
    fc_w = jax.random.normal(kfc, (2, 16 * 4 * 4), jnp.float32) / jnp.sqrt(256.0)
    return {"conv_w": conv_w, "conv_b": conv_b, "fc_w": fc_w}


def stn_forward_pallas(x, params):
    """x: (N, 2, H, W) f32 -> affine (N, 2, 3) f32."""
    # NCHW -> CNHW once (small array), bf16 operands for the matmuls.
    h = jnp.transpose(x, (1, 0, 2, 3)).astype(jnp.bfloat16)
    for li, (_, _, _, s, p) in enumerate(CONV_CFG):
        w, b = params["conv_w"][li], params["conv_b"][li]
        conv = conv2d_lrelu_pallas if li < N_PALLAS_CONVS else conv2d_lrelu_jnp
        h = conv(h, w, b, stride=s, pad=p)
    # h: (16, N, 4, 4) CNHW -> PyTorch view(-1, 16*4*4) wants NCHW flattening.
    n = h.shape[1]
    flat = jnp.transpose(h, (1, 0, 2, 3)).reshape(n, 16 * 4 * 4).astype(jnp.float32)
    theta = (flat @ params["fc_w"].T).reshape(n, 2, 1)   # Linear(256, 2, bias=False)
    eye = jnp.broadcast_to(jnp.eye(2, dtype=jnp.float32), (n, 2, 2))
    return jnp.concatenate([eye, theta], axis=2)


def stn_forward_ref(x, params):
    """lax.conv reference using the same bf16-operand / f32-accumulation policy,
    so the comparison validates the Pallas path at tight tolerance.
    NOTE (review): this is matched-precision on purpose -- it does NOT bound
    the drift of bf16 inter-layer activations versus the original f32 PyTorch
    STN (acceptable for a perf kernel; documented here)."""
    h = x
    for li, (_, _, _, s, p) in enumerate(CONV_CFG):
        w = params["conv_w"][li].astype(jnp.bfloat16)
        b = params["conv_b"][li]
        h = lax.conv_general_dilated(
            h.astype(jnp.bfloat16), w, window_strides=(s, s),
            padding=[(p, p), (p, p)],
            dimension_numbers=("NCHW", "OIHW", "NCHW"),
            preferred_element_type=jnp.float32)
        h = h + b.reshape(1, -1, 1, 1)
        h = jnp.where(h >= 0, h, LEAKY_SLOPE * h).astype(jnp.bfloat16)
    n = h.shape[0]
    flat = h.reshape(n, 16 * 4 * 4).astype(jnp.float32)
    theta = (flat @ params["fc_w"].T).reshape(n, 2, 1)
    eye = jnp.broadcast_to(jnp.eye(2, dtype=jnp.float32), (n, 2, 2))
    return jnp.concatenate([eye, theta], axis=2)


if __name__ == "__main__":
    key = jax.random.PRNGKey(0)
    kx, kp = jax.random.split(key)

    # 288 is the smallest "nice" spatial size whose 5-conv pyramid ends at 4x4,
    # which the module's view(-1, 16*4*4) requires.
    x = jax.random.normal(kx, (2, 2, 288, 288), jnp.float32)
    params = init_params(kp)

    fwd = jax.jit(stn_forward_pallas)
    ref_fwd = jax.jit(stn_forward_ref)

    affine = jax.block_until_ready(fwd(x, params))
    ref = jax.block_until_ready(ref_fwd(x, params))

    assert affine.shape == (2, 2, 3), affine.shape
    assert jnp.allclose(affine, ref, atol=3e-3, rtol=3e-3), (
        float(jnp.max(jnp.abs(affine - ref))))
    print("KERNEL_OK")
</pallas_src>

<mosaic_0001>
module attributes {stable_mosaic.version = 11 : i64} {
  func.func @_wt_mm_bias_act_kernel(%arg0: i32, %arg1: memref<16x98xbf16, #tpu.memory_space<vmem>>, %arg2: memref<98x4608xbf16, #tpu.memory_space<vmem>>, %arg3: memref<16x1xf32, #tpu.memory_space<vmem>>, %arg4: memref<16x4608xbf16, #tpu.memory_space<vmem>>) attributes {dimension_semantics = [#tpu.dimension_semantics<parallel>], iteration_bounds = array<i64: 4>, scalar_prefetch = 0 : i64, scratch_operands = 0 : i64, tpu.core_type = #tpu.core_type<tc>, window_params = [{pipeline_mode = #tpu.pipeline_mode<synchronous>, transform_indices = @transform_0, window_bounds = array<i64: 16, 98>}, {transform_indices = @transform_1, window_bounds = array<i64: 98, 4608>}, {pipeline_mode = #tpu.pipeline_mode<synchronous>, transform_indices = @transform_2, window_bounds = array<i64: 16, 1>}, {transform_indices = @transform_3, window_bounds = array<i64: 16, 4608>}]} {
    %c0 = arith.constant 0 : index
    %c0_0 = arith.constant 0 : index
    %0 = vector.load %arg1[%c0, %c0_0] : memref<16x98xbf16, #tpu.memory_space<vmem>>, vector<16x98xbf16>
    %c0_1 = arith.constant 0 : index
    %c0_2 = arith.constant 0 : index
    %1 = vector.load %arg2[%c0_1, %c0_2] : memref<98x4608xbf16, #tpu.memory_space<vmem>>, vector<98x4608xbf16>
    %cst = arith.constant dense<0.000000e+00> : vector<16x4608xf32>
    %2 = tpu.matmul %0, %1, %cst {dimension_numbers = #tpu.dot_dimension_numbers<[1], [0], [0], [1], [0, 0, 1, 1], [], []>} : vector<16x98xbf16>, vector<98x4608xbf16>, vector<16x4608xf32> -> vector<16x4608xf32>
    %c0_3 = arith.constant 0 : index
    %c0_4 = arith.constant 0 : index
    %3 = vector.load %arg3[%c0_3, %c0_4] : memref<16x1xf32, #tpu.memory_space<vmem>>, vector<16x1xf32>
    %4 = vector.broadcast %3 : vector<16x1xf32> to vector<16x4608xf32>
    %5 = arith.addf %2, %4 : vector<16x4608xf32>
    %cst_5 = arith.constant 0.000000e+00 : f32
    %6 = vector.broadcast %cst_5 : f32 to vector<16x4608xf32>
    %7 = arith.cmpf oge, %5, %6 : vector<16x4608xf32>
    %cst_6 = arith.constant 2.000000e-01 : f32
    %8 = vector.broadcast %cst_6 : f32 to vector<16x4608xf32>
    %9 = arith.mulf %8, %5 : vector<16x4608xf32>
    %10 = arith.select %7, %5, %9 : vector<16x4608xi1>, vector<16x4608xf32>
    %11 = arith.truncf %10 : vector<16x4608xf32> to vector<16x4608xbf16>
    %c0_7 = arith.constant 0 : index
    %c0_8 = arith.constant 0 : index
    %12 = vector.load %arg4[%c0_7, %c0_8] : memref<16x4608xbf16, #tpu.memory_space<vmem>>, vector<16x4608xbf16>
    tpu.vector_store %arg4[%c0_7, %c0_8], %11 {strides = array<i32>} : memref<16x4608xbf16, #tpu.memory_space<vmem>>, vector<16x4608xbf16>,
    return
  }
  func.func @transform_0(%arg0: i32) -> (i32, i32) {
    %c0_i32 = arith.constant 0 : i32
    %c0_i32_0 = arith.constant 0 : i32
    %c0_i32_1 = arith.constant 0 : i32
    return %c0_i32, %c0_i32_0 : i32, i32
  }
  func.func @transform_1(%arg0: i32) -> (i32, i32) {
    %c0_i32 = arith.constant 0 : i32
    %c0_i32_0 = arith.constant 0 : i32
    return %c0_i32, %arg0 : i32, i32
  }
  func.func @transform_2(%arg0: i32) -> (i32, i32) {
    %c0_i32 = arith.constant 0 : i32
    %c0_i32_0 = arith.constant 0 : i32
    %c0_i32_1 = arith.constant 0 : i32
    return %c0_i32, %c0_i32_0 : i32, i32
  }
  func.func @transform_3(%arg0: i32) -> (i32, i32) {
    %c0_i32 = arith.constant 0 : i32
    %c0_i32_0 = arith.constant 0 : i32
    return %c0_i32, %arg0 : i32, i32
  }
}

module attributes {stable_mosaic.version = 11 : i64} {
  func.func @_wt_mm_bias_act_kernel(%arg0: i32, %arg1: memref<16x144xbf16, #tpu.memory_space<vmem>>, %arg2: memref<144x2304xbf16, #tpu.memory_space<vmem>>, %arg3: memref<16x1xf32, #tpu.memory_space<vmem>>, %arg4: memref<16x2304xbf16, #tpu.memory_space<vmem>>) attributes {dimension_semantics = [#tpu.dimension_semantics<parallel>], iteration_bounds = array<i64: 2>, scalar_prefetch = 0 : i64, scratch_operands = 0 : i64, tpu.core_type = #tpu.core_type<tc>, window_params = [{pipeline_mode = #tpu.pipeline_mode<synchronous>, transform_indices = @transform_0, window_bounds = array<i64: 16, 144>}, {transform_indices = @transform_1, window_bounds = array<i64: 144, 2304>}, {pipeline_mode = #tpu.pipeline_mode<synchronous>, transform_indices = @transform_2, window_bounds = array<i64: 16, 1>}, {transform_indices = @transform_3, window_bounds = array<i64: 16, 2304>}]} {
    %c0 = arith.constant 0 : index
    %c0_0 = arith.constant 0 : index
    %0 = vector.load %arg1[%c0, %c0_0] : memref<16x144xbf16, #tpu.memory_space<vmem>>, vector<16x144xbf16>
    %c0_1 = arith.constant 0 : index
    %c0_2 = arith.constant 0 : index
    %1 = vector.load %arg2[%c0_1, %c0_2] : memref<144x2304xbf16, #tpu.memory_space<vmem>>, vector<144x2304xbf16>
    %cst = arith.constant dense<0.000000e+00> : vector<16x2304xf32>
    %2 = tpu.matmul %0, %1, %cst {dimension_numbers = #tpu.dot_dimension_numbers<[1], [0], [0], [1], [0, 0, 1, 1], [], []>} : vector<16x144xbf16>, vector<144x2304xbf16>, vector<16x2304xf32> -> vector<16x2304xf32>
    %c0_3 = arith.constant 0 : index
    %c0_4 = arith.constant 0 : index
    %3 = vector.load %arg3[%c0_3, %c0_4] : memref<16x1xf32, #tpu.memory_space<vmem>>, vector<16x1xf32>
    %4 = vector.broadcast %3 : vector<16x1xf32> to vector<16x2304xf32>
    %5 = arith.addf %2, %4 : vector<16x2304xf32>
    %cst_5 = arith.constant 0.000000e+00 : f32
    %6 = vector.broadcast %cst_5 : f32 to vector<16x2304xf32>
    %7 = arith.cmpf oge, %5, %6 : vector<16x2304xf32>
    %cst_6 = arith.constant 2.000000e-01 : f32
    %8 = vector.broadcast %cst_6 : f32 to vector<16x2304xf32>
    %9 = arith.mulf %8, %5 : vector<16x2304xf32>
    %10 = arith.select %7, %5, %9 : vector<16x2304xi1>, vector<16x2304xf32>
    %11 = arith.truncf %10 : vector<16x2304xf32> to vector<16x2304xbf16>
    %c0_7 = arith.constant 0 : index
    %c0_8 = arith.constant 0 : index
    %12 = vector.load %arg4[%c0_7, %c0_8] : memref<16x2304xbf16, #tpu.memory_space<vmem>>, vector<16x2304xbf16>
    tpu.vector_store %arg4[%c0_7, %c0_8], %11 {strides = array<i32>} : memref<16x2304xbf16, #tpu.memory_space<vmem>>, vector<16x2304xbf16>,
    return
  }
  func.func @transform_0(%arg0: i32) -> (i32, i32) {
    %c0_i32 = arith.constant 0 : i32
    %c0_i32_0 = arith.constant 0 : i32
    %c0_i32_1 = arith.constant 0 : i32
    return %c0_i32, %c0_i32_0 : i32, i32
  }
  func.func @transform_1(%arg0: i32) -> (i32, i32) {
    %c0_i32 = arith.constant 0 : i32
    %c0_i32_0 = arith.constant 0 : i32
    return %c0_i32, %arg0 : i32, i32
  }
  func.func @transform_2(%arg0: i32) -> (i32, i32) {
    %c0_i32 = arith.constant 0 : i32
    %c0_i32_0 = arith.constant 0 : i32
    %c0_i32_1 = arith.constant 0 : i32
    return %c0_i32, %c0_i32_0 : i32, i32
  }
  func.func @transform_3(%arg0: i32) -> (i32, i32) {
    %c0_i32 = arith.constant 0 : i32
    %c0_i32_0 = arith.constant 0 : i32
    return %c0_i32, %arg0 : i32, i32
  }
}

</mosaic_0001>

<llo_original>
// kernel: stn_forward_pallas.2
$region0: #{stn_forward_pallas.2}
  #allocation0 [shape = 'u32[]', space=smem, size = 0x4, offset = 0x4, fixed_abs, tag = 'smem constant byte address 0x4 - core index']
  #allocation1 [shape = 'u32[72,128]{1,0:T(1,128)}', space=vmem, size = 0x9000, scoped, tag = 'internal scratch']
  %s0 = inlined_call_operand.vmem [shape: bf16[16,98], index: 0, kind: input, shape index: {}]
  %s1 = inlined_call_operand.vmem [shape: bf16[98,18432], index: 1, kind: input, shape index: {}]
  %s2 = inlined_call_operand.vmem [shape: f32[16,1], index: 2, kind: input, shape index: {}]
  %s3 = inlined_call_operand.vmem [shape: bf16[16,18432], index: 3, kind: output, shape index: {}]
  %s4 = sld [smem:[#allocation0]]
  $region87: #{stn_forward_pallas.2} parent=0
    _
  %s6 = ssub.s32 1, %s4
  %s7 = scalar_select 0, %s6, %s4
  $region1: #{stn_forward_pallas.2} parent=0
    #allocation2 [shape = 'u8[1916928]{0}', space=vmem, size = 0x1d4000, scoped, tag = 'input window, operand 1']
    #allocation3 [shape = 'u8[294912]{0}', space=vmem, size = 0x48000, scoped, tag = 'output window, operand 0']
    loop: start=0, step=1, limit=6
    $region2: #{stn_forward_pallas.2} parent=1 // loop_pre_header
      _
    $region3: #{stn_forward_pallas.2} parent=1 // loop_header
      %s9 = sphi 0, %s13
      %p10 = scmp.ge.s32.totalorder %s9, 6
      %s17 = sphi 0, %s17
      %s19 = sphi 0, %s17
      %s20 = sphi 0, %s19
      %s34 = sphi 0, %s20
      %s40 = sphi 0, %s42
      %s43 = sphi 0, %s40
      %s44 = sphi 0, %s43
      %s60 = sphi 0, %s44
      %s64 = sphi 0, %s64
      %s66 = sphi 0, %s64
      %s67 = sphi 0, %s66
      %s81 = sphi 0, %s67
      %s87 = sphi 0, %s89
      %s90 = sphi 0, %s87
      %s91 = sphi 0, %s90
      %s107 = sphi 0, %s91
    $region4: #{stn_forward_pallas.2} parent=1 // loop_header_branch
      %12 = sbr.rel (%p10) target = $region8
    $region5: #{stn_forward_pallas.2} parent=1 // loop_body
      %s14 = ssub.s32 %s9, 1
      %s15 = ssub.s32 %s9, 2
      %s16 = sadd.s32 %s9, 1
      %s18 = sadd.s32 %s17, 1
      %p21 = scmp.eq.s32.totalorder %s9, 3
      %p22 = scmp.ne.s32.totalorder %s17, %s19
      %p23 = scmp.eq.s32.totalorder %s9, 0
      %p24 = por %p22, %p23
      %p25 = scmp.ne.s32.totalorder %s17, %s19
      %p26 = scmp.eq.s32.totalorder %s14, 3
      %p27 = por %p25, %p26
      %p28 = scmp.ne.s32.totalorder %s19, %s20
      %p29 = scmp.eq.s32.totalorder %s14, 0
      %p30 = por %p28, %p29
      %p31 = scmp.ne.s32.totalorder %s19, %s20
      %p32 = scmp.eq.s32.totalorder %s15, 3
      %p33 = por %p31, %p32
      %p35 = scmp.ne.s32.totalorder %s20, %s34
      %p36 = scmp.eq.s32.totalorder %s15, 0
      %p37 = por %p35, %p36
      %s38 = ssub.s32 %s9, %s16
      %p39 = scmp.eq.s32.totalorder %s38, 0
      %s41 = sadd.s32 %s40, 1
      %s42 = scalar_select %p39, %s40, %s41
      %p45 = pneg %p39
      %p46 = scmp.eq.s32.totalorder %s9, 3
      %p47 = por %p45, %p46
      %p48 = scmp.ne.s32.totalorder %s40, %s43
      %p49 = scmp.eq.s32.totalorder %s9, 0
      %p50 = por %p48, %p49
      %p51 = scmp.ne.s32.totalorder %s40, %s43
      %p52 = scmp.eq.s32.totalorder %s14, 3
      %p53 = por %p51, %p52
      %p54 = scmp.ne.s32.totalorder %s43, %s44
      %p55 = scmp.eq.s32.totalorder %s14, 0
      %p56 = por %p54, %p55
      %p57 = scmp.ne.s32.totalorder %s43, %s44
      %p58 = scmp.eq.s32.totalorder %s15, 3
      %p59 = por %p57, %p58
      %p61 = scmp.ne.s32.totalorder %s44, %s60
      %p62 = scmp.eq.s32.totalorder %s15, 0
      %p63 = por %p61, %p62
      %s65 = sadd.s32 %s64, 1
      %p68 = scmp.eq.s32.totalorder %s9, 3
      %p69 = scmp.ne.s32.totalorder %s64, %s66
      %p70 = scmp.eq.s32.totalorder %s9, 0
      %p71 = por %p69, %p70
      %p72 = scmp.ne.s32.totalorder %s64, %s66
      %p73 = scmp.eq.s32.totalorder %s14, 3
      %p74 = por %p72, %p73
      %p75 = scmp.ne.s32.totalorder %s66, %s67
      %p76 = scmp.eq.s32.totalorder %s14, 0
      %p77 = por %p75, %p76
      %p78 = scmp.ne.s32.totalorder %s66, %s67
      %p79 = scmp.eq.s32.totalorder %s15, 3
      %p80 = por %p78, %p79
      %p82 = scmp.ne.s32.totalorder %s67, %s81
      %p83 = scmp.eq.s32.totalorder %s15, 0
      %p84 = por %p82, %p83
      %s85 = ssub.s32 %s9, %s16
      %p86 = scmp.eq.s32.totalorder %s85, 0
      %s88 = sadd.s32 %s87, 1
      %s89 = scalar_select %p86, %s87, %s88
      %p92 = pneg %p86
      %p93 = scmp.eq.s32.totalorder %s9, 3
      %p94 = por %p92, %p93
      %p95 = scmp.ne.s32.totalorder %s87, %s90
      %p96 = scmp.eq.s32.totalorder %s9, 0
      %p97 = por %p95, %p96
      %p98 = scmp.ne.s32.totalorder %s87, %s90
      %p99 = scmp.eq.s32.totalorder %s14, 3
      %p100 = por %p98, %p99
      %p101 = scmp.ne.s32.totalorder %s90, %s91
      %p102 = scmp.eq.s32.totalorder %s14, 0
      %p103 = por %p101, %p102
      %p104 = scmp.ne.s32.totalorder %s90, %s91
      %p105 = scmp.eq.s32.totalorder %s15, 3
      %p106 = por %p104, %p105
      %p108 = scmp.ne.s32.totalorder %s91, %s107
      %p109 = scmp.eq.s32.totalorder %s15, 0
      %p110 = por %p108, %p109
      %p111 = scmp.le.s32.totalorder 1, %s9
      %p112 = scmp.lt.s32.totalorder %s9, 5
      %p113 = pnand %p111, %p112
      %p114 = pneg %p113
      // Predicated region
      $region9: #{stn_forward_pallas.2} parent=5 // pred_check
        _
      $region10: #{stn_forward_pallas.2} parent=5 // pred_check_branch
        %116 = sbr.rel (%p113) target = $region12
      $region11: #{stn_forward_pallas.2} parent=5 // pred_region
        %s117 = ssub.s32 %s9, 1
        // Predicated region
        $region13: #{stn_forward_pallas.2} parent=11 // pred_check
          %p118 = pneg %p30
        $region14: #{stn_forward_pallas.2} parent=11 // pred_check_branch
          %120 = sbr.rel (%p118) target = $region16
        $region15: #{stn_forward_pallas.2} parent=11 // pred_region
          _
        $region16: #{stn_forward_pallas.2} parent=11 // pred_fallthru
          _
        // Predicated region
        $region17: #{stn_forward_pallas.2} parent=11 // pred_check
          %p121 = pneg %p77
        $region18: #{stn_forward_pallas.2} parent=11 // pred_check_branch
          %123 = sbr.rel (%p121) target = $region20
        $region19: #{stn_forward_pallas.2} parent=11 // pred_region
          _
        $region20: #{stn_forward_pallas.2} parent=11 // pred_fallthru
          _
      $region12: #{stn_forward_pallas.2} parent=5 // pred_fallthru
        _
      %p124 = scmp.lt.s32.totalorder %s9, 4
      // Predicated region
      $region21: #{stn_forward_pallas.2} parent=5 // pred_check
        %p125 = pneg %p124
      $region22: #{stn_forward_pallas.2} parent=5 // pred_check_branch
        %127 = sbr.rel (%p125) target = $region24
      $region23: #{stn_forward_pallas.2} parent=5 // pred_region
        // Predicated region
        $region25: #{stn_forward_pallas.2} parent=23 // pred_check
          %p128 = pneg %p50
        $region26: #{stn_forward_pallas.2} parent=23 // pred_check_branch
          %130 = sbr.rel (%p128) target = $region28
        $region27: #{stn_forward_pallas.2} parent=23 // pred_region
          %s131 = sand.u32 %s40, 1
          %s132 = sand.u32 %s40, 1
          %s133 = smul.addr %s132, 1872
          %s134 = scalar_lea.vmem [#allocation2], %s133
          %s135 = smul.u32 36, %s9
          %s136 = smul.addr %s135, 4
          %s137 = scalar_lea.vmem %s1, %s136
          // Predicated region
          $region29: #{stn_forward_pallas.2} parent=27 // pred_check
            _
          $region30: #{stn_forward_pallas.2} parent=27 // pred_check_branch
            %139 = sbr.rel (0) target = $region32
          $region31: #{stn_forward_pallas.2} parent=27 // pred_region
            // Predicated region
            $region33: #{stn_forward_pallas.2} parent=31 // pred_check
              _
            $region34: #{stn_forward_pallas.2} parent=31 // pred_check_branch
              %141 = sbr.rel (0) target = $region36
            $region35: #{stn_forward_pallas.2} parent=31 // pred_region
              loop: start=0, step=1, limit=1
              $region37: #{stn_forward_pallas.2} parent=35 // loop_pre_header
                _
              $region38: #{stn_forward_pallas.2} parent=35 // loop_header
                %s143 = sphi 0, %s147
                %p144 = scmp.ge.s32.totalorder %s143, 1
                %s148 = sphi %s137, %s137
                %s149 = sphi %s134, %s134
              $region39: #{stn_forward_pallas.2} parent=35 // loop_header_branch
                %146 = sbr.rel (%p144) target = $region43
              $region40: #{stn_forward_pallas.2} parent=35 // loop_body
                %v150 = vld [vmem:[%s148] sm:$0xff]
                %151 = vst [vmem:[%s149] sm:$0xff] %v150
                %v152 = vld [vmem:[%s148 + $0x8] sm:$0xff]
                %153 = vst [vmem:[%s149 + $0x8] sm:$0xff] %v152
                %v154 = vld [vmem:[%s148 + $0x10] sm:$0xff]
                %155 = vst [vmem:[%s149 + $0x10] sm:$0xff] %v154
                %v156 = vld [vmem:[%s148 + $0x18] sm:$0xff]
                %157 = vst [vmem:[%s149 + $0x18] sm:$0xff] %v156
                %v158 = vld [vmem:[%s148 + $0x20] sm:$0xff]
                %159 = vst [vmem:[%s149 + $0x20] sm:$0xff] %v158
                %v160 = vld [vmem:[%s148 + $0x28] sm:$0xff]
                %161 = vst [vmem:[%s149 + $0x28] sm:$0xff] %v160
                %v162 = vld [vmem:[%s148 + $0x30] sm:$0xff]
                %163 = vst [vmem:[%s149 + $0x30] sm:$0xff] %v162
                %v164 = vld [vmem:[%s148 + $0x38] sm:$0xff]
                %165 = vst [vmem:[%s149 + $0x38] sm:$0xff] %v164
                %v166 = vld [vmem:[%s148 + $0x40] sm:$0xff]
                %167 = vst [vmem:[%s149 + $0x40] sm:$0xff] %v166
                %v168 = vld [vmem:[%s148 + $0x48] sm:$0xff]
                %169 = vst [vmem:[%s149 + $0x48] sm:$0xff] %v168
                %v170 = vld [vmem:[%s148 + $0x50] sm:$0xff]
                %171 = vst [vmem:[%s149 + $0x50] sm:$0xff] %v170
                %v172 = vld [vmem:[%s148 + $0x58] sm:$0xff]
                %173 = vst [vmem:[%s149 + $0x58] sm:$0xff] %v172
                %v174 = vld [vmem:[%s148 + $0x60] sm:$0xff]
                %175 = vst [vmem:[%s149 + $0x60] sm:$0xff] %v174
                %v176 = vld [vmem:[%s148 + $0x68] sm:$0xff]
                %177 = vst [vmem:[%s149 + $0x68] sm:$0xff] %v176
                %v178 = vld [vmem:[%s148 + $0x70] sm:$0xff]
                %179 = vst [vmem:[%s149 + $0x70] sm:$0xff] %v178
                %v180 = vld [vmem:[%s148 + $0x78] sm:$0xff]
                %181 = vst [vmem:[%s149 + $0x78] sm:$0xff] %v180
                %v182 = vld [vmem:[%s148 + $0x80] sm:$0xff]
                %183 = vst [vmem:[%s149 + $0x80] sm:$0xff] %v182
                %v184 = vld [vmem:[%s148 + $0x88] sm:$0xff]
                %185 = vst [vmem:[%s149 + $0x88] sm:$0xff] %v184
                %v186 = vld [vmem:[%s148 + $0x240] sm:$0xff]
                %187 = vst [vmem:[%s149 + $0x90] sm:$0xff] %v186
                %v188 = vld [vmem:[%s148 + $0x248] sm:$0xff]
                %189 = vst [vmem:[%s149 + $0x98] sm:$0xff] %v188
                %v190 = vld [vmem:[%s148 + $0x250] sm:$0xff]
                %191 = vst [vmem:[%s149 + $0xa0] sm:$0xff] %v190
                %v192 = vld [vmem:[%s148 + $0x258] sm:$0xff]
                %193 = vst [vmem:[%s149 + $0xa8] sm:$0xff] %v192
                %v194 = vld [vmem:[%s148 + $0x260] sm:$0xff]
                %195 = vst [vmem:[%s149 + $0xb0] sm:$0xff] %v194
                %v196 = vld [vmem:[%s148 + $0x268] sm:$0xff]
                %197 = vst [vmem:[%s149 + $0xb8] sm:$0xff] %v196
                %v198 = vld [vmem:[%s148 + $0x270] sm:$0xff]
                %199 = vst [vmem:[%s149 + $0xc0] sm:$0xff] %v198
                %v200 = vld [vmem:[%s148 + $0x278] sm:$0xff]
                %201 = vst [vmem:[%s149 + $0xc8] sm:$0xff] %v200
                %v202 = vld [vmem:[%s148 + $0x280] sm:$0xff]
                %203 = vst [vmem:[%s149 + $0xd0] sm:$0xff] %v202
                %v204 = vld [vmem:[%s148 + $0x288] sm:$0xff]
                %205 = vst [vmem:[%s149 + $0xd8] sm:$0xff] %v204
                %v206 = vld [vmem:[%s148 + $0x290] sm:$0xff]
                %207 = vst [vmem:[%s149 + $0xe0] sm:$0xff] %v206
                %v208 = vld [vmem:[%s148 + $0x298] sm:$0xff]
                %209 = vst [vmem:[%s149 + $0xe8] sm:$0xff] %v208
                %v210 = vld [vmem:[%s148 + $0x2a0] sm:$0xff]
                %211 = vst [vmem:[%s149 + $0xf0] sm:$0xff] %v210
                %v212 = vld [vmem:[%s148 + $0x2a8] sm:$0xff]
                %213 = vst [vmem:[%s149 + $0xf8] sm:$0xff] %v212
                %v214 = vld [vmem:[%s148 + $0x2b0] sm:$0xff]
                %215 = vst [vmem:[%s149 + $0x100] sm:$0xff] %v214
                %v216 = vld [vmem:[%s148 + $0x2b8] sm:$0xff]
                %217 = vst [vmem:[%s149 + $0x108] sm:$0xff] %v216
                %v218 = vld [vmem:[%s148 + $0x2c0] sm:$0xff]
                %219 = vst [vmem:[%s149 + $0x110] sm:$0xff] %v218
                %v220 = vld [vmem:[%s148 + $0x2c8] sm:$0xff]
                %221 = vst [vmem:[%s149 + $0x118] sm:$0xff] %v220
                %v222 = vld [vmem:[%s148 + $0x480] sm:$0xff]
                %223 = vst [vmem:[%s149 + $0x120] sm:$0xff] %v222
                %v224 = vld [vmem:[%s148 + $0x488] sm:$0xff]
                %225 = vst [vmem:[%s149 + $0x128] sm:$0xff] %v224
                %v226 = vld [vmem:[%s148 + $0x490] sm:$0xff]
                %227 = vst [vmem:[%s149 + $0x130] sm:$0xff] %v226
                %v228 = vld [vmem:[%s148 + $0x498] sm:$0xff]
                %229 = vst [vmem:[%s149 + $0x138] sm:$0xff] %v228
                %v230 = vld [vmem:[%s148 + $0x4a0] sm:$0xff]
                %231 = vst [vmem:[%s149 + $0x140] sm:$0xff] %v230
                %v232 = vld [vmem:[%s148 + $0x4a8] sm:$0xff]
                %233 = vst [vmem:[%s149 + $0x148] sm:$0xff] %v232
                %v234 = vld [vmem:[%s148 + $0x4b0] sm:$0xff]
                %235 = vst [vmem:[%s149 + $0x150] sm:$0xff] %v234
                %v236 = vld [vmem:[%s148 + $0x4b8] sm:$0xff]
                %237 = vst [vmem:[%s149 + $0x158] sm:$0xff] %v236
                %v238 = vld [vmem:[%s148 + $0x4c0] sm:$0xff]
                %239 = vst [vmem:[%s149 + $0x160] sm:$0xff] %v238
                %v240 = vld [vmem:[%s148 + $0x4c8] sm:$0xff]
                %241 = vst [vmem:[%s149 + $0x168] sm:$0xff] %v240
                %v242 = vld [vmem:[%s148 + $0x4d0] sm:$0xff]
                %243 = vst [vmem:[%s149 + $0x170] sm:$0xff] %v242
                %v244 = vld [vmem:[%s148 + $0x4d8] sm:$0xff]
                %245 = vst [vmem:[%s149 + $0x178] sm:$0xff] %v244
                %v246 = vld [vmem:[%s148 + $0x4e0] sm:$0xff]
                %247 = vst [vmem:[%s149 + $0x180] sm:$0xff] %v246
                %v248 = vld [vmem:[%s148 + $0x4e8] sm:$0xff]
                %249 = vst [vmem:[%s149 + $0x188] sm:$0xff] %v248
                %v250 = vld [vmem:[%s148 + $0x4f0] sm:$0xff]
                %251 = vst [vmem:[%s149 + $0x190] sm:$0xff] %v250
                %v252 = vld [vmem:[%s148 + $0x4f8] sm:$0xff]
                %253 = vst [vmem:[%s149 + $0x198] sm:$0xff] %v252
                %v254 = vld [vmem:[%s148 + $0x500] sm:$0xff]
                %255 = vst [vmem:[%s149 + $0x1a0] sm:$0xff] %v254
                %v256 = vld [vmem:[%s148 + $0x508] sm:$0xff]
                %257 = vst [vmem:[%s149 + $0x1a8] sm:$0xff] %v256
                %v258 = vld [vmem:[%s148 + $0x6c0] sm:$0xff]
                %259 = vst [vmem:[%s149 + $0x1b0] sm:$0xff] %v258
                %v260 = vld [vmem:[%s148 + $0x6c8] sm:$0xff]
                %261 = vst [vmem:[%s149 + $0x1b8] sm:$0xff] %v260
                %v262 = vld [vmem:[%s148 + $0x6d0] sm:$0xff]
                %263 = vst [vmem:[%s149 + $0x1c0] sm:$0xff] %v262
                %v264 = vld [vmem:[%s148 + $0x6d8] sm:$0xff]
                %265 = vst [vmem:[%s149 + $0x1c8] sm:$0xff] %v264
                %v266 = vld [vmem:[%s148 + $0x6e0] sm:$0xff]
                %267 = vst [vmem:[%s149 + $0x1d0] sm:$0xff] %v266
                %v268 = vld [vmem:[%s148 + $0x6e8] sm:$0xff]
                %269 = vst [vmem:[%s149 + $0x1d8] sm:$0xff] %v268
                %v270 = vld [vmem:[%s148 + $0x6f0] sm:$0xff]
                %271 = vst [vmem:[%s149 + $0x1e0] sm:$0xff] %v270
                %v272 = vld [vmem:[%s148 + $0x6f8] sm:$0xff]
                %273 = vst [vmem:[%s149 + $0x1e8] sm:$0xff] %v272
                %v274 = vld [vmem:[%s148 + $0x700] sm:$0xff]
                %275 = vst [vmem:[%s149 + $0x1f0] sm:$0xff] %v274
                %v276 = vld [vmem:[%s148 + $0x708] sm:$0xff]
                %277 = vst [vmem:[%s149 + $0x1f8] sm:$0xff] %v276
                %v278 = vld [vmem:[%s148 + $0x710] sm:$0xff]
                %279 = vst [vmem:[%s149 + $0x200] sm:$0xff] %v278
                %v280 = vld [vmem:[%s148 + $0x718] sm:$0xff]
                %281 = vst [vmem:[%s149 + $0x208] sm:$0xff] %v280
                %v282 = vld [vmem:[%s148 + $0x720] sm:$0xff]
                %283 = vst [vmem:[%s149 + $0x210] sm:$0xff] %v282
                %v284 = vld [vmem:[%s148 + $0x728] sm:$0xff]
                %285 = vst [vmem:[%s149 + $0x218] sm:$0xff] %v284
                %v286 = vld [vmem:[%s148 + $0x730] sm:$0xff]
                %287 = vst [vmem:[%s149 + $0x220] sm:$0xff] %v286
                %v288 = vld [vmem:[%s148 + $0x738] sm:$0xff]
                %289 = vst [vmem:[%s149 + $0x228] sm:$0xff] %v288
                %v290 = vld [vmem:[%s148 + $0x740] sm:$0xff]
                %291 = vst [vmem:[%s149 + $0x230] sm:$0xff] %v290
                %v292 = vld [vmem:[%s148 + $0x748] sm:$0xff]
                %293 = vst [vmem:[%s149 + $0x238] sm:$0xff] %v292
                %v294 = vld [vmem:[%s148 + $0x900] sm:$0xff]
                %295 = vst [vmem:[%s149 + $0x240] sm:$0xff] %v294
                %v296 = vld [vmem:[%s148 + $0x908] sm:$0xff]
                %297 = vst [vmem:[%s149 + $0x248] sm:$0xff] %v296
                %v298 = vld [vmem:[%s148 + $0x910] sm:$0xff]
                %299 = vst [vmem:[%s149 + $0x250] sm:$0xff] %v298
                %v300 = vld [vmem:[%s148 + $0x918] sm:$0xff]
                %301 = vst [vmem:[%s149 + $0x258] sm:$0xff] %v300
                %v302 = vld [vmem:[%s148 + $0x920] sm:$0xff]
                %303 = vst [vmem:[%s149 + $0x260] sm:$0xff] %v302
                %v304 = vld [vmem:[%s148 + $0x928] sm:$0xff]
                %305 = vst [vmem:[%s149 + $0x268] sm:$0xff] %v304
                %v306 = vld [vmem:[%s148 + $0x930] sm:$0xff]
                %307 = vst [vmem:[%s149 + $0x270] sm:$0xff] %v306
                %v308 = vld [vmem:[%s148 + $0x938] sm:$0xff]
                %309 = vst [vmem:[%s149 + $0x278] sm:$0xff] %v308
                %v310 = vld [vmem:[%s148 + $0x940] sm:$0xff]
                %311 = vst [vmem:[%s149 + $0x280] sm:$0xff] %v310
                %v312 = vld [vmem:[%s148 + $0x948] sm:$0xff]
                %313 = vst [vmem:[%s149 + $0x288] sm:$0xff] %v312
                %v314 = vld [vmem:[%s148 + $0x950] sm:$0xff]
                %315 = vst [vmem:[%s149 + $0x290] sm:$0xff] %v314
                %v316 = vld [vmem:[%s148 + $0x958] sm:$0xff]
                %317 = vst [vmem:[%s149 + $0x298] sm:$0xff] %v316
                %v318 = vld [vmem:[%s148 + $0x960] sm:$0xff]
                %319 = vst [vmem:[%s149 + $0x2a0] sm:$0xff] %v318
                %v320 = vld [vmem:[%s148 + $0x968] sm:$0xff]
                %321 = vst [vmem:[%s149 + $0x2a8] sm:$0xff] %v320
                %v322 = vld [vmem:[%s148 + $0x970] sm:$0xff]
                %323 = vst [vmem:[%s149 + $0x2b0] sm:$0xff] %v322
                %v324 = vld [vmem:[%s148 + $0x978] sm:$0xff]
                %325 = vst [vmem:[%s149 + $0x2b8] sm:$0xff] %v324
                %v326 = vld [vmem:[%s148 + $0x980] sm:$0xff]
                %327 = vst [vmem:[%s149 + $0x2c0] sm:$0xff] %v326
                %v328 = vld [vmem:[%s148 + $0x988] sm:$0xff]
                %329 = vst [vmem:[%s149 + $0x2c8] sm:$0xff] %v328
                %v330 = vld [vmem:[%s148 + $0xb40] sm:$0xff]
                %331 = vst [vmem:[%s149 + $0x2d0] sm:$0xff] %v330
                %v332 = vld [vmem:[%s148 + $0xb48] sm:$0xff]
                %333 = vst [vmem:[%s149 + $0x2d8] sm:$0xff] %v332
                %v334 = vld [vmem:[%s148 + $0xb50] sm:$0xff]
                %335 = vst [vmem:[%s149 + $0x2e0] sm:$0xff] %v334
                %v336 = vld [vmem:[%s148 + $0xb58] sm:$0xff]
                %337 = vst [vmem:[%s149 + $0x2e8] sm:$0xff] %v336
                %v338 = vld [vmem:[%s148 + $0xb60] sm:$0xff]
                %339 = vst [vmem:[%s149 + $0x2f0] sm:$0xff] %v338
                %v340 = vld [vmem:[%s148 + $0xb68] sm:$0xff]
                %341 = vst [vmem:[%s149 + $0x2f8] sm:$0xff] %v340
                %v342 = vld [vmem:[%s148 + $0xb70] sm:$0xff]
                %343 = vst [vmem:[%s149 + $0x300] sm:$0xff] %v342
                %v344 = vld [vmem:[%s148 + $0xb78] sm:$0xff]
                %345 = vst [vmem:[%s149 + $0x308] sm:$0xff] %v344
                %v346 = vld [vmem:[%s148 + $0xb80] sm:$0xff]
                %347 = vst [vmem:[%s149 + $0x310] sm:$0xff] %v346
                %v348 = vld [vmem:[%s148 + $0xb88] sm:$0xff]
                %349 = vst [vmem:[%s149 + $0x318] sm:$0xff] %v348
                %v350 = vld [vmem:[%s148 + $0xb90] sm:$0xff]
                %351 = vst [vmem:[%s149 + $0x320] sm:$0xff] %v350
                %v352 = vld [vmem:[%s148 + $0xb98] sm:$0xff]
                %353 = vst [vmem:[%s149 + $0x328] sm:$0xff] %v352
                %v354 = vld [vmem:[%s148 + $0xba0] sm:$0xff]
                %355 = vst [vmem:[%s149 + $0x330] sm:$0xff] %v354
                %v356 = vld [vmem:[%s148 + $0xba8] sm:$0xff]
                %357 = vst [vmem:[%s149 + $0x338] sm:$0xff] %v356
                %v358 = vld [vmem:[%s148 + $0xbb0] sm:$0xff]
                %359 = vst [vmem:[%s149 + $0x340] sm:$0xff] %v358
                %v360 = vld [vmem:[%s148 + $0xbb8] sm:$0xff]
                %361 = vst [vmem:[%s149 + $0x348] sm:$0xff] %v360
                %v362 = vld [vmem:[%s148 + $0xbc0] sm:$0xff]
                %363 = vst [vmem:[%s149 + $0x350] sm:$0xff] %v362
                %v364 = vld [vmem:[%s148 + $0xbc8] sm:$0xff]
                %365 = vst [vmem:[%s149 + $0x358] sm:$0xff] %v364
                %v366 = vld [vmem:[%s148 + $0xd80] sm:$0xff]
                %367 = vst [vmem:[%s149 + $0x360] sm:$0xff] %v366
                %v368 = vld [vmem:[%s148 + $0xd88] sm:$0xff]
                %369 = vst [vmem:[%s149 + $0x368] sm:$0xff] %v368
                %v370 = vld [vmem:[%s148 + $0xd90] sm:$0xff]
                %371 = vst [vmem:[%s149 + $0x370] sm:$0xff] %v370
                %v372 = vld [vmem:[%s148 + $0xd98] sm:$0xff]
                %373 = vst [vmem:[%s149 + $0x378] sm:$0xff] %v372
                %v374 = vld [vmem:[%s148 + $0xda0] sm:$0xff]
                %375 = vst [vmem:[%s149 + $0x380] sm:$0xff] %v374
                %v376 = vld [vmem:[%s148 + $0xda8] sm:$0xff]
                %377 = vst [vmem:[%s149 + $0x388] sm:$0xff] %v376
                %v378 = vld [vmem:[%s148 + $0xdb0] sm:$0xff]
                %379 = vst [vmem:[%s149 + $0x390] sm:$0xff] %v378
                %v380 = vld [vmem:[%s148 + $0xdb8] sm:$0xff]
                %381 = vst [vmem:[%s149 + $0x398] sm:$0xff] %v380
                %v382 = vld [vmem:[%s148 + $0xdc0] sm:$0xff]
                %383 = vst [vmem:[%s149 + $0x3a0] sm:$0xff] %v382
                %v384 = vld [vmem:[%s148 + $0xdc8] sm:$0xff]
                %385 = vst [vmem:[%s149 + $0x3a8] sm:$0xff] %v384
                %v386 = vld [vmem:[%s148 + $0xdd0] sm:$0xff]
                %387 = vst [vmem:[%s149 + $0x3b0] sm:$0xff] %v386
                %v388 = vld [vmem:[%s148 + $0xdd8] sm:$0xff]
                %389 = vst [vmem:[%s149 + $0x3b8] sm:$0xff] %v388
                %v390 = vld [vmem:[%s148 + $0xde0] sm:$0xff]
                %391 = vst [vmem:[%s149 + $0x3c0] sm:$0xff] %v390
                %v392 = vld [vmem:[%s148 + $0xde8] sm:$0xff]
                %393 = vst [vmem:[%s149 + $0x3c8] sm:$0xff] %v392
                %v394 = vld [vmem:[%s148 + $0xdf0] sm:$0xff]
                %395 = vst [vmem:[%s149 + $0x3d0] sm:$0xff] %v394
                %v396 = vld [vmem:[%s148 + $0xdf8] sm:$0xff]
                %397 = vst [vmem:[%s149 + $0x3d8] sm:$0xff] %v396
                %v398 = vld [vmem:[%s148 + $0xe00] sm:$0xff]
                %399 = vst [vmem:[%s149 + $0x3e0] sm:$0xff] %v398
                %v400 = vld [vmem:[%s148 + $0xe08] sm:$0xff]
                %401 = vst [vmem:[%s149 + $0x3e8] sm:$0xff] %v400
                %v402 = vld [vmem:[%s148 + $0xfc0] sm:$0xff]
                %403 = vst [vmem:[%s149 + $0x3f0] sm:$0xff] %v402
                %v404 = vld [vmem:[%s148 + $0xfc8] sm:$0xff]
                %405 = vst [vmem:[%s149 + $0x3f8] sm:$0xff] %v404
                %v406 = vld [vmem:[%s148 + $0xfd0] sm:$0xff]
                %407 = vst [vmem:[%s149 + $0x400] sm:$0xff] %v406
                %v408 = vld [vmem:[%s148 + $0xfd8] sm:$0xff]
                %409 = vst [vmem:[%s149 + $0x408] sm:$0xff] %v408
                %v410 = vld [vmem:[%s148 + $0xfe0] sm:$0xff]
                %411 = vst [vmem:[%s149 + $0x410] sm:$0xff] %v410
                %v412 = vld [vmem:[%s148 + $0xfe8] sm:$0xff]
                %413 = vst [vmem:[%s149 + $0x418] sm:$0xff] %v412
                %v414 = vld [vmem:[%s148 + $0xff0] sm:$0xff]
                %415 = vst [vmem:[%s149 + $0x420] sm:$0xff] %v414
                %v416 = vld [vmem:[%s148 + $0xff8] sm:$0xff]
                %417 = vst [vmem:[%s149 + $0x428] sm:$0xff] %v416
                %v418 = vld [vmem:[%s148 + $0x1000] sm:$0xff]
                %419 = vst [vmem:[%s149 + $0x430] sm:$0xff] %v418
                %v420 = vld [vmem:[%s148 + $0x1008] sm:$0xff]
                %421 = vst [vmem:[%s149 + $0x438] sm:$0xff] %v420
                %v422 = vld [vmem:[%s148 + $0x1010] sm:$0xff]
                %423 = vst [vmem:[%s149 + $0x440] sm:$0xff] %v422
                %v424 = vld [vmem:[%s148 + $0x1018] sm:$0xff]
                %425 = vst [vmem:[%s149 + $0x448] sm:$0xff] %v424
                %v426 = vld [vmem:[%s148 + $0x1020] sm:$0xff]
                %427 = vst [vmem:[%s149 + $0x450] sm:$0xff] %v426
                %v428 = vld [vmem:[%s148 + $0x1028] sm:$0xff]
                %429 = vst [vmem:[%s149 + $0x458] sm:$0xff] %v428
                %v430 = vld [vmem:[%s148 + $0x1030] sm:$0xff]
                %431 = vst [vmem:[%s149 + $0x460] sm:$0xff] %v430
                %v432 = vld [vmem:[%s148 + $0x1038] sm:$0xff]
                %433 = vst [vmem:[%s149 + $0x468] sm:$0xff] %v432
                %v434 = vld [vmem:[%s148 + $0x1040] sm:$0xff]
                %435 = vst [vmem:[%s149 + $0x470] sm:$0xff] %v434
                %v436 = vld [vmem:[%s148 + $0x1048] sm:$0xff]
                %437 = vst [vmem:[%s149 + $0x478] sm:$0xff] %v436
                %v438 = vld [vmem:[%s148 + $0x1200] sm:$0xff]
                %439 = vst [vmem:[%s149 + $0x480] sm:$0xff] %v438
                %v440 = vld [vmem:[%s148 + $0x1208] sm:$0xff]
                %441 = vst [vmem:[%s149 + $0x488] sm:$0xff] %v440
                %v442 = vld [vmem:[%s148 + $0x1210] sm:$0xff]
                %443 = vst [vmem:[%s149 + $0x490] sm:$0xff] %v442
                %v444 = vld [vmem:[%s148 + $0x1218] sm:$0xff]
                %445 = vst [vmem:[%s149 + $0x498] sm:$0xff] %v444
                %v446 = vld [vmem:[%s148 + $0x1220] sm:$0xff]
                %447 = vst [vmem:[%s149 + $0x4a0] sm:$0xff] %v446
                %v448 = vld [vmem:[%s148 + $0x1228] sm:$0xff]
                %449 = vst [vmem:[%s149 + $0x4a8] sm:$0xff] %v448
                %v450 = vld [vmem:[%s148 + $0x1230] sm:$0xff]
                %451 = vst [vmem:[%s149 + $0x4b0] sm:$0xff] %v450
                %v452 = vld [vmem:[%s148 + $0x1238] sm:$0xff]
                %453 = vst [vmem:[%s149 + $0x4b8] sm:$0xff] %v452
                %v454 = vld [vmem:[%s148 + $0x1240] sm:$0xff]
                %455 = vst [vmem:[%s149 + $0x4c0] sm:$0xff] %v454
                %v456 = vld [vmem:[%s148 + $0x1248] sm:$0xff]
                %457 = vst [vmem:[%s149 + $0x4c8] sm:$0xff] %v456
                %v458 = vld [vmem:[%s148 + $0x1250] sm:$0xff]
                %459 = vst [vmem:[%s149 + $0x4d0] sm:$0xff] %v458
                %v460 = vld [vmem:[%s148 + $0x1258] sm:$0xff]
                %461 = vst [vmem:[%s149 + $0x4d8] sm:$0xff] %v460
                %v462 = vld [vmem:[%s148 + $0x1260] sm:$0xff]
                %463 = vst [vmem:[%s149 + $0x4e0] sm:$0xff] %v462
                %v464 = vld [vmem:[%s148 + $0x1268] sm:$0xff]
                %465 = vst [vmem:[%s149 + $0x4e8] sm:$0xff] %v464
                %v466 = vld [vmem:[%s148 + $0x1270] sm:$0xff]
                %467 = vst [vmem:[%s149 + $0x4f0] sm:$0xff] %v466
                %v468 = vld [vmem:[%s148 + $0x1278] sm:$0xff]
                %469 = vst [vmem:[%s149 + $0x4f8] sm:$0xff] %v468
                %v470 = vld [vmem:[%s148 + $0x1280] sm:$0xff]
                %471 = vst [vmem:[%s149 + $0x500] sm:$0xff] %v470
                %v472 = vld [vmem:[%s148 + $0x1288] sm:$0xff]
                %473 = vst [vmem:[%s149 + $0x508] sm:$0xff] %v472
                %v474 = vld [vmem:[%s148 + $0x1440] sm:$0xff]
                %475 = vst [vmem:[%s149 + $0x510] sm:$0xff] %v474
                %v476 = vld [vmem:[%s148 + $0x1448] sm:$0xff]
                %477 = vst [vmem:[%s149 + $0x518] sm:$0xff] %v476
                %v478 = vld [vmem:[%s148 + $0x1450] sm:$0xff]
                %479 = vst [vmem:[%s149 + $0x520] sm:$0xff] %v478
                %v480 = vld [vmem:[%s148 + $0x1458] sm:$0xff]
                %481 = vst [vmem:[%s149 + $0x528] sm:$0xff] %v480
                %v482 = vld [vmem:[%s148 + $0x1460] sm:$0xff]
                %483 = vst [vmem:[%s149 + $0x530] sm:$0xff] %v482
                %v484 = vld [vmem:[%s148 + $0x1468] sm:$0xff]
                %485 = vst [vmem:[%s149 + $0x538] sm:$0xff] %v484
                %v486 = vld [vmem:[%s148 + $0x1470] sm:$0xff]
                %487 = vst [vmem:[%s149 + $0x540] sm:$0xff] %v486
                %v488 = vld [vmem:[%s148 + $0x1478] sm:$0xff]
                %489 = vst [vmem:[%s149 + $0x548] sm:$0xff] %v488
                %v490 = vld [vmem:[%s148 + $0x1480] sm:$0xff]
                %491 = vst [vmem:[%s149 + $0x550] sm:$0xff] %v490
                %v492 = vld [vmem:[%s148 + $0x1488] sm:$0xff]
                %493 = vst [vmem:[%s149 + $0x558] sm:$0xff] %v492
                %v494 = vld [vmem:[%s148 + $0x1490] sm:$0xff]
                %495 = vst [vmem:[%s149 + $0x560] sm:$0xff] %v494
                %v496 = vld [vmem:[%s148 + $0x1498] sm:$0xff]
                %497 = vst [vmem:[%s149 + $0x568] sm:$0xff] %v496
                %v498 = vld [vmem:[%s148 + $0x14a0] sm:$0xff]
                %499 = vst [vmem:[%s149 + $0x570] sm:$0xff] %v498
                %v500 = vld [vmem:[%s148 + $0x14a8] sm:$0xff]
                %501 = vst [vmem:[%s149 + $0x578] sm:$0xff] %v500
                %v502 = vld [vmem:[%s148 + $0x14b0] sm:$0xff]
                %503 = vst [vmem:[%s149 + $0x580] sm:$0xff] %v502
                %v504 = vld [vmem:[%s148 + $0x14b8] sm:$0xff]
                %505 = vst [vmem:[%s149 + $0x588] sm:$0xff] %v504
                %v506 = vld [vmem:[%s148 + $0x14c0] sm:$0xff]
                %507 = vst [vmem:[%s149 + $0x590] sm:$0xff] %v506
                %v508 = vld [vmem:[%s148 + $0x14c8] sm:$0xff]
                %509 = vst [vmem:[%s149 + $0x598] sm:$0xff] %v508
                %v510 = vld [vmem:[%s148 + $0x1680] sm:$0xff]
                %511 = vst [vmem:[%s149 + $0x5a0] sm:$0xff] %v510
                %v512 = vld [vmem:[%s148 + $0x1688] sm:$0xff]
                %513 = vst [vmem:[%s149 + $0x5a8] sm:$0xff] %v512
                %v514 = vld [vmem:[%s148 + $0x1690] sm:$0xff]
                %515 = vst [vmem:[%s149 + $0x5b0] sm:$0xff] %v514
                %v516 = vld [vmem:[%s148 + $0x1698] sm:$0xff]
                %517 = vst [vmem:[%s149 + $0x5b8] sm:$0xff] %v516
                %v518 = vld [vmem:[%s148 + $0x16a0] sm:$0xff]
                %519 = vst [vmem:[%s149 + $0x5c0] sm:$0xff] %v518
                %v520 = vld [vmem:[%s148 + $0x16a8] sm:$0xff]
                %521 = vst [vmem:[%s149 + $0x5c8] sm:$0xff] %v520
                %v522 = vld [vmem:[%s148 + $0x16b0] sm:$0xff]
                %523 = vst [vmem:[%s149 + $0x5d0] sm:$0xff] %v522
                %v524 = vld [vmem:[%s148 + $0x16b8] sm:$0xff]
                %525 = vst [vmem:[%s149 + $0x5d8] sm:$0xff] %v524
                %v526 = vld [vmem:[%s148 + $0x16c0] sm:$0xff]
                %527 = vst [vmem:[%s149 + $0x5e0] sm:$0xff] %v526
                %v528 = vld [vmem:[%s148 + $0x16c8] sm:$0xff]
                %529 = vst [vmem:[%s149 + $0x5e8] sm:$0xff] %v528
                %v530 = vld [vmem:[%s148 + $0x16d0] sm:$0xff]
                %531 = vst [vmem:[%s149 + $0x5f0] sm:$0xff] %v530
                %v532 = vld [vmem:[%s148 + $0x16d8] sm:$0xff]
                %533 = vst [vmem:[%s149 + $0x5f8] sm:$0xff] %v532
                %v534 = vld [vmem:[%s148 + $0x16e0] sm:$0xff]
                %535 = vst [vmem:[%s149 + $0x600] sm:$0xff] %v534
                %v536 = vld [vmem:[%s148 + $0x16e8] sm:$0xff]
                %537 = vst [vmem:[%s149 + $0x608] sm:$0xff] %v536
                %v538 = vld [vmem:[%s148 + $0x16f0] sm:$0xff]
                %539 = vst [vmem:[%s149 + $0x610] sm:$0xff] %v538
                %v540 = vld [vmem:[%s148 + $0x16f8] sm:$0xff]
                %541 = vst [vmem:[%s149 + $0x618] sm:$0xff] %v540
                %v542 = vld [vmem:[%s148 + $0x1700] sm:$0xff]
                %543 = vst [vmem:[%s149 + $0x620] sm:$0xff] %v542
                %v544 = vld [vmem:[%s148 + $0x1708] sm:$0xff]
                %545 = vst [vmem:[%s149 + $0x628] sm:$0xff] %v544
                %v546 = vld [vmem:[%s148 + $0x18c0] sm:$0xff]
                %547 = vst [vmem:[%s149 + $0x630] sm:$0xff] %v546
                %v548 = vld [vmem:[%s148 + $0x18c8] sm:$0xff]
                %549 = vst [vmem:[%s149 + $0x638] sm:$0xff] %v548
                %v550 = vld [vmem:[%s148 + $0x18d0] sm:$0xff]
                %551 = vst [vmem:[%s149 + $0x640] sm:$0xff] %v550
                %v552 = vld [vmem:[%s148 + $0x18d8] sm:$0xff]
                %553 = vst [vmem:[%s149 + $0x648] sm:$0xff] %v552
                %v554 = vld [vmem:[%s148 + $0x18e0] sm:$0xff]
                %555 = vst [vmem:[%s149 + $0x650] sm:$0xff] %v554
                %v556 = vld [vmem:[%s148 + $0x18e8] sm:$0xff]
                %557 = vst [vmem:[%s149 + $0x658] sm:$0xff] %v556
                %v558 = vld [vmem:[%s148 + $0x18f0] sm:$0xff]
                %559 = vst [vmem:[%s149 + $0x660] sm:$0xff] %v558
                %v560 = vld [vmem:[%s148 + $0x18f8] sm:$0xff]
                %561 = vst [vmem:[%s149 + $0x668] sm:$0xff] %v560
                %v562 = vld [vmem:[%s148 + $0x1900] sm:$0xff]
                %563 = vst [vmem:[%s149 + $0x670] sm:$0xff] %v562
                %v564 = vld [vmem:[%s148 + $0x1908] sm:$0xff]
                %565 = vst [vmem:[%s149 + $0x678] sm:$0xff] %v564
                %v566 = vld [vmem:[%s148 + $0x1910] sm:$0xff]
                %567 = vst [vmem:[%s149 + $0x680] sm:$0xff] %v566
                %v568 = vld [vmem:[%s148 + $0x1918] sm:$0xff]
                %569 = vst [vmem:[%s149 + $0x688] sm:$0xff] %v568
                %v570 = vld [vmem:[%s148 + $0x1920] sm:$0xff]
                %571 = vst [vmem:[%s149 + $0x690] sm:$0xff] %v570
                %v572 = vld [vmem:[%s148 + $0x1928] sm:$0xff]
                %573 = vst [vmem:[%s149 + $0x698] sm:$0xff] %v572
                %v574 = vld [vmem:[%s148 + $0x1930] sm:$0xff]
                %575 = vst [vmem:[%s149 + $0x6a0] sm:$0xff] %v574
                %v576 = vld [vmem:[%s148 + $0x1938] sm:$0xff]
                %577 = vst [vmem:[%s149 + $0x6a8] sm:$0xff] %v576
                %v578 = vld [vmem:[%s148 + $0x1940] sm:$0xff]
                %579 = vst [vmem:[%s149 + $0x6b0] sm:$0xff] %v578
                %v580 = vld [vmem:[%s148 + $0x1948] sm:$0xff]
                %581 = vst [vmem:[%s149 + $0x6b8] sm:$0xff] %v580
                %v582 = vld [vmem:[%s148 + $0x1b00] sm:$0xff]
                %583 = vst [vmem:[%s149 + $0x6c0] sm:$0xff] %v582
                %v584 = vld [vmem:[%s148 + $0x1b08] sm:$0xff]
                %585 = vst [vmem:[%s149 + $0x6c8] sm:$0xff] %v584
                %v586 = vld [vmem:[%s148 + $0x1b10] sm:$0xff]
                %587 = vst [vmem:[%s149 + $0x6d0] sm:$0xff] %v586
                %v588 = vld [vmem:[%s148 + $0x1b18] sm:$0xff]
                %589 = vst [vmem:[%s149 + $0x6d8] sm:$0xff] %v588
                %v590 = vld [vmem:[%s148 + $0x1b20] sm:$0xff]
                %591 = vst [vmem:[%s149 + $0x6e0] sm:$0xff] %v590
                %v592 = vld [vmem:[%s148 + $0x1b28] sm:$0xff]
                %593 = vst [vmem:[%s149 + $0x6e8] sm:$0xff] %v592
                %v594 = vld [vmem:[%s148 + $0x1b30] sm:$0xff]
                %595 = vst [vmem:[%s149 + $0x6f0] sm:$0xff] %v594
                %v596 = vld [vmem:[%s148 + $0x1b38] sm:$0xff]
                %597 = vst [vmem:[%s149 + $0x6f8] sm:$0xff] %v596
                %v598 = vld [vmem:[%s148 + $0x1b40] sm:$0xff]
                %599 = vst [vmem:[%s149 + $0x700] sm:$0xff] %v598
                %v600 = vld [vmem:[%s148 + $0x1b48] sm:$0xff]
                %601 = vst [vmem:[%s149 + $0x708] sm:$0xff] %v600
                %v602 = vld [vmem:[%s148 + $0x1b50] sm:$0xff]
                %603 = vst [vmem:[%s149 + $0x710] sm:$0xff] %v602
                %v604 = vld [vmem:[%s148 + $0x1b58] sm:$0xff]
                %605 = vst [vmem:[%s149 + $0x718] sm:$0xff] %v604
                %v606 = vld [vmem:[%s148 + $0x1b60] sm:$0xff]
                %607 = vst [vmem:[%s149 + $0x720] sm:$0xff] %v606
                %v608 = vld [vmem:[%s148 + $0x1b68] sm:$0xff]
                %609 = vst [vmem:[%s149 + $0x728] sm:$0xff] %v608
                %v610 = vld [vmem:[%s148 + $0x1b70] sm:$0xff]
                %611 = vst [vmem:[%s149 + $0x730] sm:$0xff] %v610
                %v612 = vld [vmem:[%s148 + $0x1b78] sm:$0xff]
                %613 = vst [vmem:[%s149 + $0x738] sm:$0xff] %v612
                %v614 = vld [vmem:[%s148 + $0x1b80] sm:$0xff]
                %615 = vst [vmem:[%s149 + $0x740] sm:$0xff] %v614
                %v616 = vld [vmem:[%s148 + $0x1b88] sm:$0xff]
                %617 = vst [vmem:[%s149 + $0x748] sm:$0xff] %v616
              $region41: #{stn_forward_pallas.2} parent=35 // loop_footer
                %s147 = sadd.s32 1, %s143
              $region42: #{stn_forward_pallas.2} parent=35 // loop_footer_branch
                %142 = sbr.rel target = $region38
              $region43: #{stn_forward_pallas.2} parent=35 // loop_exit
                _
            $region36: #{stn_forward_pallas.2} parent=31 // pred_fallthru
              _
            // Predicated region
            $region44: #{stn_forward_pallas.2} parent=31 // pred_check
              _
            $region45: #{stn_forward_pallas.2} parent=31 // pred_check_branch
              %619 = sbr.rel target = $region47
            $region46: #{stn_forward_pallas.2} parent=31 // pred_region
              _
            $region47: #{stn_forward_pallas.2} parent=31 // pred_fallthru
              _
          $region32: #{stn_forward_pallas.2} parent=27 // pred_fallthru
            _
          %620 = vnop
        $region28: #{stn_forward_pallas.2} parent=23 // pred_fallthru
          _
      $region24: #{stn_forward_pallas.2} parent=5 // pred_fallthru
        _
      %p621 = scmp.le.s32.totalorder 1, %s9
      %p622 = scmp.lt.s32.totalorder %s9, 5
      %p623 = pnand %p621, %p622
      %p624 = pneg %p623
      // Predicated region
      $region48: #{stn_forward_pallas.2} parent=5 // pred_check
        _
      $region49: #{stn_forward_pallas.2} parent=5 // pred_check_branch
        %626 = sbr.rel (%p623) target = $region51
      $region50: #{stn_forward_pallas.2} parent=5 // pred_region
        %s627 = ssub.s32 %s9, 1
        %s628 = sand.u32 %s43, 1
        %s629 = sand.u32 %s43, 1
        %s630 = smul.addr %s629, 1872
        %s631 = scalar_lea.vmem [#allocation2], %s630
        // Predicated region
        $region52: #{stn_forward_pallas.2} parent=50 // pred_check
          %p632 = pneg %p56
        $region53: #{stn_forward_pallas.2} parent=50 // pred_check_branch
          %634 = sbr.rel (%p632) target = $region55
        $region54: #{stn_forward_pallas.2} parent=50 // pred_region
          _
        $region55: #{stn_forward_pallas.2} parent=50 // pred_fallthru
          _
        %p635 = pneg %p30
        %p636 = pneg %p27
        %s637 = sand.u32 %s43, 1
        %s638 = sand.u32 %s43, 1
        %s639 = smul.addr %s638, 1872
        %s640 = scalar_lea.vmem [#allocation2], %s639
        %p641 = pneg %p56
        %p642 = pneg %p53
        %p643 = pneg %p77
        %p644 = pneg %p74
        %p645 = pneg %p103
        %p646 = pneg %p100
        %s647 = sand.u32 %s90, 1
        %s648 = sand.u32 %s90, 1
        %s649 = smul.addr %s648, 288
        %s650 = scalar_lea.vmem [#allocation3], %s649
        %s651 = smul.u32 36, %s14
        %s652 = smul.u32 36, %s14
        %v654 = vld [vmem:[%s0] sm:$0xf]
        %v655 = vld [vmem:[%s0 + $0x4] sm:$0xf]
        %v656 = vld [vmem:[%s631] sm:$0xff]
        %v657 = vld [vmem:[%s631 + $0x8] sm:$0xff]
        %v658 = vld [vmem:[%s631 + $0x10] sm:$0xff]
        %v659 = vld [vmem:[%s631 + $0x18] sm:$0xff]
        %v660 = vld [vmem:[%s631 + $0x20] sm:$0xff]
        %v661 = vld [vmem:[%s631 + $0x28] sm:$0xff]
        %v662 = vld [vmem:[%s631 + $0x30] sm:$0xff]
        %v663 = vld [vmem:[%s631 + $0x38] sm:$0xff]
        %v664 = vld [vmem:[%s631 + $0x40] sm:$0xff]
        %v665 = vld [vmem:[%s631 + $0x48] sm:$0xff]
        %v666 = vld [vmem:[%s631 + $0x50] sm:$0xff]
        %v667 = vld [vmem:[%s631 + $0x58] sm:$0xff]
        %v668 = vld [vmem:[%s631 + $0x60] sm:$0xff]
        %v669 = vld [vmem:[%s631 + $0x68] sm:$0xff]
        %v670 = vld [vmem:[%s631 + $0x70] sm:$0xff]
        %v671 = vld [vmem:[%s631 + $0x78] sm:$0xff]
        %v672 = vld [vmem:[%s631 + $0x80] sm:$0xff]
        %v673 = vld [vmem:[%s631 + $0x88] sm:$0xff]
        %v674 = vld [vmem:[%s631 + $0x90] sm:$0xff]
        %v675 = vld [vmem:[%s631 + $0x98] sm:$0xff]
        %v676 = vld [vmem:[%s631 + $0xa0] sm:$0xff]
        %v677 = vld [vmem:[%s631 + $0xa8] sm:$0xff]
        %v678 = vld [vmem:[%s631 + $0xb0] sm:$0xff]
        %v679 = vld [vmem:[%s631 + $0xb8] sm:$0xff]
        %v680 = vld [vmem:[%s631 + $0xc0] sm:$0xff]
        %v681 = vld [vmem:[%s631 + $0xc8] sm:$0xff]
        %v682 = vld [vmem:[%s631 + $0xd0] sm:$0xff]
        %v683 = vld [vmem:[%s631 + $0xd8] sm:$0xff]
        %v684 = vld [vmem:[%s631 + $0xe0] sm:$0xff]
        %v685 = vld [vmem:[%s631 + $0xe8] sm:$0xff]
        %v686 = vld [vmem:[%s631 + $0xf0] sm:$0xff]
        %v687 = vld [vmem:[%s631 + $0xf8] sm:$0xff]
        %v688 = vld [vmem:[%s631 + $0x100] sm:$0xff]
        %v689 = vld [vmem:[%s631 + $0x108] sm:$0xff]
        %v690 = vld [vmem:[%s631 + $0x110] sm:$0xff]
        %v691 = vld [vmem:[%s631 + $0x118] sm:$0xff]
        %v692 = vld [vmem:[%s631 + $0x120] sm:$0xff]
        %v693 = vld [vmem:[%s631 + $0x128] sm:$0xff]
        %v694 = vld [vmem:[%s631 + $0x130] sm:$0xff]
        %v695 = vld [vmem:[%s631 + $0x138] sm:$0xff]
        %v696 = vld [vmem:[%s631 + $0x140] sm:$0xff]
        %v697 = vld [vmem:[%s631 + $0x148] sm:$0xff]
        %v698 = vld [vmem:[%s631 + $0x150] sm:$0xff]
        %v699 = vld [vmem:[%s631 + $0x158] sm:$0xff]
        %v700 = vld [vmem:[%s631 + $0x160] sm:$0xff]
        %v701 = vld [vmem:[%s631 + $0x168] sm:$0xff]
        %v702 = vld [vmem:[%s631 + $0x170] sm:$0xff]
        %v703 = vld [vmem:[%s631 + $0x178] sm:$0xff]
        %v704 = vld [vmem:[%s631 + $0x180] sm:$0xff]
        %v705 = vld [vmem:[%s631 + $0x188] sm:$0xff]
        %v706 = vld [vmem:[%s631 + $0x190] sm:$0xff]
        %v707 = vld [vmem:[%s631 + $0x198] sm:$0xff]
        %v708 = vld [vmem:[%s631 + $0x1a0] sm:$0xff]
        %v709 = vld [vmem:[%s631 + $0x1a8] sm:$0xff]
        %v710 = vld [vmem:[%s631 + $0x1b0] sm:$0xff]
        %v711 = vld [vmem:[%s631 + $0x1b8] sm:$0xff]
        %v712 = vld [vmem:[%s631 + $0x1c0] sm:$0xff]
        %v713 = vld [vmem:[%s631 + $0x1c8] sm:$0xff]
        %v714 = vld [vmem:[%s631 + $0x1d0] sm:$0xff]
        %v715 = vld [vmem:[%s631 + $0x1d8] sm:$0xff]
        %v716 = vld [vmem:[%s631 + $0x1e0] sm:$0xff]
        %v717 = vld [vmem:[%s631 + $0x1e8] sm:$0xff]
        %v718 = vld [vmem:[%s631 + $0x1f0] sm:$0xff]
        %v719 = vld [vmem:[%s631 + $0x1f8] sm:$0xff]
        %v720 = vld [vmem:[%s631 + $0x200] sm:$0xff]
        %v721 = vld [vmem:[%s631 + $0x208] sm:$0xff]
        %v722 = vld [vmem:[%s631 + $0x210] sm:$0xff]
        %v723 = vld [vmem:[%s631 + $0x218] sm:$0xff]
        %v724 = vld [vmem:[%s631 + $0x220] sm:$0xff]
        %v725 = vld [vmem:[%s631 + $0x228] sm:$0xff]
        %v726 = vld [vmem:[%s631 + $0x230] sm:$0xff]
        %v727 = vld [vmem:[%s631 + $0x238] sm:$0xff]
        %v728 = vld [vmem:[%s631 + $0x240] sm:$0xff]
        %v729 = vld [vmem:[%s631 + $0x248] sm:$0xff]
        %v730 = vld [vmem:[%s631 + $0x250] sm:$0xff]
        %v731 = vld [vmem:[%s631 + $0x258] sm:$0xff]
        %v732 = vld [vmem:[%s631 + $0x260] sm:$0xff]
        %v733 = vld [vmem:[%s631 + $0x268] sm:$0xff]
        %v734 = vld [vmem:[%s631 + $0x270] sm:$0xff]
        %v735 = vld [vmem:[%s631 + $0x278] sm:$0xff]
        %v736 = vld [vmem:[%s631 + $0x280] sm:$0xff]
        %v737 = vld [vmem:[%s631 + $0x288] sm:$0xff]
        %v738 = vld [vmem:[%s631 + $0x290] sm:$0xff]
        %v739 = vld [vmem:[%s631 + $0x298] sm:$0xff]
        %v740 = vld [vmem:[%s631 + $0x2a0] sm:$0xff]
        %v741 = vld [vmem:[%s631 + $0x2a8] sm:$0xff]
        %v742 = vld [vmem:[%s631 + $0x2b0] sm:$0xff]
        %v743 = vld [vmem:[%s631 + $0x2b8] sm:$0xff]
        %v744 = vld [vmem:[%s631 + $0x2c0] sm:$0xff]
        %v745 = vld [vmem:[%s631 + $0x2c8] sm:$0xff]
        %v746 = vld [vmem:[%s631 + $0x2d0] sm:$0xff]
        %v747 = vld [vmem:[%s631 + $0x2d8] sm:$0xff]
        %v748 = vld [vmem:[%s631 + $0x2e0] sm:$0xff]
        %v749 = vld [vmem:[%s631 + $0x2e8] sm:$0xff]
        %v750 = vld [vmem:[%s631 + $0x2f0] sm:$0xff]
        %v751 = vld [vmem:[%s631 + $0x2f8] sm:$0xff]
        %v752 = vld [vmem:[%s631 + $0x300] sm:$0xff]
        %v753 = vld [vmem:[%s631 + $0x308] sm:$0xff]
        %v754 = vld [vmem:[%s631 + $0x310] sm:$0xff]
        %v755 = vld [vmem:[%s631 + $0x318] sm:$0xff]
        %v756 = vld [vmem:[%s631 + $0x320] sm:$0xff]
        %v757 = vld [vmem:[%s631 + $0x328] sm:$0xff]
        %v758 = vld [vmem:[%s631 + $0x330] sm:$0xff]
        %v759 = vld [vmem:[%s631 + $0x338] sm:$0xff]
        %v760 = vld [vmem:[%s631 + $0x340] sm:$0xff]
        %v761 = vld [vmem:[%s631 + $0x348] sm:$0xff]
        %v762 = vld [vmem:[%s631 + $0x350] sm:$0xff]
        %v763 = vld [vmem:[%s631 + $0x358] sm:$0xff]
        %v764 = vld [vmem:[%s631 + $0x360] sm:$0xff]
        %v765 = vld [vmem:[%s631 + $0x368] sm:$0xff]
        %v766 = vld [vmem:[%s631 + $0x370] sm:$0xff]
        %v767 = vld [vmem:[%s631 + $0x378] sm:$0xff]
        %v768 = vld [vmem:[%s631 + $0x380] sm:$0xff]
        %v769 = vld [vmem:[%s631 + $0x388] sm:$0xff]
        %v770 = vld [vmem:[%s631 + $0x390] sm:$0xff]
        %v771 = vld [vmem:[%s631 + $0x398] sm:$0xff]
        %v772 = vld [vmem:[%s631 + $0x3a0] sm:$0xff]
        %v773 = vld [vmem:[%s631 + $0x3a8] sm:$0xff]
        %v774 = vld [vmem:[%s631 + $0x3b0] sm:$0xff]
        %v775 = vld [vmem:[%s631 + $0x3b8] sm:$0xff]
        %v776 = vld [vmem:[%s631 + $0x3c0] sm:$0xff]
        %v777 = vld [vmem:[%s631 + $0x3c8] sm:$0xff]
        %v778 = vld [vmem:[%s631 + $0x3d0] sm:$0xff]
        %v779 = vld [vmem:[%s631 + $0x3d8] sm:$0xff]
        %v780 = vld [vmem:[%s631 + $0x3e0] sm:$0xff]
        %v781 = vld [vmem:[%s631 + $0x3e8] sm:$0xff]
        %v782 = vld [vmem:[%s631 + $0x3f0] sm:$0xff]
        %v783 = vld [vmem:[%s631 + $0x3f8] sm:$0xff]
        %v784 = vld [vmem:[%s631 + $0x400] sm:$0xff]
        %v785 = vld [vmem:[%s631 + $0x408] sm:$0xff]
        %v786 = vld [vmem:[%s631 + $0x410] sm:$0xff]
        %v787 = vld [vmem:[%s631 + $0x418] sm:$0xff]
        %v788 = vld [vmem:[%s631 + $0x420] sm:$0xff]
        %v789 = vld [vmem:[%s631 + $0x428] sm:$0xff]
        %v790 = vld [vmem:[%s631 + $0x430] sm:$0xff]
        %v791 = vld [vmem:[%s631 + $0x438] sm:$0xff]
        %v792 = vld [vmem:[%s631 + $0x440] sm:$0xff]
        %v793 = vld [vmem:[%s631 + $0x448] sm:$0xff]
        %v794 = vld [vmem:[%s631 + $0x450] sm:$0xff]
        %v795 = vld [vmem:[%s631 + $0x458] sm:$0xff]
        %v796 = vld [vmem:[%s631 + $0x460] sm:$0xff]
        %v797 = vld [vmem:[%s631 + $0x468] sm:$0xff]
        %v798 = vld [vmem:[%s631 + $0x470] sm:$0xff]
        %v799 = vld [vmem:[%s631 + $0x478] sm:$0xff]
        %v800 = vld [vmem:[%s631 + $0x480] sm:$0xff]
        %v801 = vld [vmem:[%s631 + $0x488] sm:$0xff]
        %v802 = vld [vmem:[%s631 + $0x490] sm:$0xff]
        %v803 = vld [vmem:[%s631 + $0x498] sm:$0xff]
        %v804 = vld [vmem:[%s631 + $0x4a0] sm:$0xff]
        %v805 = vld [vmem:[%s631 + $0x4a8] sm:$0xff]
        %v806 = vld [vmem:[%s631 + $0x4b0] sm:$0xff]
        %v807 = vld [vmem:[%s631 + $0x4b8] sm:$0xff]
        %v808 = vld [vmem:[%s631 + $0x4c0] sm:$0xff]
        %v809 = vld [vmem:[%s631 + $0x4c8] sm:$0xff]
        %v810 = vld [vmem:[%s631 + $0x4d0] sm:$0xff]
        %v811 = vld [vmem:[%s631 + $0x4d8] sm:$0xff]
        %v812 = vld [vmem:[%s631 + $0x4e0] sm:$0xff]
        %v813 = vld [vmem:[%s631 + $0x4e8] sm:$0xff]
        %v814 = vld [vmem:[%s631 + $0x4f0] sm:$0xff]
        %v815 = vld [vmem:[%s631 + $0x4f8] sm:$0xff]
        %v816 = vld [vmem:[%s631 + $0x500] sm:$0xff]
        %v817 = vld [vmem:[%s631 + $0x508] sm:$0xff]
        %v818 = vld [vmem:[%s631 + $0x510] sm:$0xff]
        %v819 = vld [vmem:[%s631 + $0x518] sm:$0xff]
        %v820 = vld [vmem:[%s631 + $0x520] sm:$0xff]
        %v821 = vld [vmem:[%s631 + $0x528] sm:$0xff]
        %v822 = vld [vmem:[%s631 + $0x530] sm:$0xff]
        %v823 = vld [vmem:[%s631 + $0x538] sm:$0xff]
        %v824 = vld [vmem:[%s631 + $0x540] sm:$0xff]
        %v825 = vld [vmem:[%s631 + $0x548] sm:$0xff]
        %v826 = vld [vmem:[%s631 + $0x550] sm:$0xff]
        %v827 = vld [vmem:[%s631 + $0x558] sm:$0xff]
        %v828 = vld [vmem:[%s631 + $0x560] sm:$0xff]
        %v829 = vld [vmem:[%s631 + $0x568] sm:$0xff]
        %v830 = vld [vmem:[%s631 + $0x570] sm:$0xff]
        %v831 = vld [vmem:[%s631 + $0x578] sm:$0xff]
        %v832 = vld [vmem:[%s631 + $0x580] sm:$0xff]
        %v833 = vld [vmem:[%s631 + $0x588] sm:$0xff]
        %v834 = vld [vmem:[%s631 + $0x590] sm:$0xff]
        %v835 = vld [vmem:[%s631 + $0x598] sm:$0xff]
        %v836 = vld [vmem:[%s631 + $0x5a0] sm:$0xff]
        %v837 = vld [vmem:[%s631 + $0x5a8] sm:$0xff]
        %v838 = vld [vmem:[%s631 + $0x5b0] sm:$0xff]
        %v839 = vld [vmem:[%s631 + $0x5b8] sm:$0xff]
        %v840 = vld [vmem:[%s631 + $0x5c0] sm:$0xff]
        %v841 = vld [vmem:[%s631 + $0x5c8] sm:$0xff]
        %v842 = vld [vmem:[%s631 + $0x5d0] sm:$0xff]
        %v843 = vld [vmem:[%s631 + $0x5d8] sm:$0xff]
        %v844 = vld [vmem:[%s631 + $0x5e0] sm:$0xff]
        %v845 = vld [vmem:[%s631 + $0x5e8] sm:$0xff]
        %v846 = vld [vmem:[%s631 + $0x5f0] sm:$0xff]
        %v847 = vld [vmem:[%s631 + $0x5f8] sm:$0xff]
        %v848 = vld [vmem:[%s631 + $0x600] sm:$0xff]
        %v849 = vld [vmem:[%s631 + $0x608] sm:$0xff]
        %v850 = vld [vmem:[%s631 + $0x610] sm:$0xff]
        %v851 = vld [vmem:[%s631 + $0x618] sm:$0xff]
        %v852 = vld [vmem:[%s631 + $0x620] sm:$0xff]
        %v853 = vld [vmem:[%s631 + $0x628] sm:$0xff]
        %v854 = vld [vmem:[%s631 + $0x630] sm:$0xff]
        %v855 = vld [vmem:[%s631 + $0x638] sm:$0xff]
        %v856 = vld [vmem:[%s631 + $0x640] sm:$0xff]
        %v857 = vld [vmem:[%s631 + $0x648] sm:$0xff]
        %v858 = vld [vmem:[%s631 + $0x650] sm:$0xff]
        %v859 = vld [vmem:[%s631 + $0x658] sm:$0xff]
        %v860 = vld [vmem:[%s631 + $0x660] sm:$0xff]
        %v861 = vld [vmem:[%s631 + $0x668] sm:$0xff]
        %v862 = vld [vmem:[%s631 + $0x670] sm:$0xff]
        %v863 = vld [vmem:[%s631 + $0x678] sm:$0xff]
        %v864 = vld [vmem:[%s631 + $0x680] sm:$0xff]
        %v865 = vld [vmem:[%s631 + $0x688] sm:$0xff]
        %v866 = vld [vmem:[%s631 + $0x690] sm:$0xff]
        %v867 = vld [vmem:[%s631 + $0x698] sm:$0xff]
        %v868 = vld [vmem:[%s631 + $0x6a0] sm:$0xff]
        %v869 = vld [vmem:[%s631 + $0x6a8] sm:$0xff]
        %v870 = vld [vmem:[%s631 + $0x6b0] sm:$0xff]
        %v871 = vld [vmem:[%s631 + $0x6b8] sm:$0xff]
        %v872 = vld [vmem:[%s631 + $0x6c0] sm:$0x11]
        %v873 = vld [vmem:[%s631 + $0x6c8] sm:$0x11]
        %v874 = vld [vmem:[%s631 + $0x6d0] sm:$0x11]
        %v875 = vld [vmem:[%s631 + $0x6d8] sm:$0x11]
        %v876 = vld [vmem:[%s631 + $0x6e0] sm:$0x11]
        %v877 = vld [vmem:[%s631 + $0x6e8] sm:$0x11]
        %v878 = vld [vmem:[%s631 + $0x6f0] sm:$0x11]
        %v879 = vld [vmem:[%s631 + $0x6f8] sm:$0x11]
        %v880 = vld [vmem:[%s631 + $0x700] sm:$0x11]
        %v881 = vld [vmem:[%s631 + $0x708] sm:$0x11]
        %v882 = vld [vmem:[%s631 + $0x710] sm:$0x11]
        %v883 = vld [vmem:[%s631 + $0x718] sm:$0x11]
        %v884 = vld [vmem:[%s631 + $0x720] sm:$0x11]
        %v885 = vld [vmem:[%s631 + $0x728] sm:$0x11]
        %v886 = vld [vmem:[%s631 + $0x730] sm:$0x11]
        %v887 = vld [vmem:[%s631 + $0x738] sm:$0x11]
        %v888 = vld [vmem:[%s631 + $0x740] sm:$0x11]
        %v889 = vld [vmem:[%s631 + $0x748] sm:$0x11]
        %v890 = vld [vmem:[%s2] sm:$0xff]
        %v891 = vld [vmem:[%s2 + $0x8] sm:$0xff]
        %893 = vset.pattern.permute.xlu0 0
        %894 = vperm.xlu0 %893, %v890
        %v895 = vpop.permute.xlu0 %894
        %898 = vset.pattern.permute.xlu0 0
        %899 = vperm.xlu0 %898, %v891
        %v900 = vpop.permute.xlu0 %899
        %v904 = vunpack.c.l.b16 %v654
        %v905 = vunpack.c.l.b16 %v655
        %v906 = vpack.c.b16 %v905, %v904
        %v1141 = vunpack.c.l.b16 %v656
        %v1142 = vunpack.c.h.b16 %v656
        %v1143 = vunpack.c.l.b16 %v657
        %v1144 = vunpack.c.h.b16 %v657
        %v1145 = vunpack.c.l.b16 %v658
        %v1146 = vunpack.c.h.b16 %v658
        %v1147 = vunpack.c.l.b16 %v659
        %v1148 = vunpack.c.h.b16 %v659
        %v1149 = vunpack.c.l.b16 %v660
        %v1150 = vunpack.c.h.b16 %v660
        %v1151 = vunpack.c.l.b16 %v661
        %v1152 = vunpack.c.h.b16 %v661
        %v1153 = vunpack.c.l.b16 %v662
        %v1154 = vunpack.c.h.b16 %v662
        %v1155 = vunpack.c.l.b16 %v663
        %v1156 = vunpack.c.h.b16 %v663
        %v1157 = vunpack.c.l.b16 %v664
        %v1158 = vunpack.c.h.b16 %v664
        %v1159 = vunpack.c.l.b16 %v665
        %v1160 = vunpack.c.h.b16 %v665
        %v1161 = vunpack.c.l.b16 %v666
        %v1162 = vunpack.c.h.b16 %v666
        %v1163 = vunpack.c.l.b16 %v667
        %v1164 = vunpack.c.h.b16 %v667
        %v1165 = vunpack.c.l.b16 %v668
        %v1166 = vunpack.c.h.b16 %v668
        %v1167 = vunpack.c.l.b16 %v669
        %v1168 = vunpack.c.h.b16 %v669
        %v1169 = vunpack.c.l.b16 %v670
        %v1170 = vunpack.c.h.b16 %v670
        %v1171 = vunpack.c.l.b16 %v671
        %v1172 = vunpack.c.h.b16 %v671
        %v1173 = vunpack.c.l.b16 %v672
        %v1174 = vunpack.c.h.b16 %v672
        %v1175 = vunpack.c.l.b16 %v673
        %v1176 = vunpack.c.h.b16 %v673
        %v1177 = vunpack.c.l.b16 %v674
        %v1178 = vunpack.c.h.b16 %v674
        %v1179 = vunpack.c.l.b16 %v675
        %v1180 = vunpack.c.h.b16 %v675
        %v1181 = vunpack.c.l.b16 %v676
        %v1182 = vunpack.c.h.b16 %v676
        %v1183 = vunpack.c.l.b16 %v677
        %v1184 = vunpack.c.h.b16 %v677
        %v1185 = vunpack.c.l.b16 %v678
        %v1186 = vunpack.c.h.b16 %v678
        %v1187 = vunpack.c.l.b16 %v679
        %v1188 = vunpack.c.h.b16 %v679
        %v1189 = vunpack.c.l.b16 %v680
        %v1190 = vunpack.c.h.b16 %v680
        %v1191 = vunpack.c.l.b16 %v681
        %v1192 = vunpack.c.h.b16 %v681
        %v1193 = vunpack.c.l.b16 %v682
        %v1194 = vunpack.c.h.b16 %v682
        %v1195 = vunpack.c.l.b16 %v683
        %v1196 = vunpack.c.h.b16 %v683
        %v1197 = vunpack.c.l.b16 %v684
        %v1198 = vunpack.c.h.b16 %v684
        %v1199 = vunpack.c.l.b16 %v685
        %v1200 = vunpack.c.h.b16 %v685
        %v1201 = vunpack.c.l.b16 %v686
        %v1202 = vunpack.c.h.b16 %v686
        %v1203 = vunpack.c.l.b16 %v687
        %v1204 = vunpack.c.h.b16 %v687
        %v1205 = vunpack.c.l.b16 %v688
        %v1206 = vunpack.c.h.b16 %v688
        %v1207 = vunpack.c.l.b16 %v689
        %v1208 = vunpack.c.h.b16 %v689
        %v1209 = vunpack.c.l.b16 %v690
        %v1210 = vunpack.c.h.b16 %v690
        %v1211 = vunpack.c.l.b16 %v691
        %v1212 = vunpack.c.h.b16 %v691
        %v1213 = vunpack.c.l.b16 %v692
        %v1214 = vunpack.c.h.b16 %v692
        %v1215 = vunpack.c.l.b16 %v693
        %v1216 = vunpack.c.h.b16 %v693
        %v1217 = vunpack.c.l.b16 %v694
        %v1218 = vunpack.c.h.b16 %v694
        %v1219 = vunpack.c.l.b16 %v695
        %v1220 = vunpack.c.h.b16 %v695
        %v1221 = vunpack.c.l.b16 %v696
        %v1222 = vunpack.c.h.b16 %v696
        %v1223 = vunpack.c.l.b16 %v697
        %v1224 = vunpack.c.h.b16 %v697
        %v1225 = vunpack.c.l.b16 %v698
        %v1226 = vunpack.c.h.b16 %v698
        %v1227 = vunpack.c.l.b16 %v699
        %v1228 = vunpack.c.h.b16 %v699
        %v1229 = vunpack.c.l.b16 %v700
        %v1230 = vunpack.c.h.b16 %v700
        %v1231 = vunpack.c.l.b16 %v701
        %v1232 = vunpack.c.h.b16 %v701
        %v1233 = vunpack.c.l.b16 %v702
        %v1234 = vunpack.c.h.b16 %v702
        %v1235 = vunpack.c.l.b16 %v703
        %v1236 = vunpack.c.h.b16 %v703
        %v1237 = vunpack.c.l.b16 %v704
        %v1238 = vunpack.c.h.b16 %v704
        %v1239 = vunpack.c.l.b16 %v705
        %v1240 = vunpack.c.h.b16 %v705
        %v1241 = vunpack.c.l.b16 %v706
        %v1242 = vunpack.c.h.b16 %v706
        %v1243 = vunpack.c.l.b16 %v707
        %v1244 = vunpack.c.h.b16 %v707
        %v1245 = vunpack.c.l.b16 %v708
        %v1246 = vunpack.c.h.b16 %v708
        %v1247 = vunpack.c.l.b16 %v709
        %v1248 = vunpack.c.h.b16 %v709
        %v1249 = vunpack.c.l.b16 %v710
        %v1250 = vunpack.c.h.b16 %v710
        %v1251 = vunpack.c.l.b16 %v711
        %v1252 = vunpack.c.h.b16 %v711
        %v1253 = vunpack.c.l.b16 %v712
        %v1254 = vunpack.c.h.b16 %v712
        %v1255 = vunpack.c.l.b16 %v713
        %v1256 = vunpack.c.h.b16 %v713
        %v1257 = vunpack.c.l.b16 %v714
        %v1258 = vunpack.c.h.b16 %v714
        %v1259 = vunpack.c.l.b16 %v715
        %v1260 = vunpack.c.h.b16 %v715
        %v1261 = vunpack.c.l.b16 %v716
        %v1262 = vunpack.c.h.b16 %v716
        %v1263 = vunpack.c.l.b16 %v717
        %v1264 = vunpack.c.h.b16 %v717
        %v1265 = vunpack.c.l.b16 %v718
        %v1266 = vunpack.c.h.b16 %v718
        %v1267 = vunpack.c.l.b16 %v719
        %v1268 = vunpack.c.h.b16 %v719
        %v1269 = vunpack.c.l.b16 %v720
        %v1270 = vunpack.c.h.b16 %v720
        %v1271 = vunpack.c.l.b16 %v721
        %v1272 = vunpack.c.h.b16 %v721
        %v1273 = vunpack.c.l.b16 %v722
        %v1274 = vunpack.c.h.b16 %v722
        %v1275 = vunpack.c.l.b16 %v723
        %v1276 = vunpack.c.h.b16 %v723
        %v1277 = vunpack.c.l.b16 %v724
        %v1278 = vunpack.c.h.b16 %v724
        %v1279 = vunpack.c.l.b16 %v725
        %v1280 = vunpack.c.h.b16 %v725
        %v1281 = vunpack.c.l.b16 %v726
        %v1282 = vunpack.c.h.b16 %v726
        %v1283 = vunpack.c.l.b16 %v727
        %v1284 = vunpack.c.h.b16 %v727
        %v1285 = vunpack.c.l.b16 %v728
        %v1286 = vunpack.c.h.b16 %v728
        %v1287 = vunpack.c.l.b16 %v729
        %v1288 = vunpack.c.h.b16 %v729
        %v1289 = vunpack.c.l.b16 %v730
        %v1290 = vunpack.c.h.b16 %v730
        %v1291 = vunpack.c.l.b16 %v731
        %v1292 = vunpack.c.h.b16 %v731
        %v1293 = vunpack.c.l.b16 %v732
        %v1294 = vunpack.c.h.b16 %v732
        %v1295 = vunpack.c.l.b16 %v733
        %v1296 = vunpack.c.h.b16 %v733
        %v1297 = vunpack.c.l.b16 %v734
        %v1298 = vunpack.c.h.b16 %v734
        %v1299 = vunpack.c.l.b16 %v735
        %v1300 = vunpack.c.h.b16 %v735
        %v1301 = vunpack.c.l.b16 %v736
        %v1302 = vunpack.c.h.b16 %v736
        %v1303 = vunpack.c.l.b16 %v737
        %v1304 = vunpack.c.h.b16 %v737
        %v1305 = vunpack.c.l.b16 %v738
        %v1306 = vunpack.c.h.b16 %v738
        %v1307 = vunpack.c.l.b16 %v739
        %v1308 = vunpack.c.h.b16 %v739
        %v1309 = vunpack.c.l.b16 %v740
        %v1310 = vunpack.c.h.b16 %v740
        %v1311 = vunpack.c.l.b16 %v741
        %v1312 = vunpack.c.h.b16 %v741
        %v1313 = vunpack.c.l.b16 %v742
        %v1314 = vunpack.c.h.b16 %v742
        %v1315 = vunpack.c.l.b16 %v743
        %v1316 = vunpack.c.h.b16 %v743
        %v1317 = vunpack.c.l.b16 %v744
        %v1318 = vunpack.c.h.b16 %v744
        %v1319 = vunpack.c.l.b16 %v745
        %v1320 = vunpack.c.h.b16 %v745
        %v1321 = vunpack.c.l.b16 %v746
        %v1322 = vunpack.c.h.b16 %v746
        %v1323 = vunpack.c.l.b16 %v747
        %v1324 = vunpack.c.h.b16 %v747
        %v1325 = vunpack.c.l.b16 %v748
        %v1326 = vunpack.c.h.b16 %v748
        %v1327 = vunpack.c.l.b16 %v749
        %v1328 = vunpack.c.h.b16 %v749
        %v1329 = vunpack.c.l.b16 %v750
        %v1330 = vunpack.c.h.b16 %v750
        %v1331 = vunpack.c.l.b16 %v751
        %v1332 = vunpack.c.h.b16 %v751
        %v1333 = vunpack.c.l.b16 %v752
        %v1334 = vunpack.c.h.b16 %v752
        %v1335 = vunpack.c.l.b16 %v753
        %v1336 = vunpack.c.h.b16 %v753
        %v1337 = vunpack.c.l.b16 %v754
        %v1338 = vunpack.c.h.b16 %v754
        %v1339 = vunpack.c.l.b16 %v755
        %v1340 = vunpack.c.h.b16 %v755
        %v1341 = vunpack.c.l.b16 %v756
        %v1342 = vunpack.c.h.b16 %v756
        %v1343 = vunpack.c.l.b16 %v757
        %v1344 = vunpack.c.h.b16 %v757
        %v1345 = vunpack.c.l.b16 %v758
        %v1346 = vunpack.c.h.b16 %v758
        %v1347 = vunpack.c.l.b16 %v759
        %v1348 = vunpack.c.h.b16 %v759
        %v1349 = vunpack.c.l.b16 %v760
        %v1350 = vunpack.c.h.b16 %v760
        %v1351 = vunpack.c.l.b16 %v761
        %v1352 = vunpack.c.h.b16 %v761
        %v1353 = vunpack.c.l.b16 %v762
        %v1354 = vunpack.c.h.b16 %v762
        %v1355 = vunpack.c.l.b16 %v763
        %v1356 = vunpack.c.h.b16 %v763
        %v1357 = vunpack.c.l.b16 %v764
        %v1358 = vunpack.c.h.b16 %v764
        %v1359 = vunpack.c.l.b16 %v765
        %v1360 = vunpack.c.h.b16 %v765
        %v1361 = vunpack.c.l.b16 %v766
        %v1362 = vunpack.c.h.b16 %v766
        %v1363 = vunpack.c.l.b16 %v767
        %v1364 = vunpack.c.h.b16 %v767
        %v1365 = vunpack.c.l.b16 %v768
        %v1366 = vunpack.c.h.b16 %v768
        %v1367 = vunpack.c.l.b16 %v769
        %v1368 = vunpack.c.h.b16 %v769
        %v1369 = vunpack.c.l.b16 %v770
        %v1370 = vunpack.c.h.b16 %v770
        %v1371 = vunpack.c.l.b16 %v771
        %v1372 = vunpack.c.h.b16 %v771
        %v1373 = vunpack.c.l.b16 %v772
        %v1374 = vunpack.c.h.b16 %v772
        %v1375 = vunpack.c.l.b16 %v773
        %v1376 = vunpack.c.h.b16 %v773
        %v1377 = vunpack.c.l.b16 %v774
        %v1378 = vunpack.c.h.b16 %v774
        %v1379 = vunpack.c.l.b16 %v775
        %v1380 = vunpack.c.h.b16 %v775
        %v1381 = vunpack.c.l.b16 %v776
        %v1382 = vunpack.c.h.b16 %v776
        %v1383 = vunpack.c.l.b16 %v777
        %v1384 = vunpack.c.h.b16 %v777
        %v1385 = vunpack.c.l.b16 %v778
        %v1386 = vunpack.c.h.b16 %v778
        %v1387 = vunpack.c.l.b16 %v779
        %v1388 = vunpack.c.h.b16 %v779
        %v1389 = vunpack.c.l.b16 %v780
        %v1390 = vunpack.c.h.b16 %v780
        %v1391 = vunpack.c.l.b16 %v781
        %v1392 = vunpack.c.h.b16 %v781
        %v1393 = vunpack.c.l.b16 %v782
        %v1394 = vunpack.c.h.b16 %v782
        %v1395 = vunpack.c.l.b16 %v783
        %v1396 = vunpack.c.h.b16 %v783
        %v1397 = vunpack.c.l.b16 %v784
        %v1398 = vunpack.c.h.b16 %v784
        %v1399 = vunpack.c.l.b16 %v785
        %v1400 = vunpack.c.h.b16 %v785
        %v1401 = vunpack.c.l.b16 %v786
        %v1402 = vunpack.c.h.b16 %v786
        %v1403 = vunpack.c.l.b16 %v787
        %v1404 = vunpack.c.h.b16 %v787
        %v1405 = vunpack.c.l.b16 %v788
        %v1406 = vunpack.c.h.b16 %v788
        %v1407 = vunpack.c.l.b16 %v789
        %v1408 = vunpack.c.h.b16 %v789
        %v1409 = vunpack.c.l.b16 %v790
        %v1410 = vunpack.c.h.b16 %v790
        %v1411 = vunpack.c.l.b16 %v791
        %v1412 = vunpack.c.h.b16 %v791
        %v1413 = vunpack.c.l.b16 %v792
        %v1414 = vunpack.c.h.b16 %v792
        %v1415 = vunpack.c.l.b16 %v793
        %v1416 = vunpack.c.h.b16 %v793
        %v1417 = vunpack.c.l.b16 %v794
        %v1418 = vunpack.c.h.b16 %v794
        %v1419 = vunpack.c.l.b16 %v795
        %v1420 = vunpack.c.h.b16 %v795
        %v1421 = vunpack.c.l.b16 %v796
        %v1422 = vunpack.c.h.b16 %v796
        %v1423 = vunpack.c.l.b16 %v797
        %v1424 = vunpack.c.h.b16 %v797
        %v1425 = vunpack.c.l.b16 %v798
        %v1426 = vunpack.c.h.b16 %v798
        %v1427 = vunpack.c.l.b16 %v799
        %v1428 = vunpack.c.h.b16 %v799
        %v1429 = vunpack.c.l.b16 %v800
        %v1430 = vunpack.c.h.b16 %v800
        %v1431 = vunpack.c.l.b16 %v801
        %v1432 = vunpack.c.h.b16 %v801
        %v1433 = vunpack.c.l.b16 %v802
        %v1434 = vunpack.c.h.b16 %v802
        %v1435 = vunpack.c.l.b16 %v803
        %v1436 = vunpack.c.h.b16 %v803
        %v1437 = vunpack.c.l.b16 %v804
        %v1438 = vunpack.c.h.b16 %v804
        %v1439 = vunpack.c.l.b16 %v805
        %v1440 = vunpack.c.h.b16 %v805
        %v1441 = vunpack.c.l.b16 %v806
        %v1442 = vunpack.c.h.b16 %v806
        %v1443 = vunpack.c.l.b16 %v807
        %v1444 = vunpack.c.h.b16 %v807
        %v1445 = vunpack.c.l.b16 %v808
        %v1446 = vunpack.c.h.b16 %v808
        %v1447 = vunpack.c.l.b16 %v809
        %v1448 = vunpack.c.h.b16 %v809
        %v1449 = vunpack.c.l.b16 %v810
        %v1450 = vunpack.c.h.b16 %v810
        %v1451 = vunpack.c.l.b16 %v811
        %v1452 = vunpack.c.h.b16 %v811
        %v1453 = vunpack.c.l.b16 %v812
        %v1454 = vunpack.c.h.b16 %v812
        %v1455 = vunpack.c.l.b16 %v813
        %v1456 = vunpack.c.h.b16 %v813
        %v1457 = vunpack.c.l.b16 %v814
        %v1458 = vunpack.c.h.b16 %v814
        %v1459 = vunpack.c.l.b16 %v815
        %v1460 = vunpack.c.h.b16 %v815
        %v1461 = vunpack.c.l.b16 %v816
        %v1462 = vunpack.c.h.b16 %v816
        %v1463 = vunpack.c.l.b16 %v817
        %v1464 = vunpack.c.h.b16 %v817
        %v1465 = vunpack.c.l.b16 %v818
        %v1466 = vunpack.c.h.b16 %v818
        %v1467 = vunpack.c.l.b16 %v819
        %v1468 = vunpack.c.h.b16 %v819
        %v1469 = vunpack.c.l.b16 %v820
        %v1470 = vunpack.c.h.b16 %v820
        %v1471 = vunpack.c.l.b16 %v821
        %v1472 = vunpack.c.h.b16 %v821
        %v1473 = vunpack.c.l.b16 %v822
        %v1474 = vunpack.c.h.b16 %v822
        %v1475 = vunpack.c.l.b16 %v823
        %v1476 = vunpack.c.h.b16 %v823
        %v1477 = vunpack.c.l.b16 %v824
        %v1478 = vunpack.c.h.b16 %v824
        %v1479 = vunpack.c.l.b16 %v825
        %v1480 = vunpack.c.h.b16 %v825
        %v1481 = vunpack.c.l.b16 %v826
        %v1482 = vunpack.c.h.b16 %v826
        %v1483 = vunpack.c.l.b16 %v827
        %v1484 = vunpack.c.h.b16 %v827
        %v1485 = vunpack.c.l.b16 %v828
        %v1486 = vunpack.c.h.b16 %v828
        %v1487 = vunpack.c.l.b16 %v829
        %v1488 = vunpack.c.h.b16 %v829
        %v1489 = vunpack.c.l.b16 %v830
        %v1490 = vunpack.c.h.b16 %v830
        %v1491 = vunpack.c.l.b16 %v831
        %v1492 = vunpack.c.h.b16 %v831
        %v1493 = vunpack.c.l.b16 %v832
        %v1494 = vunpack.c.h.b16 %v832
        %v1495 = vunpack.c.l.b16 %v833
        %v1496 = vunpack.c.h.b16 %v833
        %v1497 = vunpack.c.l.b16 %v834
        %v1498 = vunpack.c.h.b16 %v834
        %v1499 = vunpack.c.l.b16 %v835
        %v1500 = vunpack.c.h.b16 %v835
        %v1501 = vunpack.c.l.b16 %v836
        %v1502 = vunpack.c.h.b16 %v836
        %v1503 = vunpack.c.l.b16 %v837
        %v1504 = vunpack.c.h.b16 %v837
        %v1505 = vunpack.c.l.b16 %v838
        %v1506 = vunpack.c.h.b16 %v838
        %v1507 = vunpack.c.l.b16 %v839
        %v1508 = vunpack.c.h.b16 %v839
        %v1509 = vunpack.c.l.b16 %v840
        %v1510 = vunpack.c.h.b16 %v840
        %v1511 = vunpack.c.l.b16 %v841
        %v1512 = vunpack.c.h.b16 %v841
        %v1513 = vunpack.c.l.b16 %v842
        %v1514 = vunpack.c.h.b16 %v842
        %v1515 = vunpack.c.l.b16 %v843
        %v1516 = vunpack.c.h.b16 %v843
        %v1517 = vunpack.c.l.b16 %v844
        %v1518 = vunpack.c.h.b16 %v844
        %v1519 = vunpack.c.l.b16 %v845
        %v1520 = vunpack.c.h.b16 %v845
        %v1521 = vunpack.c.l.b16 %v846
        %v1522 = vunpack.c.h.b16 %v846
        %v1523 = vunpack.c.l.b16 %v847
        %v1524 = vunpack.c.h.b16 %v847
        %v1525 = vunpack.c.l.b16 %v848
        %v1526 = vunpack.c.h.b16 %v848
        %v1527 = vunpack.c.l.b16 %v849
        %v1528 = vunpack.c.h.b16 %v849
        %v1529 = vunpack.c.l.b16 %v850
        %v1530 = vunpack.c.h.b16 %v850
        %v1531 = vunpack.c.l.b16 %v851
        %v1532 = vunpack.c.h.b16 %v851
        %v1533 = vunpack.c.l.b16 %v852
        %v1534 = vunpack.c.h.b16 %v852
        %v1535 = vunpack.c.l.b16 %v853
        %v1536 = vunpack.c.h.b16 %v853
        %v1537 = vunpack.c.l.b16 %v854
        %v1538 = vunpack.c.h.b16 %v854
        %v1539 = vunpack.c.l.b16 %v855
        %v1540 = vunpack.c.h.b16 %v855
        %v1541 = vunpack.c.l.b16 %v856
        %v1542 = vunpack.c.h.b16 %v856
        %v1543 = vunpack.c.l.b16 %v857
        %v1544 = vunpack.c.h.b16 %v857
        %v1545 = vunpack.c.l.b16 %v858
        %v1546 = vunpack.c.h.b16 %v858
        %v1547 = vunpack.c.l.b16 %v859
        %v1548 = vunpack.c.h.b16 %v859
        %v1549 = vunpack.c.l.b16 %v860
        %v1550 = vunpack.c.h.b16 %v860
        %v1551 = vunpack.c.l.b16 %v861
        %v1552 = vunpack.c.h.b16 %v861
        %v1553 = vunpack.c.l.b16 %v862
        %v1554 = vunpack.c.h.b16 %v862
        %v1555 = vunpack.c.l.b16 %v863
        %v1556 = vunpack.c.h.b16 %v863
        %v1557 = vunpack.c.l.b16 %v864
        %v1558 = vunpack.c.h.b16 %v864
        %v1559 = vunpack.c.l.b16 %v865
        %v1560 = vunpack.c.h.b16 %v865
        %v1561 = vunpack.c.l.b16 %v866
        %v1562 = vunpack.c.h.b16 %v866
        %v1563 = vunpack.c.l.b16 %v867
        %v1564 = vunpack.c.h.b16 %v867
        %v1565 = vunpack.c.l.b16 %v868
        %v1566 = vunpack.c.h.b16 %v868
        %v1567 = vunpack.c.l.b16 %v869
        %v1568 = vunpack.c.h.b16 %v869
        %v1569 = vunpack.c.l.b16 %v870
        %v1570 = vunpack.c.h.b16 %v870
        %v1571 = vunpack.c.l.b16 %v871
        %v1572 = vunpack.c.h.b16 %v871
        %v1573 = vunpack.c.l.b16 %v872
        %v1574 = vunpack.c.h.b16 %v872
        %v1575 = vunpack.c.l.b16 %v873
        %v1576 = vunpack.c.h.b16 %v873
        %v1577 = vunpack.c.l.b16 %v874
        %v1578 = vunpack.c.h.b16 %v874
        %v1579 = vunpack.c.l.b16 %v875
        %v1580 = vunpack.c.h.b16 %v875
        %v1581 = vunpack.c.l.b16 %v876
        %v1582 = vunpack.c.h.b16 %v876
        %v1583 = vunpack.c.l.b16 %v877
        %v1584 = vunpack.c.h.b16 %v877
        %v1585 = vunpack.c.l.b16 %v878
        %v1586 = vunpack.c.h.b16 %v878
        %v1587 = vunpack.c.l.b16 %v879
        %v1588 = vunpack.c.h.b16 %v879
        %v1589 = vunpack.c.l.b16 %v880
        %v1590 = vunpack.c.h.b16 %v880
        %v1591 = vunpack.c.l.b16 %v881
        %v1592 = vunpack.c.h.b16 %v881
        %v1593 = vunpack.c.l.b16 %v882
        %v1594 = vunpack.c.h.b16 %v882
        %v1595 = vunpack.c.l.b16 %v883
        %v1596 = vunpack.c.h.b16 %v883
        %v1597 = vunpack.c.l.b16 %v884
        %v1598 = vunpack.c.h.b16 %v884
        %v1599 = vunpack.c.l.b16 %v885
        %v1600 = vunpack.c.h.b16 %v885
        %v1601 = vunpack.c.l.b16 %v886
        %v1602 = vunpack.c.h.b16 %v886
        %v1603 = vunpack.c.l.b16 %v887
        %v1604 = vunpack.c.h.b16 %v887
        %v1605 = vunpack.c.l.b16 %v888
        %v1606 = vunpack.c.h.b16 %v888
        %v1607 = vunpack.c.l.b16 %v889
        %v1608 = vunpack.c.h.b16 %v889
        %v1609 = vpack.c.b16 %v1177, %v1141
        %v1610 = vpack.c.b16 %v1178, %v1142
        %v1611 = vpack.c.b16 %v1179, %v1143
        %v1612 = vpack.c.b16 %v1180, %v1144
        %v1613 = vpack.c.b16 %v1181, %v1145
        %v1614 = vpack.c.b16 %v1182, %v1146
        %v1615 = vpack.c.b16 %v1183, %v1147
        %v1616 = vpack.c.b16 %v1184, %v1148
        %v1617 = vpack.c.b16 %v1185, %v1149
        %v1618 = vpack.c.b16 %v1186, %v1150
        %v1619 = vpack.c.b16 %v1187, %v1151
        %v1620 = vpack.c.b16 %v1188, %v1152
        %v1621 = vpack.c.b16 %v1189, %v1153
        %v1622 = vpack.c.b16 %v1190, %v1154
        %v1623 = vpack.c.b16 %v1191, %v1155
        %v1624 = vpack.c.b16 %v1192, %v1156
        %v1625 = vpack.c.b16 %v1193, %v1157
        %v1626 = vpack.c.b16 %v1194, %v1158
        %v1627 = vpack.c.b16 %v1195, %v1159
        %v1628 = vpack.c.b16 %v1196, %v1160
        %v1629 = vpack.c.b16 %v1197, %v1161
        %v1630 = vpack.c.b16 %v1198, %v1162
        %v1631 = vpack.c.b16 %v1199, %v1163
        %v1632 = vpack.c.b16 %v1200, %v1164
        %v1633 = vpack.c.b16 %v1201, %v1165
        %v1634 = vpack.c.b16 %v1202, %v1166
        %v1635 = vpack.c.b16 %v1203, %v1167
        %v1636 = vpack.c.b16 %v1204, %v1168
        %v1637 = vpack.c.b16 %v1205, %v1169
        %v1638 = vpack.c.b16 %v1206, %v1170
        %v1639 = vpack.c.b16 %v1207, %v1171
        %v1640 = vpack.c.b16 %v1208, %v1172
        %v1641 = vpack.c.b16 %v1209, %v1173
        %v1642 = vpack.c.b16 %v1210, %v1174
        %v1643 = vpack.c.b16 %v1211, %v1175
        %v1644 = vpack.c.b16 %v1212, %v1176
        %v1645 = vpack.c.b16 %v1249, %v1213
        %v1646 = vpack.c.b16 %v1250, %v1214
        %v1647 = vpack.c.b16 %v1251, %v1215
        %v1648 = vpack.c.b16 %v1252, %v1216
        %v1649 = vpack.c.b16 %v1253, %v1217
        %v1650 = vpack.c.b16 %v1254, %v1218
        %v1651 = vpack.c.b16 %v1255, %v1219
        %v1652 = vpack.c.b16 %v1256, %v1220
        %v1653 = vpack.c.b16 %v1257, %v1221
        %v1654 = vpack.c.b16 %v1258, %v1222
        %v1655 = vpack.c.b16 %v1259, %v1223
        %v1656 = vpack.c.b16 %v1260, %v1224
        %v1657 = vpack.c.b16 %v1261, %v1225
        %v1658 = vpack.c.b16 %v1262, %v1226
        %v1659 = vpack.c.b16 %v1263, %v1227
        %v1660 = vpack.c.b16 %v1264, %v1228
        %v1661 = vpack.c.b16 %v1265, %v1229
        %v1662 = vpack.c.b16 %v1266, %v1230
        %v1663 = vpack.c.b16 %v1267, %v1231
        %v1664 = vpack.c.b16 %v1268, %v1232
        %v1665 = vpack.c.b16 %v1269, %v1233
        %v1666 = vpack.c.b16 %v1270, %v1234
        %v1667 = vpack.c.b16 %v1271, %v1235
        %v1668 = vpack.c.b16 %v1272, %v1236
        %v1669 = vpack.c.b16 %v1273, %v1237
        %v1670 = vpack.c.b16 %v1274, %v1238
        %v1671 = vpack.c.b16 %v1275, %v1239
        %v1672 = vpack.c.b16 %v1276, %v1240
        %v1673 = vpack.c.b16 %v1277, %v1241
        %v1674 = vpack.c.b16 %v1278, %v1242
        %v1675 = vpack.c.b16 %v1279, %v1243
        %v1676 = vpack.c.b16 %v1280, %v1244
        %v1677 = vpack.c.b16 %v1281, %v1245
        %v1678 = vpack.c.b16 %v1282, %v1246
        %v1679 = vpack.c.b16 %v1283, %v1247
        %v1680 = vpack.c.b16 %v1284, %v1248
        %v1681 = vpack.c.b16 %v1321, %v1285
        %v1682 = vpack.c.b16 %v1322, %v1286
        %v1683 = vpack.c.b16 %v1323, %v1287
        %v1684 = vpack.c.b16 %v1324, %v1288
        %v1685 = vpack.c.b16 %v1325, %v1289
        %v1686 = vpack.c.b16 %v1326, %v1290
        %v1687 = vpack.c.b16 %v1327, %v1291
        %v1688 = vpack.c.b16 %v1328, %v1292
        %v1689 = vpack.c.b16 %v1329, %v1293
        %v1690 = vpack.c.b16 %v1330, %v1294
        %v1691 = vpack.c.b16 %v1331, %v1295
        %v1692 = vpack.c.b16 %v1332, %v1296
        %v1693 = vpack.c.b16 %v1333, %v1297
        %v1694 = vpack.c.b16 %v1334, %v1298
        %v1695 = vpack.c.b16 %v1335, %v1299
        %v1696 = vpack.c.b16 %v1336, %v1300
        %v1697 = vpack.c.b16 %v1337, %v1301
        %v1698 = vpack.c.b16 %v1338, %v1302
        %v1699 = vpack.c.b16 %v1339, %v1303
        %v1700 = vpack.c.b16 %v1340, %v1304
        %v1701 = vpack.c.b16 %v1341, %v1305
        %v1702 = vpack.c.b16 %v1342, %v1306
        %v1703 = vpack.c.b16 %v1343, %v1307
        %v1704 = vpack.c.b16 %v1344, %v1308
        %v1705 = vpack.c.b16 %v1345, %v1309
        %v1706 = vpack.c.b16 %v1346, %v1310
        %v1707 = vpack.c.b16 %v1347, %v1311
        %v1708 = vpack.c.b16 %v1348, %v1312
        %v1709 = vpack.c.b16 %v1349, %v1313
        %v1710 = vpack.c.b16 %v1350, %v1314
        %v1711 = vpack.c.b16 %v1351, %v1315
        %v1712 = vpack.c.b16 %v1352, %v1316
        %v1713 = vpack.c.b16 %v1353, %v1317
        %v1714 = vpack.c.b16 %v1354, %v1318
        %v1715 = vpack.c.b16 %v1355, %v1319
        %v1716 = vpack.c.b16 %v1356, %v1320
        %v1717 = vpack.c.b16 %v1393, %v1357
        %v1718 = vpack.c.b16 %v1394, %v1358
        %v1719 = vpack.c.b16 %v1395, %v1359
        %v1720 = vpack.c.b16 %v1396, %v1360
        %v1721 = vpack.c.b16 %v1397, %v1361
        %v1722 = vpack.c.b16 %v1398, %v1362
        %v1723 = vpack.c.b16 %v1399, %v1363
        %v1724 = vpack.c.b16 %v1400, %v1364
        %v1725 = vpack.c.b16 %v1401, %v1365
        %v1726 = vpack.c.b16 %v1402, %v1366
        %v1727 = vpack.c.b16 %v1403, %v1367
        %v1728 = vpack.c.b16 %v1404, %v1368
        %v1729 = vpack.c.b16 %v1405, %v1369
        %v1730 = vpack.c.b16 %v1406, %v1370
        %v1731 = vpack.c.b16 %v1407, %v1371
        %v1732 = vpack.c.b16 %v1408, %v1372
        %v1733 = vpack.c.b16 %v1409, %v1373
        %v1734 = vpack.c.b16 %v1410, %v1374
        %v1735 = vpack.c.b16 %v1411, %v1375
        %v1736 = vpack.c.b16 %v1412, %v1376
        %v1737 = vpack.c.b16 %v1413, %v1377
        %v1738 = vpack.c.b16 %v1414, %v1378
        %v1739 = vpack.c.b16 %v1415, %v1379
        %v1740 = vpack.c.b16 %v1416, %v1380
        %v1741 = vpack.c.b16 %v1417, %v1381
        %v1742 = vpack.c.b16 %v1418, %v1382
        %v1743 = vpack.c.b16 %v1419, %v1383
        %v1744 = vpack.c.b16 %v1420, %v1384
        %v1745 = vpack.c.b16 %v1421, %v1385
        %v1746 = vpack.c.b16 %v1422, %v1386
        %v1747 = vpack.c.b16 %v1423, %v1387
        %v1748 = vpack.c.b16 %v1424, %v1388
        %v1749 = vpack.c.b16 %v1425, %v1389
        %v1750 = vpack.c.b16 %v1426, %v1390
        %v1751 = vpack.c.b16 %v1427, %v1391
        %v1752 = vpack.c.b16 %v1428, %v1392
        %v1753 = vpack.c.b16 %v1465, %v1429
        %v1754 = vpack.c.b16 %v1466, %v1430
        %v1755 = vpack.c.b16 %v1467, %v1431
        %v1756 = vpack.c.b16 %v1468, %v1432
        %v1757 = vpack.c.b16 %v1469, %v1433
        %v1758 = vpack.c.b16 %v1470, %v1434
        %v1759 = vpack.c.b16 %v1471, %v1435
        %v1760 = vpack.c.b16 %v1472, %v1436
        %v1761 = vpack.c.b16 %v1473, %v1437
        %v1762 = vpack.c.b16 %v1474, %v1438
        %v1763 = vpack.c.b16 %v1475, %v1439
        %v1764 = vpack.c.b16 %v1476, %v1440
        %v1765 = vpack.c.b16 %v1477, %v1441
        %v1766 = vpack.c.b16 %v1478, %v1442
        %v1767 = vpack.c.b16 %v1479, %v1443
        %v1768 = vpack.c.b16 %v1480, %v1444
        %v1769 = vpack.c.b16 %v1481, %v1445
        %v1770 = vpack.c.b16 %v1482, %v1446
        %v1771 = vpack.c.b16 %v1483, %v1447
        %v1772 = vpack.c.b16 %v1484, %v1448
        %v1773 = vpack.c.b16 %v1485, %v1449
        %v1774 = vpack.c.b16 %v1486, %v1450
        %v1775 = vpack.c.b16 %v1487, %v1451
        %v1776 = vpack.c.b16 %v1488, %v1452
        %v1777 = vpack.c.b16 %v1489, %v1453
        %v1778 = vpack.c.b16 %v1490, %v1454
        %v1779 = vpack.c.b16 %v1491, %v1455
        %v1780 = vpack.c.b16 %v1492, %v1456
        %v1781 = vpack.c.b16 %v1493, %v1457
        %v1782 = vpack.c.b16 %v1494, %v1458
        %v1783 = vpack.c.b16 %v1495, %v1459
        %v1784 = vpack.c.b16 %v1496, %v1460
        %v1785 = vpack.c.b16 %v1497, %v1461
        %v1786 = vpack.c.b16 %v1498, %v1462
        %v1787 = vpack.c.b16 %v1499, %v1463
        %v1788 = vpack.c.b16 %v1500, %v1464
        %v1789 = vpack.c.b16 %v1537, %v1501
        %v1790 = vpack.c.b16 %v1538, %v1502
        %v1791 = vpack.c.b16 %v1539, %v1503
        %v1792 = vpack.c.b16 %v1540, %v1504
        %v1793 = vpack.c.b16 %v1541, %v1505
        %v1794 = vpack.c.b16 %v1542, %v1506
        %v1795 = vpack.c.b16 %v1543, %v1507
        %v1796 = vpack.c.b16 %v1544, %v1508
        %v1797 = vpack.c.b16 %v1545, %v1509
        %v1798 = vpack.c.b16 %v1546, %v1510
        %v1799 = vpack.c.b16 %v1547, %v1511
        %v1800 = vpack.c.b16 %v1548, %v1512
        %v1801 = vpack.c.b16 %v1549, %v1513
        %v1802 = vpack.c.b16 %v1550, %v1514
        %v1803 = vpack.c.b16 %v1551, %v1515
        %v1804 = vpack.c.b16 %v1552, %v1516
        %v1805 = vpack.c.b16 %v1553, %v1517
        %v1806 = vpack.c.b16 %v1554, %v1518
        %v1807 = vpack.c.b16 %v1555, %v1519
        %v1808 = vpack.c.b16 %v1556, %v1520
        %v1809 = vpack.c.b16 %v1557, %v1521
        %v1810 = vpack.c.b16 %v1558, %v1522
        %v1811 = vpack.c.b16 %v1559, %v1523
        %v1812 = vpack.c.b16 %v1560, %v1524
        %v1813 = vpack.c.b16 %v1561, %v1525
        %v1814 = vpack.c.b16 %v1562, %v1526
        %v1815 = vpack.c.b16 %v1563, %v1527
        %v1816 = vpack.c.b16 %v1564, %v1528
        %v1817 = vpack.c.b16 %v1565, %v1529
        %v1818 = vpack.c.b16 %v1566, %v1530
        %v1819 = vpack.c.b16 %v1567, %v1531
        %v1820 = vpack.c.b16 %v1568, %v1532
        %v1821 = vpack.c.b16 %v1569, %v1533
        %v1822 = vpack.c.b16 %v1570, %v1534
        %v1823 = vpack.c.b16 %v1571, %v1535
        %v1824 = vpack.c.b16 %v1572, %v1536
        %v1825 = vpack.c.b16 %v1573, %v1573
        %v1826 = vpack.c.b16 %v1574, %v1574
        %v1827 = vpack.c.b16 %v1575, %v1575
        %v1828 = vpack.c.b16 %v1576, %v1576
        %v1829 = vpack.c.b16 %v1577, %v1577
        %v1830 = vpack.c.b16 %v1578, %v1578
        %v1831 = vpack.c.b16 %v1579, %v1579
        %v1832 = vpack.c.b16 %v1580, %v1580
        %v1833 = vpack.c.b16 %v1581, %v1581
        %v1834 = vpack.c.b16 %v1582, %v1582
        %v1835 = vpack.c.b16 %v1583, %v1583
        %v1836 = vpack.c.b16 %v1584, %v1584
        %v1837 = vpack.c.b16 %v1585, %v1585
        %v1838 = vpack.c.b16 %v1586, %v1586
        %v1839 = vpack.c.b16 %v1587, %v1587
        %v1840 = vpack.c.b16 %v1588, %v1588
        %v1841 = vpack.c.b16 %v1589, %v1589
        %v1842 = vpack.c.b16 %v1590, %v1590
        %v1843 = vpack.c.b16 %v1591, %v1591
        %v1844 = vpack.c.b16 %v1592, %v1592
        %v1845 = vpack.c.b16 %v1593, %v1593
        %v1846 = vpack.c.b16 %v1594, %v1594
        %v1847 = vpack.c.b16 %v1595, %v1595
        %v1848 = vpack.c.b16 %v1596, %v1596
        %v1849 = vpack.c.b16 %v1597, %v1597
        %v1850 = vpack.c.b16 %v1598, %v1598
        %v1851 = vpack.c.b16 %v1599, %v1599
        %v1852 = vpack.c.b16 %v1600, %v1600
        %v1853 = vpack.c.b16 %v1601, %v1601
        %v1854 = vpack.c.b16 %v1602, %v1602
        %v1855 = vpack.c.b16 %v1603, %v1603
        %v1856 = vpack.c.b16 %v1604, %v1604
        %v1857 = vpack.c.b16 %v1605, %v1605
        %v1858 = vpack.c.b16 %v1606, %v1606
        %v1859 = vpack.c.b16 %v1607, %v1607
        %v1860 = vpack.c.b16 %v1608, %v1608
        %vm2077 = vcmask 801792
        %v2079 = vsel %vm2077, %v906, 0
        %vm2081 = vcmask 1040384
        %v2083 = vsel %vm2081, %v1825, 0
        %v2086 = vsel %vm2081, %v1826, 0
        %v2089 = vsel %vm2081, %v1827, 0
        %v2092 = vsel %vm2081, %v1828, 0
        %v2095 = vsel %vm2081, %v1829, 0
        %v2098 = vsel %vm2081, %v1830, 0
        %v2101 = vsel %vm2081, %v1831, 0
        %v2104 = vsel %vm2081, %v1832, 0
        %v2107 = vsel %vm2081, %v1833, 0
        %v2110 = vsel %vm2081, %v1834, 0
        %v2113 = vsel %vm2081, %v1835, 0
        %v2116 = vsel %vm2081, %v1836, 0
        %v2119 = vsel %vm2081, %v1837, 0
        %v2122 = vsel %vm2081, %v1838, 0
        %v2125 = vsel %vm2081, %v1839, 0
        %v2128 = vsel %vm2081, %v1840, 0
        %v2131 = vsel %vm2081, %v1841, 0
        %v2134 = vsel %vm2081, %v1842, 0
        %v2137 = vsel %vm2081, %v1843, 0
        %v2140 = vsel %vm2081, %v1844, 0
        %v2143 = vsel %vm2081, %v1845, 0
        %v2146 = vsel %vm2081, %v1846, 0
        %v2149 = vsel %vm2081, %v1847, 0
        %v2152 = vsel %vm2081, %v1848, 0
        %v2155 = vsel %vm2081, %v1849, 0
        %v2158 = vsel %vm2081, %v1850, 0
        %v2161 = vsel %vm2081, %v1851, 0
        %v2164 = vsel %vm2081, %v1852, 0
        %v2167 = vsel %vm2081, %v1853, 0
        %v2170 = vsel %vm2081, %v1854, 0
        %v2173 = vsel %vm2081, %v1855, 0
        %v2176 = vsel %vm2081, %v1856, 0
        %v2179 = vsel %vm2081, %v1857, 0
        %v2182 = vsel %vm2081, %v1858, 0
        %v2185 = vsel %vm2081, %v1859, 0
        %v2188 = vsel %vm2081, %v1860, 0
        %2190 = vmatpush.bf16.msra.mxu0 0
        %2191 = vmatpush.bf16.msra.mxu0 %v2083
        %2192 = vmatpush.bf16.msra.mxu0 %v1789
        %2193 = vmatpush.bf16.msra.mxu0 %v1753
        %2194 = vmatpush.bf16.msra.mxu0 %v1717
        %2195 = vmatpush.bf16.msra.mxu0 %v1681
        %2196 = vmatpush.bf16.msra.mxu0 %v1645
        %2197 = vmatpush.bf16.msra.mxu0 %v1609
        %2198 = vmatmul.bf16.gmra.mxu0 %v2079
        %v2199 = vpop.f32.mrf.mxu0
        %v2200 = vadd.f32 %v895, %v2199
        %v2201 = vpop.f32.mrf.mxu0
        %v2202 = vadd.f32 %v900, %v2201
        %2203 = vdwg.mxu0
        %2204 = vmatpush.bf16.msra.mxu0 0
        %2205 = vmatpush.bf16.msra.mxu0 %v2086
        %2206 = vmatpush.bf16.msra.mxu0 %v1790
        %2207 = vmatpush.bf16.msra.mxu0 %v1754
        %2208 = vmatpush.bf16.msra.mxu0 %v1718
        %2209 = vmatpush.bf16.msra.mxu0 %v1682
        %2210 = vmatpush.bf16.msra.mxu0 %v1646
        %2211 = vmatpush.bf16.msra.mxu0 %v1610
        %2212 = vmatmul.bf16.gmra.mxu0 %v2079
        %v2213 = vpop.f32.mrf.mxu0
        %v2214 = vadd.f32 %v895, %v2213
        %v2215 = vpop.f32.mrf.mxu0
        %v2216 = vadd.f32 %v900, %v2215
        %2217 = vdwg.mxu0
        %2218 = vmatpush.bf16.msra.mxu0 0
        %2219 = vmatpush.bf16.msra.mxu0 %v2089
        %2220 = vmatpush.bf16.msra.mxu0 %v1791
        %2221 = vmatpush.bf16.msra.mxu0 %v1755
        %2222 = vmatpush.bf16.msra.mxu0 %v1719
        %2223 = vmatpush.bf16.msra.mxu0 %v1683
        %2224 = vmatpush.bf16.msra.mxu0 %v1647
        %2225 = vmatpush.bf16.msra.mxu0 %v1611
        %2226 = vmatmul.bf16.gmra.mxu0 %v2079
        %v2227 = vpop.f32.mrf.mxu0
        %v2228 = vadd.f32 %v895, %v2227
        %v2229 = vpop.f32.mrf.mxu0
        %v2230 = vadd.f32 %v900, %v2229
        %2231 = vdwg.mxu0
        %2232 = vmatpush.bf16.msra.mxu0 0
        %2233 = vmatpush.bf16.msra.mxu0 %v2092
        %2234 = vmatpush.bf16.msra.mxu0 %v1792
        %2235 = vmatpush.bf16.msra.mxu0 %v1756
        %2236 = vmatpush.bf16.msra.mxu0 %v1720
        %2237 = vmatpush.bf16.msra.mxu0 %v1684
        %2238 = vmatpush.bf16.msra.mxu0 %v1648
        %2239 = vmatpush.bf16.msra.mxu0 %v1612
        %2240 = vmatmul.bf16.gmra.mxu0 %v2079
        %v2241 = vpop.f32.mrf.mxu0
        %v2242 = vadd.f32 %v895, %v2241
        %v2243 = vpop.f32.mrf.mxu0
        %v2244 = vadd.f32 %v900, %v2243
        %2245 = vdwg.mxu0
        %2246 = vmatpush.bf16.msra.mxu0 0
        %2247 = vmatpush.bf16.msra.mxu0 %v2095
        %2248 = vmatpush.bf16.msra.mxu0 %v1793
        %2249 = vmatpush.bf16.msra.mxu0 %v1757
        %2250 = vmatpush.bf16.msra.mxu0 %v1721
        %2251 = vmatpush.bf16.msra.mxu0 %v1685
        %2252 = vmatpush.bf16.msra.mxu0 %v1649
        %2253 = vmatpush.bf16.msra.mxu0 %v1613
        %2254 = vmatmul.bf16.gmra.mxu0 %v2079
        %v2255 = vpop.f32.mrf.mxu0
        %v2256 = vadd.f32 %v895, %v2255
        %v2257 = vpop.f32.mrf.mxu0
        %v2258 = vadd.f32 %v900, %v2257
        %2259 = vdwg.mxu0
        %2260 = vmatpush.bf16.msra.mxu0 0
        %2261 = vmatpush.bf16.msra.mxu0 %v2098
        %2262 = vmatpush.bf16.msra.mxu0 %v1794
        %2263 = vmatpush.bf16.msra.mxu0 %v1758
        %2264 = vmatpush.bf16.msra.mxu0 %v1722
        %2265 = vmatpush.bf16.msra.mxu0 %v1686
        %2266 = vmatpush.bf16.msra.mxu0 %v1650
        %2267 = vmatpush.bf16.msra.mxu0 %v1614
        %2268 = vmatmul.bf16.gmra.mxu0 %v2079
        %v2269 = vpop.f32.mrf.mxu0
        %v2270 = vadd.f32 %v895, %v2269
        %v2271 = vpop.f32.mrf.mxu0
        %v2272 = vadd.f32 %v900, %v2271
        %2273 = vdwg.mxu0
        %2274 = vmatpush.bf16.msra.mxu0 0
        %2275 = vmatpush.bf16.msra.mxu0 %v2101
        %2276 = vmatpush.bf16.msra.mxu0 %v1795
        %2277 = vmatpush.bf16.msra.mxu0 %v1759
        %2278 = vmatpush.bf16.msra.mxu0 %v1723
        %2279 = vmatpush.bf16.msra.mxu0 %v1687
        %2280 = vmatpush.bf16.msra.mxu0 %v1651
        %2281 = vmatpush.bf16.msra.mxu0 %v1615
        %2282 = vmatmul.bf16.gmra.mxu0 %v2079
        %v2283 = vpop.f32.mrf.mxu0
        %v2284 = vadd.f32 %v895, %v2283
        %v2285 = vpop.f32.mrf.mxu0
        %v2286 = vadd.f32 %v900, %v2285
        %2287 = vdwg.mxu0
        %2288 = vmatpush.bf16.msra.mxu0 0
        %2289 = vmatpush.bf16.msra.mxu0 %v2104
        %2290 = vmatpush.bf16.msra.mxu0 %v1796
        %2291 = vmatpush.bf16.msra.mxu0 %v1760
        %2292 = vmatpush.bf16.msra.mxu0 %v1724
        %2293 = vmatpush.bf16.msra.mxu0 %v1688
        %2294 = vmatpush.bf16.msra.mxu0 %v1652
        %2295 = vmatpush.bf16.msra.mxu0 %v1616
        %2296 = vmatmul.bf16.gmra.mxu0 %v2079
        %v2297 = vpop.f32.mrf.mxu0
        %v2298 = vadd.f32 %v895, %v2297
        %v2299 = vpop.f32.mrf.mxu0
        %v2300 = vadd.f32 %v900, %v2299
        %2301 = vdwg.mxu0
        %2302 = vmatpush.bf16.msra.mxu0 0
        %2303 = vmatpush.bf16.msra.mxu0 %v2107
        %2304 = vmatpush.bf16.msra.mxu0 %v1797
        %2305 = vmatpush.bf16.msra.mxu0 %v1761
        %2306 = vmatpush.bf16.msra.mxu0 %v1725
        %2307 = vmatpush.bf16.msra.mxu0 %v1689
        %2308 = vmatpush.bf16.msra.mxu0 %v1653
        %2309 = vmatpush.bf16.msra.mxu0 %v1617
        %2310 = vmatmul.bf16.gmra.mxu0 %v2079
        %v2311 = vpop.f32.mrf.mxu0
        %v2312 = vadd.f32 %v895, %v2311
        %v2313 = vpop.f32.mrf.mxu0
        %v2314 = vadd.f32 %v900, %v2313
        %2315 = vdwg.mxu0
        %2316 = vmatpush.bf16.msra.mxu0 0
        %2317 = vmatpush.bf16.msra.mxu0 %v2110
        %2318 = vmatpush.bf16.msra.mxu0 %v1798
        %2319 = vmatpush.bf16.msra.mxu0 %v1762
        %2320 = vmatpush.bf16.msra.mxu0 %v1726
        %2321 = vmatpush.bf16.msra.mxu0 %v1690
        %2322 = vmatpush.bf16.msra.mxu0 %v1654
        %2323 = vmatpush.bf16.msra.mxu0 %v1618
        %2324 = vmatmul.bf16.gmra.mxu0 %v2079
        %v2325 = vpop.f32.mrf.mxu0
        %v2326 = vadd.f32 %v895, %v2325
        %v2327 = vpop.f32.mrf.mxu0
        %v2328 = vadd.f32 %v900, %v2327
        %2329 = vdwg.mxu0
        %2330 = vmatpush.bf16.msra.mxu0 0
        %2331 = vmatpush.bf16.msra.mxu0 %v2113
        %2332 = vmatpush.bf16.msra.mxu0 %v1799
        %2333 = vmatpush.bf16.msra.mxu0 %v1763
        %2334 = vmatpush.bf16.msra.mxu0 %v1727
        %2335 = vmatpush.bf16.msra.mxu0 %v1691
        %2336 = vmatpush.bf16.msra.mxu0 %v1655
        %2337 = vmatpush.bf16.msra.mxu0 %v1619
        %2338 = vmatmul.bf16.gmra.mxu0 %v2079
        %v2339 = vpop.f32.mrf.mxu0
        %v2340 = vadd.f32 %v895, %v2339
        %v2341 = vpop.f32.mrf.mxu0
        %v2342 = vadd.f32 %v900, %v2341
        %2343 = vdwg.mxu0
        %2344 = vmatpush.bf16.msra.mxu0 0
        %2345 = vmatpush.bf16.msra.mxu0 %v2116
        %2346 = vmatpush.bf16.msra.mxu0 %v1800
        %2347 = vmatpush.bf16.msra.mxu0 %v1764
        %2348 = vmatpush.bf16.msra.mxu0 %v1728
        %2349 = vmatpush.bf16.msra.mxu0 %v1692
        %2350 = vmatpush.bf16.msra.mxu0 %v1656
        %2351 = vmatpush.bf16.msra.mxu0 %v1620
        %2352 = vmatmul.bf16.gmra.mxu0 %v2079
        %v2353 = vpop.f32.mrf.mxu0
        %v2354 = vadd.f32 %v895, %v2353
        %v2355 = vpop.f32.mrf.mxu0
        %v2356 = vadd.f32 %v900, %v2355
        %2357 = vdwg.mxu0
        %2358 = vmatpush.bf16.msra.mxu0 0
        %2359 = vmatpush.bf16.msra.mxu0 %v2119
        %2360 = vmatpush.bf16.msra.mxu0 %v1801
        %2361 = vmatpush.bf16.msra.mxu0 %v1765
        %2362 = vmatpush.bf16.msra.mxu0 %v1729
        %2363 = vmatpush.bf16.msra.mxu0 %v1693
        %2364 = vmatpush.bf16.msra.mxu0 %v1657
        %2365 = vmatpush.bf16.msra.mxu0 %v1621
        %2366 = vmatmul.bf16.gmra.mxu0 %v2079
        %v2367 = vpop.f32.mrf.mxu0
        %v2368 = vadd.f32 %v895, %v2367
        %v2369 = vpop.f32.mrf.mxu0
        %v2370 = vadd.f32 %v900, %v2369
        %2371 = vdwg.mxu0
        %2372 = vmatpush.bf16.msra.mxu0 0
        %2373 = vmatpush.bf16.msra.mxu0 %v2122
        %2374 = vmatpush.bf16.msra.mxu0 %v1802
        %2375 = vmatpush.bf16.msra.mxu0 %v1766
        %2376 = vmatpush.bf16.msra.mxu0 %v1730
        %2377 = vmatpush.bf16.msra.mxu0 %v1694
        %2378 = vmatpush.bf16.msra.mxu0 %v1658
        %2379 = vmatpush.bf16.msra.mxu0 %v1622
        %2380 = vmatmul.bf16.gmra.mxu0 %v2079
        %v2381 = vpop.f32.mrf.mxu0
        %v2382 = vadd.f32 %v895, %v2381
        %v2383 = vpop.f32.mrf.mxu0
        %v2384 = vadd.f32 %v900, %v2383
        %2385 = vdwg.mxu0
        %2386 = vmatpush.bf16.msra.mxu0 0
        %2387 = vmatpush.bf16.msra.mxu0 %v2125
        %2388 = vmatpush.bf16.msra.mxu0 %v1803
        %2389 = vmatpush.bf16.msra.mxu0 %v1767
        %2390 = vmatpush.bf16.msra.mxu0 %v1731
        %2391 = vmatpush.bf16.msra.mxu0 %v1695
        %2392 = vmatpush.bf16.msra.mxu0 %v1659
        %2393 = vmatpush.bf16.msra.mxu0 %v1623
        %2394 = vmatmul.bf16.gmra.mxu0 %v2079
        %v2395 = vpop.f32.mrf.mxu0
        %v2396 = vadd.f32 %v895, %v2395
        %v2397 = vpop.f32.mrf.mxu0
        %v2398 = vadd.f32 %v900, %v2397
        %2399 = vdwg.mxu0
        %2400 = vmatpush.bf16.msra.mxu0 0
        %2401 = vmatpush.bf16.msra.mxu0 %v2128
        %2402 = vmatpush.bf16.msra.mxu0 %v1804
        %2403 = vmatpush.bf16.msra.mxu0 %v1768
        %2404 = vmatpush.bf16.msra.mxu0 %v1732
        %2405 = vmatpush.bf16.msra.mxu0 %v1696
        %2406 = vmatpush.bf16.msra.mxu0 %v1660
        %2407 = vmatpush.bf16.msra.mxu0 %v1624
        %2408 = vmatmul.bf16.gmra.mxu0 %v2079
        %v2409 = vpop.f32.mrf.mxu0
        %v2410 = vadd.f32 %v895, %v2409
        %v2411 = vpop.f32.mrf.mxu0
        %v2412 = vadd.f32 %v900, %v2411
        %2413 = vdwg.mxu0
        %2414 = vmatpush.bf16.msra.mxu0 0
        %2415 = vmatpush.bf16.msra.mxu0 %v2131
        %2416 = vmatpush.bf16.msra.mxu0 %v1805
        %2417 = vmatpush.bf16.msra.mxu0 %v1769
        %2418 = vmatpush.bf16.msra.mxu0 %v1733
        %2419 = vmatpush.bf16.msra.mxu0 %v1697
        %2420 = vmatpush.bf16.msra.mxu0 %v1661
        %2421 = vmatpush.bf16.msra.mxu0 %v1625
        %2422 = vmatmul.bf16.gmra.mxu0 %v2079
        %v2423 = vpop.f32.mrf.mxu0
        %v2424 = vadd.f32 %v895, %v2423
        %v2425 = vpop.f32.mrf.mxu0
        %v2426 = vadd.f32 %v900, %v2425
        %2427 = vdwg.mxu0
        %2428 = vmatpush.bf16.msra.mxu0 0
        %2429 = vmatpush.bf16.msra.mxu0 %v2134
        %2430 = vmatpush.bf16.msra.mxu0 %v1806
        %2431 = vmatpush.bf16.msra.mxu0 %v1770
        %2432 = vmatpush.bf16.msra.mxu0 %v1734
        %2433 = vmatpush.bf16.msra.mxu0 %v1698
        %2434 = vmatpush.bf16.msra.mxu0 %v1662
        %2435 = vmatpush.bf16.msra.mxu0 %v1626
        %2436 = vmatmul.bf16.gmra.mxu0 %v2079
        %v2437 = vpop.f32.mrf.mxu0
        %v2438 = vadd.f32 %v895, %v2437
        %v2439 = vpop.f32.mrf.mxu0
        %v2440 = vadd.f32 %v900, %v2439
        %2441 = vdwg.mxu0
        %2442 = vmatpush.bf16.msra.mxu0 0
        %2443 = vmatpush.bf16.msra.mxu0 %v2137
        %2444 = vmatpush.bf16.msra.mxu0 %v1807
        %2445 = vmatpush.bf16.msra.mxu0 %v1771
        %2446 = vmatpush.bf16.msra.mxu0 %v1735
        %2447 = vmatpush.bf16.msra.mxu0 %v1699
        %2448 = vmatpush.bf16.msra.mxu0 %v1663
        %2449 = vmatpush.bf16.msra.mxu0 %v1627
        %2450 = vmatmul.bf16.gmra.mxu0 %v2079
        %v2451 = vpop.f32.mrf.mxu0
        %v2452 = vadd.f32 %v895, %v2451
        %v2453 = vpop.f32.mrf.mxu0
        %v2454 = vadd.f32 %v900, %v2453
        %2455 = vdwg.mxu0
        %2456 = vmatpush.bf16.msra.mxu0 0
        %2457 = vmatpush.bf16.msra.mxu0 %v2140
        %2458 = vmatpush.bf16.msra.mxu0 %v1808
        %2459 = vmatpush.bf16.msra.mxu0 %v1772
        %2460 = vmatpush.bf16.msra.mxu0 %v1736
        %2461 = vmatpush.bf16.msra.mxu0 %v1700
        %2462 = vmatpush.bf16.msra.mxu0 %v1664
        %2463 = vmatpush.bf16.msra.mxu0 %v1628
        %2464 = vmatmul.bf16.gmra.mxu0 %v2079
        %v2465 = vpop.f32.mrf.mxu0
        %v2466 = vadd.f32 %v895, %v2465
        %v2467 = vpop.f32.mrf.mxu0
        %v2468 = vadd.f32 %v900, %v2467
        %2469 = vdwg.mxu0
        %2470 = vmatpush.bf16.msra.mxu0 0
        %2471 = vmatpush.bf16.msra.mxu0 %v2143
        %2472 = vmatpush.bf16.msra.mxu0 %v1809
        %2473 = vmatpush.bf16.msra.mxu0 %v1773
        %2474 = vmatpush.bf16.msra.mxu0 %v1737
        %2475 = vmatpush.bf16.msra.mxu0 %v1701
        %2476 = vmatpush.bf16.msra.mxu0 %v1665
        %2477 = vmatpush.bf16.msra.mxu0 %v1629
        %2478 = vmatmul.bf16.gmra.mxu0 %v2079
        %v2479 = vpop.f32.mrf.mxu0
        %v2480 = vadd.f32 %v895, %v2479
        %v2481 = vpop.f32.mrf.mxu0
        %v2482 = vadd.f32 %v900, %v2481
        %2483 = vdwg.mxu0
        %2484 = vmatpush.bf16.msra.mxu0 0
        %2485 = vmatpush.bf16.msra.mxu0 %v2146
        %2486 = vmatpush.bf16.msra.mxu0 %v1810
        %2487 = vmatpush.bf16.msra.mxu0 %v1774
        %2488 = vmatpush.bf16.msra.mxu0 %v1738
        %2489 = vmatpush.bf16.msra.mxu0 %v1702
        %2490 = vmatpush.bf16.msra.mxu0 %v1666
        %2491 = vmatpush.bf16.msra.mxu0 %v1630
        %2492 = vmatmul.bf16.gmra.mxu0 %v2079
        %v2493 = vpop.f32.mrf.mxu0
        %v2494 = vadd.f32 %v895, %v2493
        %v2495 = vpop.f32.mrf.mxu0
        %v2496 = vadd.f32 %v900, %v2495
        %2497 = vdwg.mxu0
        %2498 = vmatpush.bf16.msra.mxu0 0
        %2499 = vmatpush.bf16.msra.mxu0 %v2149
        %2500 = vmatpush.bf16.msra.mxu0 %v1811
        %2501 = vmatpush.bf16.msra.mxu0 %v1775
        %2502 = vmatpush.bf16.msra.mxu0 %v1739
        %2503 = vmatpush.bf16.msra.mxu0 %v1703
        %2504 = vmatpush.bf16.msra.mxu0 %v1667
        %2505 = vmatpush.bf16.msra.mxu0 %v1631
        %2506 = vmatmul.bf16.gmra.mxu0 %v2079
        %v2507 = vpop.f32.mrf.mxu0
        %v2508 = vadd.f32 %v895, %v2507
        %v2509 = vpop.f32.mrf.mxu0
        %v2510 = vadd.f32 %v900, %v2509
        %2511 = vdwg.mxu0
        %2512 = vmatpush.bf16.msra.mxu0 0
        %2513 = vmatpush.bf16.msra.mxu0 %v2152
        %2514 = vmatpush.bf16.msra.mxu0 %v1812
        %2515 = vmatpush.bf16.msra.mxu0 %v1776
        %2516 = vmatpush.bf16.msra.mxu0 %v1740
        %2517 = vmatpush.bf16.msra.mxu0 %v1704
        %2518 = vmatpush.bf16.msra.mxu0 %v1668
        %2519 = vmatpush.bf16.msra.mxu0 %v1632
        %2520 = vmatmul.bf16.gmra.mxu0 %v2079
        %v2521 = vpop.f32.mrf.mxu0
        %v2522 = vadd.f32 %v895, %v2521
        %v2523 = vpop.f32.mrf.mxu0
        %v2524 = vadd.f32 %v900, %v2523
        %2525 = vdwg.mxu0
        %2526 = vmatpush.bf16.msra.mxu0 0
        %2527 = vmatpush.bf16.msra.mxu0 %v2155
        %2528 = vmatpush.bf16.msra.mxu0 %v1813
        %2529 = vmatpush.bf16.msra.mxu0 %v1777
        %2530 = vmatpush.bf16.msra.mxu0 %v1741
        %2531 = vmatpush.bf16.msra.mxu0 %v1705
        %2532 = vmatpush.bf16.msra.mxu0 %v1669
        %2533 = vmatpush.bf16.msra.mxu0 %v1633
        %2534 = vmatmul.bf16.gmra.mxu0 %v2079
        %v2535 = vpop.f32.mrf.mxu0
        %v2536 = vadd.f32 %v895, %v2535
        %v2537 = vpop.f32.mrf.mxu0
        %v2538 = vadd.f32 %v900, %v2537
        %2539 = vdwg.mxu0
        %2540 = vmatpush.bf16.msra.mxu0 0
        %2541 = vmatpush.bf16.msra.mxu0 %v2158
        %2542 = vmatpush.bf16.msra.mxu0 %v1814
        %2543 = vmatpush.bf16.msra.mxu0 %v1778
        %2544 = vmatpush.bf16.msra.mxu0 %v1742
        %2545 = vmatpush.bf16.msra.mxu0 %v1706
        %2546 = vmatpush.bf16.msra.mxu0 %v1670
        %2547 = vmatpush.bf16.msra.mxu0 %v1634
        %2548 = vmatmul.bf16.gmra.mxu0 %v2079
        %v2549 = vpop.f32.mrf.mxu0
        %v2550 = vadd.f32 %v895, %v2549
        %v2551 = vpop.f32.mrf.mxu0
        %v2552 = vadd.f32 %v900, %v2551
        %2553 = vdwg.mxu0
        %2554 = vmatpush.bf16.msra.mxu0 0
        %2555 = vmatpush.bf16.msra.mxu0 %v2161
        %2556 = vmatpush.bf16.msra.mxu0 %v1815
        %2557 = vmatpush.bf16.msra.mxu0 %v1779
        %2558 = vmatpush.bf16.msra.mxu0 %v1743
        %2559 = vmatpush.bf16.msra.mxu0 %v1707
        %2560 = vmatpush.bf16.msra.mxu0 %v1671
        %2561 = vmatpush.bf16.msra.mxu0 %v1635
        %2562 = vmatmul.bf16.gmra.mxu0 %v2079
        %v2563 = vpop.f32.mrf.mxu0
        %v2564 = vadd.f32 %v895, %v2563
        %v2565 = vpop.f32.mrf.mxu0
        %v2566 = vadd.f32 %v900, %v2565
        %2567 = vdwg.mxu0
        %2568 = vmatpush.bf16.msra.mxu0 0
        %2569 = vmatpush.bf16.msra.mxu0 %v2164
        %2570 = vmatpush.bf16.msra.mxu0 %v1816
        %2571 = vmatpush.bf16.msra.mxu0 %v1780
        %2572 = vmatpush.bf16.msra.mxu0 %v1744
        %2573 = vmatpush.bf16.msra.mxu0 %v1708
        %2574 = vmatpush.bf16.msra.mxu0 %v1672
        %2575 = vmatpush.bf16.msra.mxu0 %v1636
        %2576 = vmatmul.bf16.gmra.mxu0 %v2079
        %v2577 = vpop.f32.mrf.mxu0
        %v2578 = vadd.f32 %v895, %v2577
        %v2579 = vpop.f32.mrf.mxu0
        %v2580 = vadd.f32 %v900, %v2579
        %2581 = vdwg.mxu0
        %2582 = vmatpush.bf16.msra.mxu0 0
        %2583 = vmatpush.bf16.msra.mxu0 %v2167
        %2584 = vmatpush.bf16.msra.mxu0 %v1817
        %2585 = vmatpush.bf16.msra.mxu0 %v1781
        %2586 = vmatpush.bf16.msra.mxu0 %v1745
        %2587 = vmatpush.bf16.msra.mxu0 %v1709
        %2588 = vmatpush.bf16.msra.mxu0 %v1673
        %2589 = vmatpush.bf16.msra.mxu0 %v1637
        %2590 = vmatmul.bf16.gmra.mxu0 %v2079
        %v2591 = vpop.f32.mrf.mxu0
        %v2592 = vadd.f32 %v895, %v2591
        %v2593 = vpop.f32.mrf.mxu0
        %v2594 = vadd.f32 %v900, %v2593
        %2595 = vdwg.mxu0
        %2596 = vmatpush.bf16.msra.mxu0 0
        %2597 = vmatpush.bf16.msra.mxu0 %v2170
        %2598 = vmatpush.bf16.msra.mxu0 %v1818
        %2599 = vmatpush.bf16.msra.mxu0 %v1782
        %2600 = vmatpush.bf16.msra.mxu0 %v1746
        %2601 = vmatpush.bf16.msra.mxu0 %v1710
        %2602 = vmatpush.bf16.msra.mxu0 %v1674
        %2603 = vmatpush.bf16.msra.mxu0 %v1638
        %2604 = vmatmul.bf16.gmra.mxu0 %v2079
        %v2605 = vpop.f32.mrf.mxu0
        %v2606 = vadd.f32 %v895, %v2605
        %v2607 = vpop.f32.mrf.mxu0
        %v2608 = vadd.f32 %v900, %v2607
        %2609 = vdwg.mxu0
        %2610 = vmatpush.bf16.msra.mxu0 0
        %2611 = vmatpush.bf16.msra.mxu0 %v2173
        %2612 = vmatpush.bf16.msra.mxu0 %v1819
        %2613 = vmatpush.bf16.msra.mxu0 %v1783
        %2614 = vmatpush.bf16.msra.mxu0 %v1747
        %2615 = vmatpush.bf16.msra.mxu0 %v1711
        %2616 = vmatpush.bf16.msra.mxu0 %v1675
        %2617 = vmatpush.bf16.msra.mxu0 %v1639
        %2618 = vmatmul.bf16.gmra.mxu0 %v2079
        %v2619 = vpop.f32.mrf.mxu0
        %v2620 = vadd.f32 %v895, %v2619
        %v2621 = vpop.f32.mrf.mxu0
        %v2622 = vadd.f32 %v900, %v2621
        %2623 = vdwg.mxu0
        %2624 = vmatpush.bf16.msra.mxu0 0
        %2625 = vmatpush.bf16.msra.mxu0 %v2176
        %2626 = vmatpush.bf16.msra.mxu0 %v1820
        %2627 = vmatpush.bf16.msra.mxu0 %v1784
        %2628 = vmatpush.bf16.msra.mxu0 %v1748
        %2629 = vmatpush.bf16.msra.mxu0 %v1712
        %2630 = vmatpush.bf16.msra.mxu0 %v1676
        %2631 = vmatpush.bf16.msra.mxu0 %v1640
        %2632 = vmatmul.bf16.gmra.mxu0 %v2079
        %v2633 = vpop.f32.mrf.mxu0
        %v2634 = vadd.f32 %v895, %v2633
        %v2635 = vpop.f32.mrf.mxu0
        %v2636 = vadd.f32 %v900, %v2635
        %2637 = vdwg.mxu0
        %2638 = vmatpush.bf16.msra.mxu0 0
        %2639 = vmatpush.bf16.msra.mxu0 %v2179
        %2640 = vmatpush.bf16.msra.mxu0 %v1821
        %2641 = vmatpush.bf16.msra.mxu0 %v1785
        %2642 = vmatpush.bf16.msra.mxu0 %v1749
        %2643 = vmatpush.bf16.msra.mxu0 %v1713
        %2644 = vmatpush.bf16.msra.mxu0 %v1677
        %2645 = vmatpush.bf16.msra.mxu0 %v1641
        %2646 = vmatmul.bf16.gmra.mxu0 %v2079
        %v2647 = vpop.f32.mrf.mxu0
        %v2648 = vadd.f32 %v895, %v2647
        %v2649 = vpop.f32.mrf.mxu0
        %v2650 = vadd.f32 %v900, %v2649
        %2651 = vdwg.mxu0
        %2652 = vmatpush.bf16.msra.mxu0 0
        %2653 = vmatpush.bf16.msra.mxu0 %v2182
        %2654 = vmatpush.bf16.msra.mxu0 %v1822
        %2655 = vmatpush.bf16.msra.mxu0 %v1786
        %2656 = vmatpush.bf16.msra.mxu0 %v1750
        %2657 = vmatpush.bf16.msra.mxu0 %v1714
        %2658 = vmatpush.bf16.msra.mxu0 %v1678
        %2659 = vmatpush.bf16.msra.mxu0 %v1642
        %2660 = vmatmul.bf16.gmra.mxu0 %v2079
        %v2661 = vpop.f32.mrf.mxu0
        %v2662 = vadd.f32 %v895, %v2661
        %v2663 = vpop.f32.mrf.mxu0
        %v2664 = vadd.f32 %v900, %v2663
        %2665 = vdwg.mxu0
        %2666 = vmatpush.bf16.msra.mxu0 0
        %2667 = vmatpush.bf16.msra.mxu0 %v2185
        %2668 = vmatpush.bf16.msra.mxu0 %v1823
        %2669 = vmatpush.bf16.msra.mxu0 %v1787
        %2670 = vmatpush.bf16.msra.mxu0 %v1751
        %2671 = vmatpush.bf16.msra.mxu0 %v1715
        %2672 = vmatpush.bf16.msra.mxu0 %v1679
        %2673 = vmatpush.bf16.msra.mxu0 %v1643
        %2674 = vmatmul.bf16.gmra.mxu0 %v2079
        %v2675 = vpop.f32.mrf.mxu0
        %v2676 = vadd.f32 %v895, %v2675
        %v2677 = vpop.f32.mrf.mxu0
        %v2678 = vadd.f32 %v900, %v2677
        %2679 = vdwg.mxu0
        %2680 = vmatpush.bf16.msra.mxu0 0
        %2681 = vmatpush.bf16.msra.mxu0 %v2188
        %2682 = vmatpush.bf16.msra.mxu0 %v1824
        %2683 = vmatpush.bf16.msra.mxu0 %v1788
        %2684 = vmatpush.bf16.msra.mxu0 %v1752
        %2685 = vmatpush.bf16.msra.mxu0 %v1716
        %2686 = vmatpush.bf16.msra.mxu0 %v1680
        %2687 = vmatpush.bf16.msra.mxu0 %v1644
        %2688 = vmatmul.bf16.gmra.mxu0 %v2079
        %v2689 = vpop.f32.mrf.mxu0
        %v2690 = vadd.f32 %v895, %v2689
        %v2691 = vpop.f32.mrf.mxu0
        %v2692 = vadd.f32 %v900, %v2691
        %2693 = vdwg.mxu0
        %vm2694 = vcmp.ge.f32.partialorder %v2200, 0.0
        %vm2695 = vcmp.ge.f32.partialorder %v2214, 0.0
        %vm2696 = vcmp.ge.f32.partialorder %v2228, 0.0
        %vm2697 = vcmp.ge.f32.partialorder %v2242, 0.0
        %vm2698 = vcmp.ge.f32.partialorder %v2256, 0.0
        %vm2699 = vcmp.ge.f32.partialorder %v2270, 0.0
        %vm2700 = vcmp.ge.f32.partialorder %v2284, 0.0
        %vm2701 = vcmp.ge.f32.partialorder %v2298, 0.0
        %vm2702 = vcmp.ge.f32.partialorder %v2312, 0.0
        %vm2703 = vcmp.ge.f32.partialorder %v2326, 0.0
        %vm2704 = vcmp.ge.f32.partialorder %v2340, 0.0
        %vm2705 = vcmp.ge.f32.partialorder %v2354, 0.0
        %vm2706 = vcmp.ge.f32.partialorder %v2368, 0.0
        %vm2707 = vcmp.ge.f32.partialorder %v2382, 0.0
        %vm2708 = vcmp.ge.f32.partialorder %v2396, 0.0
        %vm2709 = vcmp.ge.f32.partialorder %v2410, 0.0
        %vm2710 = vcmp.ge.f32.partialorder %v2424, 0.0
        %vm2711 = vcmp.ge.f32.partialorder %v2438, 0.0
        %vm2712 = vcmp.ge.f32.partialorder %v2452, 0.0
        %vm2713 = vcmp.ge.f32.partialorder %v2466, 0.0
        %vm2714 = vcmp.ge.f32.partialorder %v2480, 0.0
        %vm2715 = vcmp.ge.f32.partialorder %v2494, 0.0
        %vm2716 = vcmp.ge.f32.partialorder %v2508, 0.0
        %vm2717 = vcmp.ge.f32.partialorder %v2522, 0.0
        %vm2718 = vcmp.ge.f32.partialorder %v2536, 0.0
        %vm2719 = vcmp.ge.f32.partialorder %v2550, 0.0
        %vm2720 = vcmp.ge.f32.partialorder %v2564, 0.0
        %vm2721 = vcmp.ge.f32.partialorder %v2578, 0.0
        %vm2722 = vcmp.ge.f32.partialorder %v2592, 0.0
        %vm2723 = vcmp.ge.f32.partialorder %v2606, 0.0
        %vm2724 = vcmp.ge.f32.partialorder %v2620, 0.0
        %vm2725 = vcmp.ge.f32.partialorder %v2634, 0.0
        %vm2726 = vcmp.ge.f32.partialorder %v2648, 0.0
        %vm2727 = vcmp.ge.f32.partialorder %v2662, 0.0
        %vm2728 = vcmp.ge.f32.partialorder %v2676, 0.0
        %vm2729 = vcmp.ge.f32.partialorder %v2690, 0.0
        %vm2730 = vcmp.ge.f32.partialorder %v2202, 0.0
        %vm2731 = vcmp.ge.f32.partialorder %v2216, 0.0
        %vm2732 = vcmp.ge.f32.partialorder %v2230, 0.0
        %vm2733 = vcmp.ge.f32.partialorder %v2244, 0.0
        %vm2734 = vcmp.ge.f32.partialorder %v2258, 0.0
        %vm2735 = vcmp.ge.f32.partialorder %v2272, 0.0
        %vm2736 = vcmp.ge.f32.partialorder %v2286, 0.0
        %vm2737 = vcmp.ge.f32.partialorder %v2300, 0.0
        %vm2738 = vcmp.ge.f32.partialorder %v2314, 0.0
        %vm2739 = vcmp.ge.f32.partialorder %v2328, 0.0
        %vm2740 = vcmp.ge.f32.partialorder %v2342, 0.0
        %vm2741 = vcmp.ge.f32.partialorder %v2356, 0.0
        %vm2742 = vcmp.ge.f32.partialorder %v2370, 0.0
        %vm2743 = vcmp.ge.f32.partialorder %v2384, 0.0
        %vm2744 = vcmp.ge.f32.partialorder %v2398, 0.0
        %vm2745 = vcmp.ge.f32.partialorder %v2412, 0.0
        %vm2746 = vcmp.ge.f32.partialorder %v2426, 0.0
        %vm2747 = vcmp.ge.f32.partialorder %v2440, 0.0
        %vm2748 = vcmp.ge.f32.partialorder %v2454, 0.0
        %vm2749 = vcmp.ge.f32.partialorder %v2468, 0.0
        %vm2750 = vcmp.ge.f32.partialorder %v2482, 0.0
        %vm2751 = vcmp.ge.f32.partialorder %v2496, 0.0
        %vm2752 = vcmp.ge.f32.partialorder %v2510, 0.0
        %vm2753 = vcmp.ge.f32.partialorder %v2524, 0.0
        %vm2754 = vcmp.ge.f32.partialorder %v2538, 0.0
        %vm2755 = vcmp.ge.f32.partialorder %v2552, 0.0
        %vm2756 = vcmp.ge.f32.partialorder %v2566, 0.0
        %vm2757 = vcmp.ge.f32.partialorder %v2580, 0.0
        %vm2758 = vcmp.ge.f32.partialorder %v2594, 0.0
        %vm2759 = vcmp.ge.f32.partialorder %v2608, 0.0
        %vm2760 = vcmp.ge.f32.partialorder %v2622, 0.0
        %vm2761 = vcmp.ge.f32.partialorder %v2636, 0.0
        %vm2762 = vcmp.ge.f32.partialorder %v2650, 0.0
        %vm2763 = vcmp.ge.f32.partialorder %v2664, 0.0
        %vm2764 = vcmp.ge.f32.partialorder %v2678, 0.0
        %vm2765 = vcmp.ge.f32.partialorder %v2692, 0.0
        %v2766 = vmul.f32 %v2200, 0.2
        %v2767 = vmul.f32 %v2214, 0.2
        %v2768 = vmul.f32 %v2228, 0.2
        %v2769 = vmul.f32 %v2242, 0.2
        %v2770 = vmul.f32 %v2256, 0.2
        %v2771 = vmul.f32 %v2270, 0.2
        %v2772 = vmul.f32 %v2284, 0.2
        %v2773 = vmul.f32 %v2298, 0.2
        %v2774 = vmul.f32 %v2312, 0.2
        %v2775 = vmul.f32 %v2326, 0.2
        %v2776 = vmul.f32 %v2340, 0.2
        %v2777 = vmul.f32 %v2354, 0.2
        %v2778 = vmul.f32 %v2368, 0.2
        %v2779 = vmul.f32 %v2382, 0.2
        %v2780 = vmul.f32 %v2396, 0.2
        %v2781 = vmul.f32 %v2410, 0.2
        %v2782 = vmul.f32 %v2424, 0.2
        %v2783 = vmul.f32 %v2438, 0.2
        %v2784 = vmul.f32 %v2452, 0.2
        %v2785 = vmul.f32 %v2466, 0.2
        %v2786 = vmul.f32 %v2480, 0.2
        %v2787 = vmul.f32 %v2494, 0.2
        %v2788 = vmul.f32 %v2508, 0.2
        %v2789 = vmul.f32 %v2522, 0.2
        %v2790 = vmul.f32 %v2536, 0.2
        %v2791 = vmul.f32 %v2550, 0.2
        %v2792 = vmul.f32 %v2564, 0.2
        %v2793 = vmul.f32 %v2578, 0.2
        %v2794 = vmul.f32 %v2592, 0.2
        %v2795 = vmul.f32 %v2606, 0.2
        %v2796 = vmul.f32 %v2620, 0.2
        %v2797 = vmul.f32 %v2634, 0.2
        %v2798 = vmul.f32 %v2648, 0.2
        %v2799 = vmul.f32 %v2662, 0.2
        %v2800 = vmul.f32 %v2676, 0.2
        %v2801 = vmul.f32 %v2690, 0.2
        %v2802 = vmul.f32 %v2202, 0.2
        %v2803 = vmul.f32 %v2216, 0.2
        %v2804 = vmul.f32 %v2230, 0.2
        %v2805 = vmul.f32 %v2244, 0.2
        %v2806 = vmul.f32 %v2258, 0.2
        %v2807 = vmul.f32 %v2272, 0.2
        %v2808 = vmul.f32 %v2286, 0.2
        %v2809 = vmul.f32 %v2300, 0.2
        %v2810 = vmul.f32 %v2314, 0.2
        %v2811 = vmul.f32 %v2328, 0.2
        %v2812 = vmul.f32 %v2342, 0.2
        %v2813 = vmul.f32 %v2356, 0.2
        %v2814 = vmul.f32 %v2370, 0.2
        %v2815 = vmul.f32 %v2384, 0.2
        %v2816 = vmul.f32 %v2398, 0.2
        %v2817 = vmul.f32 %v2412, 0.2
        %v2818 = vmul.f32 %v2426, 0.2
        %v2819 = vmul.f32 %v2440, 0.2
        %v2820 = vmul.f32 %v2454, 0.2
        %v2821 = vmul.f32 %v2468, 0.2
        %v2822 = vmul.f32 %v2482, 0.2
        %v2823 = vmul.f32 %v2496, 0.2
        %v2824 = vmul.f32 %v2510, 0.2
        %v2825 = vmul.f32 %v2524, 0.2
        %v2826 = vmul.f32 %v2538, 0.2
        %v2827 = vmul.f32 %v2552, 0.2
        %v2828 = vmul.f32 %v2566, 0.2
        %v2829 = vmul.f32 %v2580, 0.2
        %v2830 = vmul.f32 %v2594, 0.2
        %v2831 = vmul.f32 %v2608, 0.2
        %v2832 = vmul.f32 %v2622, 0.2
        %v2833 = vmul.f32 %v2636, 0.2
        %v2834 = vmul.f32 %v2650, 0.2
        %v2835 = vmul.f32 %v2664, 0.2
        %v2836 = vmul.f32 %v2678, 0.2
        %v2837 = vmul.f32 %v2692, 0.2
        %v2838 = vsel %vm2694, %v2200, %v2766
        %v2839 = vsel %vm2695, %v2214, %v2767
        %v2840 = vsel %vm2696, %v2228, %v2768
        %v2841 = vsel %vm2697, %v2242, %v2769
        %v2842 = vsel %vm2698, %v2256, %v2770
        %v2843 = vsel %vm2699, %v2270, %v2771
        %v2844 = vsel %vm2700, %v2284, %v2772
        %v2845 = vsel %vm2701, %v2298, %v2773
        %v2846 = vsel %vm2702, %v2312, %v2774
        %v2847 = vsel %vm2703, %v2326, %v2775
        %v2848 = vsel %vm2704, %v2340, %v2776
        %v2849 = vsel %vm2705, %v2354, %v2777
        %v2850 = vsel %vm2706, %v2368, %v2778
        %v2851 = vsel %vm2707, %v2382, %v2779
        %v2852 = vsel %vm2708, %v2396, %v2780
        %v2853 = vsel %vm2709, %v2410, %v2781
        %v2854 = vsel %vm2710, %v2424, %v2782
        %v2855 = vsel %vm2711, %v2438, %v2783
        %v2856 = vsel %vm2712, %v2452, %v2784
        %v2857 = vsel %vm2713, %v2466, %v2785
        %v2858 = vsel %vm2714, %v2480, %v2786
        %v2859 = vsel %vm2715, %v2494, %v2787
        %v2860 = vsel %vm2716, %v2508, %v2788
        %v2861 = vsel %vm2717, %v2522, %v2789
        %v2862 = vsel %vm2718, %v2536, %v2790
        %v2863 = vsel %vm2719, %v2550, %v2791
        %v2864 = vsel %vm2720, %v2564, %v2792
        %v2865 = vsel %vm2721, %v2578, %v2793
        %v2866 = vsel %vm2722, %v2592, %v2794
        %v2867 = vsel %vm2723, %v2606, %v2795
        %v2868 = vsel %vm2724, %v2620, %v2796
        %v2869 = vsel %vm2725, %v2634, %v2797
        %v2870 = vsel %vm2726, %v2648, %v2798
        %v2871 = vsel %vm2727, %v2662, %v2799
        %v2872 = vsel %vm2728, %v2676, %v2800
        %v2873 = vsel %vm2729, %v2690, %v2801
        %v2874 = vsel %vm2730, %v2202, %v2802
        %v2875 = vsel %vm2731, %v2216, %v2803
        %v2876 = vsel %vm2732, %v2230, %v2804
        %v2877 = vsel %vm2733, %v2244, %v2805
        %v2878 = vsel %vm2734, %v2258, %v2806
        %v2879 = vsel %vm2735, %v2272, %v2807
        %v2880 = vsel %vm2736, %v2286, %v2808
        %v2881 = vsel %vm2737, %v2300, %v2809
        %v2882 = vsel %vm2738, %v2314, %v2810
        %v2883 = vsel %vm2739, %v2328, %v2811
        %v2884 = vsel %vm2740, %v2342, %v2812
        %v2885 = vsel %vm2741, %v2356, %v2813
        %v2886 = vsel %vm2742, %v2370, %v2814
        %v2887 = vsel %vm2743, %v2384, %v2815
        %v2888 = vsel %vm2744, %v2398, %v2816
        %v2889 = vsel %vm2745, %v2412, %v2817
        %v2890 = vsel %vm2746, %v2426, %v2818
        %v2891 = vsel %vm2747, %v2440, %v2819
        %v2892 = vsel %vm2748, %v2454, %v2820
        %v2893 = vsel %vm2749, %v2468, %v2821
        %v2894 = vsel %vm2750, %v2482, %v2822
        %v2895 = vsel %vm2751, %v2496, %v2823
        %v2896 = vsel %vm2752, %v2510, %v2824
        %v2897 = vsel %vm2753, %v2524, %v2825
        %v2898 = vsel %vm2754, %v2538, %v2826
        %v2899 = vsel %vm2755, %v2552, %v2827
        %v2900 = vsel %vm2756, %v2566, %v2828
        %v2901 = vsel %vm2757, %v2580, %v2829
        %v2902 = vsel %vm2758, %v2594, %v2830
        %v2903 = vsel %vm2759, %v2608, %v2831
        %v2904 = vsel %vm2760, %v2622, %v2832
        %v2905 = vsel %vm2761, %v2636, %v2833
        %v2906 = vsel %vm2762, %v2650, %v2834
        %v2907 = vsel %vm2763, %v2664, %v2835
        %v2908 = vsel %vm2764, %v2678, %v2836
        %v2909 = vsel %vm2765, %v2692, %v2837
        %v2910 = vpack.c.bf16 %v2839, %v2838
        %v2911 = vpack.c.bf16 %v2841, %v2840
        %v2912 = vpack.c.bf16 %v2843, %v2842
        %v2913 = vpack.c.bf16 %v2845, %v2844
        %v2914 = vpack.c.bf16 %v2847, %v2846
        %v2915 = vpack.c.bf16 %v2849, %v2848
        %v2916 = vpack.c.bf16 %v2851, %v2850
        %v2917 = vpack.c.bf16 %v2853, %v2852
        %v2918 = vpack.c.bf16 %v2855, %v2854
        %v2919 = vpack.c.bf16 %v2857, %v2856
        %v2920 = vpack.c.bf16 %v2859, %v2858
        %v2921 = vpack.c.bf16 %v2861, %v2860
        %v2922 = vpack.c.bf16 %v2863, %v2862
        %v2923 = vpack.c.bf16 %v2865, %v2864
        %v2924 = vpack.c.bf16 %v2867, %v2866
        %v2925 = vpack.c.bf16 %v2869, %v2868
        %v2926 = vpack.c.bf16 %v2871, %v2870
        %v2927 = vpack.c.bf16 %v2873, %v2872
        %v2928 = vpack.c.bf16 %v2875, %v2874
        %v2929 = vpack.c.bf16 %v2877, %v2876
        %v2930 = vpack.c.bf16 %v2879, %v2878
        %v2931 = vpack.c.bf16 %v2881, %v2880
        %v2932 = vpack.c.bf16 %v2883, %v2882
        %v2933 = vpack.c.bf16 %v2885, %v2884
        %v2934 = vpack.c.bf16 %v2887, %v2886
        %v2935 = vpack.c.bf16 %v2889, %v2888
        %v2936 = vpack.c.bf16 %v2891, %v2890
        %v2937 = vpack.c.bf16 %v2893, %v2892
        %v2938 = vpack.c.bf16 %v2895, %v2894
        %v2939 = vpack.c.bf16 %v2897, %v2896
        %v2940 = vpack.c.bf16 %v2899, %v2898
        %v2941 = vpack.c.bf16 %v2901, %v2900
        %v2942 = vpack.c.bf16 %v2903, %v2902
        %v2943 = vpack.c.bf16 %v2905, %v2904
        %v2944 = vpack.c.bf16 %v2907, %v2906
        %v2945 = vpack.c.bf16 %v2909, %v2908
        %2946 = vst [vmem:[%s650] sm:$0xff] %v2910
        %2947 = vst [vmem:[%s650 + $0x8] sm:$0xff] %v2911
        %2948 = vst [vmem:[%s650 + $0x10] sm:$0xff] %v2912
        %2949 = vst [vmem:[%s650 + $0x18] sm:$0xff] %v2913
        %2950 = vst [vmem:[%s650 + $0x20] sm:$0xff] %v2914
        %2951 = vst [vmem:[%s650 + $0x28] sm:$0xff] %v2915
        %2952 = vst [vmem:[%s650 + $0x30] sm:$0xff] %v2916
        %2953 = vst [vmem:[%s650 + $0x38] sm:$0xff] %v2917
        %2954 = vst [vmem:[%s650 + $0x40] sm:$0xff] %v2918
        %2955 = vst [vmem:[%s650 + $0x48] sm:$0xff] %v2919
        %2956 = vst [vmem:[%s650 + $0x50] sm:$0xff] %v2920
        %2957 = vst [vmem:[%s650 + $0x58] sm:$0xff] %v2921
        %2958 = vst [vmem:[%s650 + $0x60] sm:$0xff] %v2922
        %2959 = vst [vmem:[%s650 + $0x68] sm:$0xff] %v2923
        %2960 = vst [vmem:[%s650 + $0x70] sm:$0xff] %v2924
        %2961 = vst [vmem:[%s650 + $0x78] sm:$0xff] %v2925
        %2962 = vst [vmem:[%s650 + $0x80] sm:$0xff] %v2926
        %2963 = vst [vmem:[%s650 + $0x88] sm:$0xff] %v2927
        %2964 = vst [vmem:[%s650 + $0x90] sm:$0xff] %v2928
        %2965 = vst [vmem:[%s650 + $0x98] sm:$0xff] %v2929
        %2966 = vst [vmem:[%s650 + $0xa0] sm:$0xff] %v2930
        %2967 = vst [vmem:[%s650 + $0xa8] sm:$0xff] %v2931
        %2968 = vst [vmem:[%s650 + $0xb0] sm:$0xff] %v2932
        %2969 = vst [vmem:[%s650 + $0xb8] sm:$0xff] %v2933
        %2970 = vst [vmem:[%s650 + $0xc0] sm:$0xff] %v2934
        %2971 = vst [vmem:[%s650 + $0xc8] sm:$0xff] %v2935
        %2972 = vst [vmem:[%s650 + $0xd0] sm:$0xff] %v2936
        %2973 = vst [vmem:[%s650 + $0xd8] sm:$0xff] %v2937
        %2974 = vst [vmem:[%s650 + $0xe0] sm:$0xff] %v2938
        %2975 = vst [vmem:[%s650 + $0xe8] sm:$0xff] %v2939
        %2976 = vst [vmem:[%s650 + $0xf0] sm:$0xff] %v2940
        %2977 = vst [vmem:[%s650 + $0xf8] sm:$0xff] %v2941
        %2978 = vst [vmem:[%s650 + $0x100] sm:$0xff] %v2942
        %2979 = vst [vmem:[%s650 + $0x108] sm:$0xff] %v2943
        %2980 = vst [vmem:[%s650 + $0x110] sm:$0xff] %v2944
        %2981 = vst [vmem:[%s650 + $0x118] sm:$0xff] %v2945
        %s2982 = sand.u32 %s90, 1
        %s2983 = sand.u32 %s90, 1
        %s2984 = smul.addr %s2983, 288
        %s2985 = scalar_lea.vmem [#allocation3], %s2984
        // Predicated region
        $region56: #{stn_forward_pallas.2} parent=50 // pred_check
          %p2986 = pneg %p100
        $region57: #{stn_forward_pallas.2} parent=50 // pred_check_branch
          %2988 = sbr.rel (%p2986) target = $region59
        $region58: #{stn_forward_pallas.2} parent=50 // pred_region
          %s2989 = smul.u32 36, %s14
          %s2990 = smul.addr %s2989, 4
          %s2991 = scalar_lea.vmem %s3, %s2990
          // Predicated region
          $region60: #{stn_forward_pallas.2} parent=58 // pred_check
            _
          $region61: #{stn_forward_pallas.2} parent=58 // pred_check_branch
            %2993 = sbr.rel (0) target = $region63
          $region62: #{stn_forward_pallas.2} parent=58 // pred_region
            // Predicated region
            $region64: #{stn_forward_pallas.2} parent=62 // pred_check
              _
            $region65: #{stn_forward_pallas.2} parent=62 // pred_check_branch
              %2995 = sbr.rel (0) target = $region67
            $region66: #{stn_forward_pallas.2} parent=62 // pred_region
              loop: start=0, step=1, limit=1
              $region68: #{stn_forward_pallas.2} parent=66 // loop_pre_header
                _
              $region69: #{stn_forward_pallas.2} parent=66 // loop_header
                %s2997 = sphi 0, %s3001
                %p2998 = scmp.ge.s32.totalorder %s2997, 1
                %s3002 = sphi %s2985, %s2985
                %s3003 = sphi %s2991, %s2991
              $region70: #{stn_forward_pallas.2} parent=66 // loop_header_branch
                %3000 = sbr.rel (%p2998) target = $region74
              $region71: #{stn_forward_pallas.2} parent=66 // loop_body
                %v3004 = vld [vmem:[%s3002] sm:$0xff]
                %3005 = vst [vmem:[%s3003] sm:$0xff] %v3004
                %v3006 = vld [vmem:[%s3002 + $0x8] sm:$0xff]
                %3007 = vst [vmem:[%s3003 + $0x8] sm:$0xff] %v3006
                %v3008 = vld [vmem:[%s3002 + $0x10] sm:$0xff]
                %3009 = vst [vmem:[%s3003 + $0x10] sm:$0xff] %v3008
                %v3010 = vld [vmem:[%s3002 + $0x18] sm:$0xff]
                %3011 = vst [vmem:[%s3003 + $0x18] sm:$0xff] %v3010
                %v3012 = vld [vmem:[%s3002 + $0x20] sm:$0xff]
                %3013 = vst [vmem:[%s3003 + $0x20] sm:$0xff] %v3012
                %v3014 = vld [vmem:[%s3002 + $0x28] sm:$0xff]
                %3015 = vst [vmem:[%s3003 + $0x28] sm:$0xff] %v3014
                %v3016 = vld [vmem:[%s3002 + $0x30] sm:$0xff]
                %3017 = vst [vmem:[%s3003 + $0x30] sm:$0xff] %v3016
                %v3018 = vld [vmem:[%s3002 + $0x38] sm:$0xff]
                %3019 = vst [vmem:[%s3003 + $0x38] sm:$0xff] %v3018
                %v3020 = vld [vmem:[%s3002 + $0x40] sm:$0xff]
                %3021 = vst [vmem:[%s3003 + $0x40] sm:$0xff] %v3020
                %v3022 = vld [vmem:[%s3002 + $0x48] sm:$0xff]
                %3023 = vst [vmem:[%s3003 + $0x48] sm:$0xff] %v3022
                %v3024 = vld [vmem:[%s3002 + $0x50] sm:$0xff]
                %3025 = vst [vmem:[%s3003 + $0x50] sm:$0xff] %v3024
                %v3026 = vld [vmem:[%s3002 + $0x58] sm:$0xff]
                %3027 = vst [vmem:[%s3003 + $0x58] sm:$0xff] %v3026
                %v3028 = vld [vmem:[%s3002 + $0x60] sm:$0xff]
                %3029 = vst [vmem:[%s3003 + $0x60] sm:$0xff] %v3028
                %v3030 = vld [vmem:[%s3002 + $0x68] sm:$0xff]
                %3031 = vst [vmem:[%s3003 + $0x68] sm:$0xff] %v3030
                %v3032 = vld [vmem:[%s3002 + $0x70] sm:$0xff]
                %3033 = vst [vmem:[%s3003 + $0x70] sm:$0xff] %v3032
                %v3034 = vld [vmem:[%s3002 + $0x78] sm:$0xff]
                %3035 = vst [vmem:[%s3003 + $0x78] sm:$0xff] %v3034
                %v3036 = vld [vmem:[%s3002 + $0x80] sm:$0xff]
                %3037 = vst [vmem:[%s3003 + $0x80] sm:$0xff] %v3036
                %v3038 = vld [vmem:[%s3002 + $0x88] sm:$0xff]
                %3039 = vst [vmem:[%s3003 + $0x88] sm:$0xff] %v3038
                %v3040 = vld [vmem:[%s3002 + $0x90] sm:$0xff]
                %3041 = vst [vmem:[%s3003 + $0x240] sm:$0xff] %v3040
                %v3042 = vld [vmem:[%s3002 + $0x98] sm:$0xff]
                %3043 = vst [vmem:[%s3003 + $0x248] sm:$0xff] %v3042
                %v3044 = vld [vmem:[%s3002 + $0xa0] sm:$0xff]
                %3045 = vst [vmem:[%s3003 + $0x250] sm:$0xff] %v3044
                %v3046 = vld [vmem:[%s3002 + $0xa8] sm:$0xff]
                %3047 = vst [vmem:[%s3003 + $0x258] sm:$0xff] %v3046
                %v3048 = vld [vmem:[%s3002 + $0xb0] sm:$0xff]
                %3049 = vst [vmem:[%s3003 + $0x260] sm:$0xff] %v3048
                %v3050 = vld [vmem:[%s3002 + $0xb8] sm:$0xff]
                %3051 = vst [vmem:[%s3003 + $0x268] sm:$0xff] %v3050
                %v3052 = vld [vmem:[%s3002 + $0xc0] sm:$0xff]
                %3053 = vst [vmem:[%s3003 + $0x270] sm:$0xff] %v3052
                %v3054 = vld [vmem:[%s3002 + $0xc8] sm:$0xff]
                %3055 = vst [vmem:[%s3003 + $0x278] sm:$0xff] %v3054
                %v3056 = vld [vmem:[%s3002 + $0xd0] sm:$0xff]
                %3057 = vst [vmem:[%s3003 + $0x280] sm:$0xff] %v3056
                %v3058 = vld [vmem:[%s3002 + $0xd8] sm:$0xff]
                %3059 = vst [vmem:[%s3003 + $0x288] sm:$0xff] %v3058
                %v3060 = vld [vmem:[%s3002 + $0xe0] sm:$0xff]
                %3061 = vst [vmem:[%s3003 + $0x290] sm:$0xff] %v3060
                %v3062 = vld [vmem:[%s3002 + $0xe8] sm:$0xff]
                %3063 = vst [vmem:[%s3003 + $0x298] sm:$0xff] %v3062
                %v3064 = vld [vmem:[%s3002 + $0xf0] sm:$0xff]
                %3065 = vst [vmem:[%s3003 + $0x2a0] sm:$0xff] %v3064
                %v3066 = vld [vmem:[%s3002 + $0xf8] sm:$0xff]
                %3067 = vst [vmem:[%s3003 + $0x2a8] sm:$0xff] %v3066
                %v3068 = vld [vmem:[%s3002 + $0x100] sm:$0xff]
                %3069 = vst [vmem:[%s3003 + $0x2b0] sm:$0xff] %v3068
                %v3070 = vld [vmem:[%s3002 + $0x108] sm:$0xff]
                %3071 = vst [vmem:[%s3003 + $0x2b8] sm:$0xff] %v3070
                %v3072 = vld [vmem:[%s3002 + $0x110] sm:$0xff]
                %3073 = vst [vmem:[%s3003 + $0x2c0] sm:$0xff] %v3072
                %v3074 = vld [vmem:[%s3002 + $0x118] sm:$0xff]
                %3075 = vst [vmem:[%s3003 + $0x2c8] sm:$0xff] %v3074
              $region72: #{stn_forward_pallas.2} parent=66 // loop_footer
                %s3001 = sadd.s32 1, %s2997
              $region73: #{stn_forward_pallas.2} parent=66 // loop_footer_branch
                %2996 = sbr.rel target = $region69
              $region74: #{stn_forward_pallas.2} parent=66 // loop_exit
                _
            $region67: #{stn_forward_pallas.2} parent=62 // pred_fallthru
              _
            // Predicated region
            $region75: #{stn_forward_pallas.2} parent=62 // pred_check
              _
            $region76: #{stn_forward_pallas.2} parent=62 // pred_check_branch
              %3077 = sbr.rel target = $region78
            $region77: #{stn_forward_pallas.2} parent=62 // pred_region
              _
            $region78: #{stn_forward_pallas.2} parent=62 // pred_fallthru
              _
          $region63: #{stn_forward_pallas.2} parent=58 // pred_fallthru
            _
          %3078 = vnop
        $region59: #{stn_forward_pallas.2} parent=50 // pred_fallthru
          _
      $region51: #{stn_forward_pallas.2} parent=5 // pred_fallthru
        _
      %p3079 = scmp.le.s32.totalorder 2, %s9
      // Predicated region
      $region79: #{stn_forward_pallas.2} parent=5 // pred_check
        %p3080 = pneg %p3079
      $region80: #{stn_forward_pallas.2} parent=5 // pred_check_branch
        %3082 = sbr.rel (%p3080) target = $region82
      $region81: #{stn_forward_pallas.2} parent=5 // pred_region
        %s3083 = ssub.s32 %s9, 2
        // Predicated region
        $region83: #{stn_forward_pallas.2} parent=81 // pred_check
          %p3084 = pneg %p106
        $region84: #{stn_forward_pallas.2} parent=81 // pred_check_branch
          %3086 = sbr.rel (%p3084) target = $region86
        $region85: #{stn_forward_pallas.2} parent=81 // pred_region
          %s3087 = sand.u32 %s91, 1
          %s3088 = sand.u32 %s91, 1
          %s3089 = smul.addr %s3088, 288
          %s3090 = scalar_lea.vmem [#allocation3], %s3089
        $region86: #{stn_forward_pallas.2} parent=81 // pred_fallthru
          _
      $region82: #{stn_forward_pallas.2} parent=5 // pred_fallthru
        _
    $region6: #{stn_forward_pallas.2} parent=1 // loop_footer
      %s13 = sadd.s32 1, %s9
    $region7: #{stn_forward_pallas.2} parent=1 // loop_footer_branch
      %8 = sbr.rel target = $region3
    $region8: #{stn_forward_pallas.2} parent=1 // loop_exit
      _

// kernel: stn_forward_pallas.3
$region0: #{stn_forward_pallas.3}
  #allocation0 [shape = 'u32[]', space=smem, size = 0x4, offset = 0x4, fixed_abs, tag = 'smem constant byte address 0x4 - core index']
  #allocation1 [shape = 'u32[72,128]{1,0:T(1,128)}', space=vmem, size = 0x9000, scoped, tag = 'internal scratch']
  %s0 = inlined_call_operand.vmem [shape: bf16[16,144], index: 0, kind: input, shape index: {}]
  %s1 = inlined_call_operand.vmem [shape: bf16[144,4608], index: 1, kind: input, shape index: {}]
  %s2 = inlined_call_operand.vmem [shape: f32[16,1], index: 2, kind: input, shape index: {}]
  %s3 = inlined_call_operand.vmem [shape: bf16[16,4608], index: 3, kind: output, shape index: {}]
  %s4 = sld [smem:[#allocation0]]
  $region87: #{stn_forward_pallas.3} parent=0
    _
  %s6 = ssub.s32 1, %s4
  %s7 = scalar_select 0, %s6, %s4
  $region1: #{stn_forward_pallas.3} parent=0
    #allocation2 [shape = 'u8[1327104]{0}', space=vmem, size = 0x144000, scoped, tag = 'input window, operand 1']
    #allocation3 [shape = 'u8[147456]{0}', space=vmem, size = 0x24000, scoped, tag = 'output window, operand 0']
    loop: start=0, step=1, limit=4
    $region2: #{stn_forward_pallas.3} parent=1 // loop_pre_header
      _
    $region3: #{stn_forward_pallas.3} parent=1 // loop_header
      %s9 = sphi 0, %s13
      %p10 = scmp.ge.s32.totalorder %s9, 4
      %s17 = sphi 0, %s17
      %s19 = sphi 0, %s17
      %s20 = sphi 0, %s19
      %s34 = sphi 0, %s20
      %s40 = sphi 0, %s42
      %s43 = sphi 0, %s40
      %s44 = sphi 0, %s43
      %s60 = sphi 0, %s44
      %s64 = sphi 0, %s64
      %s66 = sphi 0, %s64
      %s67 = sphi 0, %s66
      %s81 = sphi 0, %s67
      %s87 = sphi 0, %s89
      %s90 = sphi 0, %s87
      %s91 = sphi 0, %s90
      %s107 = sphi 0, %s91
    $region4: #{stn_forward_pallas.3} parent=1 // loop_header_branch
      %12 = sbr.rel (%p10) target = $region8
    $region5: #{stn_forward_pallas.3} parent=1 // loop_body
      %s14 = ssub.s32 %s9, 1
      %s15 = ssub.s32 %s9, 2
      %s16 = sadd.s32 %s9, 1
      %s18 = sadd.s32 %s17, 1
      %p21 = scmp.eq.s32.totalorder %s9, 1
      %p22 = scmp.ne.s32.totalorder %s17, %s19
      %p23 = scmp.eq.s32.totalorder %s9, 0
      %p24 = por %p22, %p23
      %p25 = scmp.ne.s32.totalorder %s17, %s19
      %p26 = scmp.eq.s32.totalorder %s14, 1
      %p27 = por %p25, %p26
      %p28 = scmp.ne.s32.totalorder %s19, %s20
      %p29 = scmp.eq.s32.totalorder %s14, 0
      %p30 = por %p28, %p29
      %p31 = scmp.ne.s32.totalorder %s19, %s20
      %p32 = scmp.eq.s32.totalorder %s15, 1
      %p33 = por %p31, %p32
      %p35 = scmp.ne.s32.totalorder %s20, %s34
      %p36 = scmp.eq.s32.totalorder %s15, 0
      %p37 = por %p35, %p36
      %s38 = ssub.s32 %s9, %s16
      %p39 = scmp.eq.s32.totalorder %s38, 0
      %s41 = sadd.s32 %s40, 1
      %s42 = scalar_select %p39, %s40, %s41
      %p45 = pneg %p39
      %p46 = scmp.eq.s32.totalorder %s9, 1
      %p47 = por %p45, %p46
      %p48 = scmp.ne.s32.totalorder %s40, %s43
      %p49 = scmp.eq.s32.totalorder %s9, 0
      %p50 = por %p48, %p49
      %p51 = scmp.ne.s32.totalorder %s40, %s43
      %p52 = scmp.eq.s32.totalorder %s14, 1
      %p53 = por %p51, %p52
      %p54 = scmp.ne.s32.totalorder %s43, %s44
      %p55 = scmp.eq.s32.totalorder %s14, 0
      %p56 = por %p54, %p55
      %p57 = scmp.ne.s32.totalorder %s43, %s44
      %p58 = scmp.eq.s32.totalorder %s15, 1
      %p59 = por %p57, %p58
      %p61 = scmp.ne.s32.totalorder %s44, %s60
      %p62 = scmp.eq.s32.totalorder %s15, 0
      %p63 = por %p61, %p62
      %s65 = sadd.s32 %s64, 1
      %p68 = scmp.eq.s32.totalorder %s9, 1
      %p69 = scmp.ne.s32.totalorder %s64, %s66
      %p70 = scmp.eq.s32.totalorder %s9, 0
      %p71 = por %p69, %p70
      %p72 = scmp.ne.s32.totalorder %s64, %s66
      %p73 = scmp.eq.s32.totalorder %s14, 1
      %p74 = por %p72, %p73
      %p75 = scmp.ne.s32.totalorder %s66, %s67
      %p76 = scmp.eq.s32.totalorder %s14, 0
      %p77 = por %p75, %p76
      %p78 = scmp.ne.s32.totalorder %s66, %s67
      %p79 = scmp.eq.s32.totalorder %s15, 1
      %p80 = por %p78, %p79
      %p82 = scmp.ne.s32.totalorder %s67, %s81
      %p83 = scmp.eq.s32.totalorder %s15, 0
      %p84 = por %p82, %p83
      %s85 = ssub.s32 %s9, %s16
      %p86 = scmp.eq.s32.totalorder %s85, 0
      %s88 = sadd.s32 %s87, 1
      %s89 = scalar_select %p86, %s87, %s88
      %p92 = pneg %p86
      %p93 = scmp.eq.s32.totalorder %s9, 1
      %p94 = por %p92, %p93
      %p95 = scmp.ne.s32.totalorder %s87, %s90
      %p96 = scmp.eq.s32.totalorder %s9, 0
      %p97 = por %p95, %p96
      %p98 = scmp.ne.s32.totalorder %s87, %s90
      %p99 = scmp.eq.s32.totalorder %s14, 1
      %p100 = por %p98, %p99
      %p101 = scmp.ne.s32.totalorder %s90, %s91
      %p102 = scmp.eq.s32.totalorder %s14, 0
      %p103 = por %p101, %p102
      %p104 = scmp.ne.s32.totalorder %s90, %s91
      %p105 = scmp.eq.s32.totalorder %s15, 1
      %p106 = por %p104, %p105
      %p108 = scmp.ne.s32.totalorder %s91, %s107
      %p109 = scmp.eq.s32.totalorder %s15, 0
      %p110 = por %p108, %p109
      %p111 = scmp.le.s32.totalorder 1, %s9
      %p112 = scmp.lt.s32.totalorder %s9, 3
      %p113 = pnand %p111, %p112
      %p114 = pneg %p113
      // Predicated region
      $region9: #{stn_forward_pallas.3} parent=5 // pred_check
        _
      $region10: #{stn_forward_pallas.3} parent=5 // pred_check_branch
        %116 = sbr.rel (%p113) target = $region12
      $region11: #{stn_forward_pallas.3} parent=5 // pred_region
        %s117 = ssub.s32 %s9, 1
        // Predicated region
        $region13: #{stn_forward_pallas.3} parent=11 // pred_check
          %p118 = pneg %p30
        $region14: #{stn_forward_pallas.3} parent=11 // pred_check_branch
          %120 = sbr.rel (%p118) target = $region16
        $region15: #{stn_forward_pallas.3} parent=11 // pred_region
          _
        $region16: #{stn_forward_pallas.3} parent=11 // pred_fallthru
          _
        // Predicated region
        $region17: #{stn_forward_pallas.3} parent=11 // pred_check
          %p121 = pneg %p77
        $region18: #{stn_forward_pallas.3} parent=11 // pred_check_branch
          %123 = sbr.rel (%p121) target = $region20
        $region19: #{stn_forward_pallas.3} parent=11 // pred_region
          _
        $region20: #{stn_forward_pallas.3} parent=11 // pred_fallthru
          _
      $region12: #{stn_forward_pallas.3} parent=5 // pred_fallthru
        _
      %p124 = scmp.lt.s32.totalorder %s9, 2
      // Predicated region
      $region21: #{stn_forward_pallas.3} parent=5 // pred_check
        %p125 = pneg %p124
      $region22: #{stn_forward_pallas.3} parent=5 // pred_check_branch
        %127 = sbr.rel (%p125) target = $region24
      $region23: #{stn_forward_pallas.3} parent=5 // pred_region
        // Predicated region
        $region25: #{stn_forward_pallas.3} parent=23 // pred_check
          %p128 = pneg %p50
        $region26: #{stn_forward_pallas.3} parent=23 // pred_check_branch
          %130 = sbr.rel (%p128) target = $region28
        $region27: #{stn_forward_pallas.3} parent=23 // pred_region
          %s131 = sand.u32 %s40, 1
          %s132 = sand.u32 %s40, 1
          %s133 = smul.addr %s132, 1296
          %s134 = scalar_lea.vmem [#allocation2], %s133
          %s135 = smul.u32 18, %s9
          %s136 = smul.addr %s135, 4
          %s137 = scalar_lea.vmem %s1, %s136
          // Predicated region
          $region29: #{stn_forward_pallas.3} parent=27 // pred_check
            _
          $region30: #{stn_forward_pallas.3} parent=27 // pred_check_branch
            %139 = sbr.rel (0) target = $region32
          $region31: #{stn_forward_pallas.3} parent=27 // pred_region
            // Predicated region
            $region33: #{stn_forward_pallas.3} parent=31 // pred_check
              _
            $region34: #{stn_forward_pallas.3} parent=31 // pred_check_branch
              %141 = sbr.rel (0) target = $region36
            $region35: #{stn_forward_pallas.3} parent=31 // pred_region
              loop: start=0, step=1, limit=1
              $region37: #{stn_forward_pallas.3} parent=35 // loop_pre_header
                _
              $region38: #{stn_forward_pallas.3} parent=35 // loop_header
                %s143 = sphi 0, %s147
                %p144 = scmp.ge.s32.totalorder %s143, 1
                %s148 = sphi %s137, %s137
                %s149 = sphi %s134, %s134
              $region39: #{stn_forward_pallas.3} parent=35 // loop_header_branch
                %146 = sbr.rel (%p144) target = $region43
              $region40: #{stn_forward_pallas.3} parent=35 // loop_body
                %v150 = vld [vmem:[%s148] sm:$0xff]
                %151 = vst [vmem:[%s149] sm:$0xff] %v150
                %v152 = vld [vmem:[%s148 + $0x8] sm:$0xff]
                %153 = vst [vmem:[%s149 + $0x8] sm:$0xff] %v152
                %v154 = vld [vmem:[%s148 + $0x10] sm:$0xff]
                %155 = vst [vmem:[%s149 + $0x10] sm:$0xff] %v154
                %v156 = vld [vmem:[%s148 + $0x18] sm:$0xff]
                %157 = vst [vmem:[%s149 + $0x18] sm:$0xff] %v156
                %v158 = vld [vmem:[%s148 + $0x20] sm:$0xff]
                %159 = vst [vmem:[%s149 + $0x20] sm:$0xff] %v158
                %v160 = vld [vmem:[%s148 + $0x28] sm:$0xff]
                %161 = vst [vmem:[%s149 + $0x28] sm:$0xff] %v160
                %v162 = vld [vmem:[%s148 + $0x30] sm:$0xff]
                %163 = vst [vmem:[%s149 + $0x30] sm:$0xff] %v162
                %v164 = vld [vmem:[%s148 + $0x38] sm:$0xff]
                %165 = vst [vmem:[%s149 + $0x38] sm:$0xff] %v164
                %v166 = vld [vmem:[%s148 + $0x40] sm:$0xff]
                %167 = vst [vmem:[%s149 + $0x40] sm:$0xff] %v166
                %v168 = vld [vmem:[%s148 + $0x90] sm:$0xff]
                %169 = vst [vmem:[%s149 + $0x48] sm:$0xff] %v168
                %v170 = vld [vmem:[%s148 + $0x98] sm:$0xff]
                %171 = vst [vmem:[%s149 + $0x50] sm:$0xff] %v170
                %v172 = vld [vmem:[%s148 + $0xa0] sm:$0xff]
                %173 = vst [vmem:[%s149 + $0x58] sm:$0xff] %v172
                %v174 = vld [vmem:[%s148 + $0xa8] sm:$0xff]
                %175 = vst [vmem:[%s149 + $0x60] sm:$0xff] %v174
                %v176 = vld [vmem:[%s148 + $0xb0] sm:$0xff]
                %177 = vst [vmem:[%s149 + $0x68] sm:$0xff] %v176
                %v178 = vld [vmem:[%s148 + $0xb8] sm:$0xff]
                %179 = vst [vmem:[%s149 + $0x70] sm:$0xff] %v178
                %v180 = vld [vmem:[%s148 + $0xc0] sm:$0xff]
                %181 = vst [vmem:[%s149 + $0x78] sm:$0xff] %v180
                %v182 = vld [vmem:[%s148 + $0xc8] sm:$0xff]
                %183 = vst [vmem:[%s149 + $0x80] sm:$0xff] %v182
                %v184 = vld [vmem:[%s148 + $0xd0] sm:$0xff]
                %185 = vst [vmem:[%s149 + $0x88] sm:$0xff] %v184
                %v186 = vld [vmem:[%s148 + $0x120] sm:$0xff]
                %187 = vst [vmem:[%s149 + $0x90] sm:$0xff] %v186
                %v188 = vld [vmem:[%s148 + $0x128] sm:$0xff]
                %189 = vst [vmem:[%s149 + $0x98] sm:$0xff] %v188
                %v190 = vld [vmem:[%s148 + $0x130] sm:$0xff]
                %191 = vst [vmem:[%s149 + $0xa0] sm:$0xff] %v190
                %v192 = vld [vmem:[%s148 + $0x138] sm:$0xff]
                %193 = vst [vmem:[%s149 + $0xa8] sm:$0xff] %v192
                %v194 = vld [vmem:[%s148 + $0x140] sm:$0xff]
                %195 = vst [vmem:[%s149 + $0xb0] sm:$0xff] %v194
                %v196 = vld [vmem:[%s148 + $0x148] sm:$0xff]
                %197 = vst [vmem:[%s149 + $0xb8] sm:$0xff] %v196
                %v198 = vld [vmem:[%s148 + $0x150] sm:$0xff]
                %199 = vst [vmem:[%s149 + $0xc0] sm:$0xff] %v198
                %v200 = vld [vmem:[%s148 + $0x158] sm:$0xff]
                %201 = vst [vmem:[%s149 + $0xc8] sm:$0xff] %v200
                %v202 = vld [vmem:[%s148 + $0x160] sm:$0xff]
                %203 = vst [vmem:[%s149 + $0xd0] sm:$0xff] %v202
                %v204 = vld [vmem:[%s148 + $0x1b0] sm:$0xff]
                %205 = vst [vmem:[%s149 + $0xd8] sm:$0xff] %v204
                %v206 = vld [vmem:[%s148 + $0x1b8] sm:$0xff]
                %207 = vst [vmem:[%s149 + $0xe0] sm:$0xff] %v206
                %v208 = vld [vmem:[%s148 + $0x1c0] sm:$0xff]
                %209 = vst [vmem:[%s149 + $0xe8] sm:$0xff] %v208
                %v210 = vld [vmem:[%s148 + $0x1c8] sm:$0xff]
                %211 = vst [vmem:[%s149 + $0xf0] sm:$0xff] %v210
                %v212 = vld [vmem:[%s148 + $0x1d0] sm:$0xff]
                %213 = vst [vmem:[%s149 + $0xf8] sm:$0xff] %v212
                %v214 = vld [vmem:[%s148 + $0x1d8] sm:$0xff]
                %215 = vst [vmem:[%s149 + $0x100] sm:$0xff] %v214
                %v216 = vld [vmem:[%s148 + $0x1e0] sm:$0xff]
                %217 = vst [vmem:[%s149 + $0x108] sm:$0xff] %v216
                %v218 = vld [vmem:[%s148 + $0x1e8] sm:$0xff]
                %219 = vst [vmem:[%s149 + $0x110] sm:$0xff] %v218
                %v220 = vld [vmem:[%s148 + $0x1f0] sm:$0xff]
                %221 = vst [vmem:[%s149 + $0x118] sm:$0xff] %v220
                %v222 = vld [vmem:[%s148 + $0x240] sm:$0xff]
                %223 = vst [vmem:[%s149 + $0x120] sm:$0xff] %v222
                %v224 = vld [vmem:[%s148 + $0x248] sm:$0xff]
                %225 = vst [vmem:[%s149 + $0x128] sm:$0xff] %v224
                %v226 = vld [vmem:[%s148 + $0x250] sm:$0xff]
                %227 = vst [vmem:[%s149 + $0x130] sm:$0xff] %v226
                %v228 = vld [vmem:[%s148 + $0x258] sm:$0xff]
                %229 = vst [vmem:[%s149 + $0x138] sm:$0xff] %v228
                %v230 = vld [vmem:[%s148 + $0x260] sm:$0xff]
                %231 = vst [vmem:[%s149 + $0x140] sm:$0xff] %v230
                %v232 = vld [vmem:[%s148 + $0x268] sm:$0xff]
                %233 = vst [vmem:[%s149 + $0x148] sm:$0xff] %v232
                %v234 = vld [vmem:[%s148 + $0x270] sm:$0xff]
                %235 = vst [vmem:[%s149 + $0x150] sm:$0xff] %v234
                %v236 = vld [vmem:[%s148 + $0x278] sm:$0xff]
                %237 = vst [vmem:[%s149 + $0x158] sm:$0xff] %v236
                %v238 = vld [vmem:[%s148 + $0x280] sm:$0xff]
                %239 = vst [vmem:[%s149 + $0x160] sm:$0xff] %v238
                %v240 = vld [vmem:[%s148 + $0x2d0] sm:$0xff]
                %241 = vst [vmem:[%s149 + $0x168] sm:$0xff] %v240
                %v242 = vld [vmem:[%s148 + $0x2d8] sm:$0xff]
                %243 = vst [vmem:[%s149 + $0x170] sm:$0xff] %v242
                %v244 = vld [vmem:[%s148 + $0x2e0] sm:$0xff]
                %245 = vst [vmem:[%s149 + $0x178] sm:$0xff] %v244
                %v246 = vld [vmem:[%s148 + $0x2e8] sm:$0xff]
                %247 = vst [vmem:[%s149 + $0x180] sm:$0xff] %v246
                %v248 = vld [vmem:[%s148 + $0x2f0] sm:$0xff]
                %249 = vst [vmem:[%s149 + $0x188] sm:$0xff] %v248
                %v250 = vld [vmem:[%s148 + $0x2f8] sm:$0xff]
                %251 = vst [vmem:[%s149 + $0x190] sm:$0xff] %v250
                %v252 = vld [vmem:[%s148 + $0x300] sm:$0xff]
                %253 = vst [vmem:[%s149 + $0x198] sm:$0xff] %v252
                %v254 = vld [vmem:[%s148 + $0x308] sm:$0xff]
                %255 = vst [vmem:[%s149 + $0x1a0] sm:$0xff] %v254
                %v256 = vld [vmem:[%s148 + $0x310] sm:$0xff]
                %257 = vst [vmem:[%s149 + $0x1a8] sm:$0xff] %v256
                %v258 = vld [vmem:[%s148 + $0x360] sm:$0xff]
                %259 = vst [vmem:[%s149 + $0x1b0] sm:$0xff] %v258
                %v260 = vld [vmem:[%s148 + $0x368] sm:$0xff]
                %261 = vst [vmem:[%s149 + $0x1b8] sm:$0xff] %v260
                %v262 = vld [vmem:[%s148 + $0x370] sm:$0xff]
                %263 = vst [vmem:[%s149 + $0x1c0] sm:$0xff] %v262
                %v264 = vld [vmem:[%s148 + $0x378] sm:$0xff]
                %265 = vst [vmem:[%s149 + $0x1c8] sm:$0xff] %v264
                %v266 = vld [vmem:[%s148 + $0x380] sm:$0xff]
                %267 = vst [vmem:[%s149 + $0x1d0] sm:$0xff] %v266
                %v268 = vld [vmem:[%s148 + $0x388] sm:$0xff]
                %269 = vst [vmem:[%s149 + $0x1d8] sm:$0xff] %v268
                %v270 = vld [vmem:[%s148 + $0x390] sm:$0xff]
                %271 = vst [vmem:[%s149 + $0x1e0] sm:$0xff] %v270
                %v272 = vld [vmem:[%s148 + $0x398] sm:$0xff]
                %273 = vst [vmem:[%s149 + $0x1e8] sm:$0xff] %v272
                %v274 = vld [vmem:[%s148 + $0x3a0] sm:$0xff]
                %275 = vst [vmem:[%s149 + $0x1f0] sm:$0xff] %v274
                %v276 = vld [vmem:[%s148 + $0x3f0] sm:$0xff]
                %277 = vst [vmem:[%s149 + $0x1f8] sm:$0xff] %v276
                %v278 = vld [vmem:[%s148 + $0x3f8] sm:$0xff]
                %279 = vst [vmem:[%s149 + $0x200] sm:$0xff] %v278
                %v280 = vld [vmem:[%s148 + $0x400] sm:$0xff]
                %281 = vst [vmem:[%s149 + $0x208] sm:$0xff] %v280
                %v282 = vld [vmem:[%s148 + $0x408] sm:$0xff]
                %283 = vst [vmem:[%s149 + $0x210] sm:$0xff] %v282
                %v284 = vld [vmem:[%s148 + $0x410] sm:$0xff]
                %285 = vst [vmem:[%s149 + $0x218] sm:$0xff] %v284
                %v286 = vld [vmem:[%s148 + $0x418] sm:$0xff]
                %287 = vst [vmem:[%s149 + $0x220] sm:$0xff] %v286
                %v288 = vld [vmem:[%s148 + $0x420] sm:$0xff]
                %289 = vst [vmem:[%s149 + $0x228] sm:$0xff] %v288
                %v290 = vld [vmem:[%s148 + $0x428] sm:$0xff]
                %291 = vst [vmem:[%s149 + $0x230] sm:$0xff] %v290
                %v292 = vld [vmem:[%s148 + $0x430] sm:$0xff]
                %293 = vst [vmem:[%s149 + $0x238] sm:$0xff] %v292
                %v294 = vld [vmem:[%s148 + $0x480] sm:$0xff]
                %295 = vst [vmem:[%s149 + $0x240] sm:$0xff] %v294
                %v296 = vld [vmem:[%s148 + $0x488] sm:$0xff]
                %297 = vst [vmem:[%s149 + $0x248] sm:$0xff] %v296
                %v298 = vld [vmem:[%s148 + $0x490] sm:$0xff]
                %299 = vst [vmem:[%s149 + $0x250] sm:$0xff] %v298
                %v300 = vld [vmem:[%s148 + $0x498] sm:$0xff]
                %301 = vst [vmem:[%s149 + $0x258] sm:$0xff] %v300
                %v302 = vld [vmem:[%s148 + $0x4a0] sm:$0xff]
                %303 = vst [vmem:[%s149 + $0x260] sm:$0xff] %v302
                %v304 = vld [vmem:[%s148 + $0x4a8] sm:$0xff]
                %305 = vst [vmem:[%s149 + $0x268] sm:$0xff] %v304
                %v306 = vld [vmem:[%s148 + $0x4b0] sm:$0xff]
                %307 = vst [vmem:[%s149 + $0x270] sm:$0xff] %v306
                %v308 = vld [vmem:[%s148 + $0x4b8] sm:$0xff]
                %309 = vst [vmem:[%s149 + $0x278] sm:$0xff] %v308
                %v310 = vld [vmem:[%s148 + $0x4c0] sm:$0xff]
                %311 = vst [vmem:[%s149 + $0x280] sm:$0xff] %v310
                %v312 = vld [vmem:[%s148 + $0x510] sm:$0xff]
                %313 = vst [vmem:[%s149 + $0x288] sm:$0xff] %v312
                %v314 = vld [vmem:[%s148 + $0x518] sm:$0xff]
                %315 = vst [vmem:[%s149 + $0x290] sm:$0xff] %v314
                %v316 = vld [vmem:[%s148 + $0x520] sm:$0xff]
                %317 = vst [vmem:[%s149 + $0x298] sm:$0xff] %v316
                %v318 = vld [vmem:[%s148 + $0x528] sm:$0xff]
                %319 = vst [vmem:[%s149 + $0x2a0] sm:$0xff] %v318
                %v320 = vld [vmem:[%s148 + $0x530] sm:$0xff]
                %321 = vst [vmem:[%s149 + $0x2a8] sm:$0xff] %v320
                %v322 = vld [vmem:[%s148 + $0x538] sm:$0xff]
                %323 = vst [vmem:[%s149 + $0x2b0] sm:$0xff] %v322
                %v324 = vld [vmem:[%s148 + $0x540] sm:$0xff]
                %325 = vst [vmem:[%s149 + $0x2b8] sm:$0xff] %v324
                %v326 = vld [vmem:[%s148 + $0x548] sm:$0xff]
                %327 = vst [vmem:[%s149 + $0x2c0] sm:$0xff] %v326
                %v328 = vld [vmem:[%s148 + $0x550] sm:$0xff]
                %329 = vst [vmem:[%s149 + $0x2c8] sm:$0xff] %v328
                %v330 = vld [vmem:[%s148 + $0x5a0] sm:$0xff]
                %331 = vst [vmem:[%s149 + $0x2d0] sm:$0xff] %v330
                %v332 = vld [vmem:[%s148 + $0x5a8] sm:$0xff]
                %333 = vst [vmem:[%s149 + $0x2d8] sm:$0xff] %v332
                %v334 = vld [vmem:[%s148 + $0x5b0] sm:$0xff]
                %335 = vst [vmem:[%s149 + $0x2e0] sm:$0xff] %v334
                %v336 = vld [vmem:[%s148 + $0x5b8] sm:$0xff]
                %337 = vst [vmem:[%s149 + $0x2e8] sm:$0xff] %v336
                %v338 = vld [vmem:[%s148 + $0x5c0] sm:$0xff]
                %339 = vst [vmem:[%s149 + $0x2f0] sm:$0xff] %v338
                %v340 = vld [vmem:[%s148 + $0x5c8] sm:$0xff]
                %341 = vst [vmem:[%s149 + $0x2f8] sm:$0xff] %v340
                %v342 = vld [vmem:[%s148 + $0x5d0] sm:$0xff]
                %343 = vst [vmem:[%s149 + $0x300] sm:$0xff] %v342
                %v344 = vld [vmem:[%s148 + $0x5d8] sm:$0xff]
                %345 = vst [vmem:[%s149 + $0x308] sm:$0xff] %v344
                %v346 = vld [vmem:[%s148 + $0x5e0] sm:$0xff]
                %347 = vst [vmem:[%s149 + $0x310] sm:$0xff] %v346
                %v348 = vld [vmem:[%s148 + $0x630] sm:$0xff]
                %349 = vst [vmem:[%s149 + $0x318] sm:$0xff] %v348
                %v350 = vld [vmem:[%s148 + $0x638] sm:$0xff]
                %351 = vst [vmem:[%s149 + $0x320] sm:$0xff] %v350
                %v352 = vld [vmem:[%s148 + $0x640] sm:$0xff]
                %353 = vst [vmem:[%s149 + $0x328] sm:$0xff] %v352
                %v354 = vld [vmem:[%s148 + $0x648] sm:$0xff]
                %355 = vst [vmem:[%s149 + $0x330] sm:$0xff] %v354
                %v356 = vld [vmem:[%s148 + $0x650] sm:$0xff]
                %357 = vst [vmem:[%s149 + $0x338] sm:$0xff] %v356
                %v358 = vld [vmem:[%s148 + $0x658] sm:$0xff]
                %359 = vst [vmem:[%s149 + $0x340] sm:$0xff] %v358
                %v360 = vld [vmem:[%s148 + $0x660] sm:$0xff]
                %361 = vst [vmem:[%s149 + $0x348] sm:$0xff] %v360
                %v362 = vld [vmem:[%s148 + $0x668] sm:$0xff]
                %363 = vst [vmem:[%s149 + $0x350] sm:$0xff] %v362
                %v364 = vld [vmem:[%s148 + $0x670] sm:$0xff]
                %365 = vst [vmem:[%s149 + $0x358] sm:$0xff] %v364
                %v366 = vld [vmem:[%s148 + $0x6c0] sm:$0xff]
                %367 = vst [vmem:[%s149 + $0x360] sm:$0xff] %v366
                %v368 = vld [vmem:[%s148 + $0x6c8] sm:$0xff]
                %369 = vst [vmem:[%s149 + $0x368] sm:$0xff] %v368
                %v370 = vld [vmem:[%s148 + $0x6d0] sm:$0xff]
                %371 = vst [vmem:[%s149 + $0x370] sm:$0xff] %v370
                %v372 = vld [vmem:[%s148 + $0x6d8] sm:$0xff]
                %373 = vst [vmem:[%s149 + $0x378] sm:$0xff] %v372
                %v374 = vld [vmem:[%s148 + $0x6e0] sm:$0xff]
                %375 = vst [vmem:[%s149 + $0x380] sm:$0xff] %v374
                %v376 = vld [vmem:[%s148 + $0x6e8] sm:$0xff]
                %377 = vst [vmem:[%s149 + $0x388] sm:$0xff] %v376
                %v378 = vld [vmem:[%s148 + $0x6f0] sm:$0xff]
                %379 = vst [vmem:[%s149 + $0x390] sm:$0xff] %v378
                %v380 = vld [vmem:[%s148 + $0x6f8] sm:$0xff]
                %381 = vst [vmem:[%s149 + $0x398] sm:$0xff] %v380
                %v382 = vld [vmem:[%s148 + $0x700] sm:$0xff]
                %383 = vst [vmem:[%s149 + $0x3a0] sm:$0xff] %v382
                %v384 = vld [vmem:[%s148 + $0x750] sm:$0xff]
                %385 = vst [vmem:[%s149 + $0x3a8] sm:$0xff] %v384
                %v386 = vld [vmem:[%s148 + $0x758] sm:$0xff]
                %387 = vst [vmem:[%s149 + $0x3b0] sm:$0xff] %v386
                %v388 = vld [vmem:[%s148 + $0x760] sm:$0xff]
                %389 = vst [vmem:[%s149 + $0x3b8] sm:$0xff] %v388
                %v390 = vld [vmem:[%s148 + $0x768] sm:$0xff]
                %391 = vst [vmem:[%s149 + $0x3c0] sm:$0xff] %v390
                %v392 = vld [vmem:[%s148 + $0x770] sm:$0xff]
                %393 = vst [vmem:[%s149 + $0x3c8] sm:$0xff] %v392
                %v394 = vld [vmem:[%s148 + $0x778] sm:$0xff]
                %395 = vst [vmem:[%s149 + $0x3d0] sm:$0xff] %v394
                %v396 = vld [vmem:[%s148 + $0x780] sm:$0xff]
                %397 = vst [vmem:[%s149 + $0x3d8] sm:$0xff] %v396
                %v398 = vld [vmem:[%s148 + $0x788] sm:$0xff]
                %399 = vst [vmem:[%s149 + $0x3e0] sm:$0xff] %v398
                %v400 = vld [vmem:[%s148 + $0x790] sm:$0xff]
                %401 = vst [vmem:[%s149 + $0x3e8] sm:$0xff] %v400
                %v402 = vld [vmem:[%s148 + $0x7e0] sm:$0xff]
                %403 = vst [vmem:[%s149 + $0x3f0] sm:$0xff] %v402
                %v404 = vld [vmem:[%s148 + $0x7e8] sm:$0xff]
                %405 = vst [vmem:[%s149 + $0x3f8] sm:$0xff] %v404
                %v406 = vld [vmem:[%s148 + $0x7f0] sm:$0xff]
                %407 = vst [vmem:[%s149 + $0x400] sm:$0xff] %v406
                %v408 = vld [vmem:[%s148 + $0x7f8] sm:$0xff]
                %409 = vst [vmem:[%s149 + $0x408] sm:$0xff] %v408
                %v410 = vld [vmem:[%s148 + $0x800] sm:$0xff]
                %411 = vst [vmem:[%s149 + $0x410] sm:$0xff] %v410
                %v412 = vld [vmem:[%s148 + $0x808] sm:$0xff]
                %413 = vst [vmem:[%s149 + $0x418] sm:$0xff] %v412
                %v414 = vld [vmem:[%s148 + $0x810] sm:$0xff]
                %415 = vst [vmem:[%s149 + $0x420] sm:$0xff] %v414
                %v416 = vld [vmem:[%s148 + $0x818] sm:$0xff]
                %417 = vst [vmem:[%s149 + $0x428] sm:$0xff] %v416
                %v418 = vld [vmem:[%s148 + $0x820] sm:$0xff]
                %419 = vst [vmem:[%s149 + $0x430] sm:$0xff] %v418
                %v420 = vld [vmem:[%s148 + $0x870] sm:$0xff]
                %421 = vst [vmem:[%s149 + $0x438] sm:$0xff] %v420
                %v422 = vld [vmem:[%s148 + $0x878] sm:$0xff]
                %423 = vst [vmem:[%s149 + $0x440] sm:$0xff] %v422
                %v424 = vld [vmem:[%s148 + $0x880] sm:$0xff]
                %425 = vst [vmem:[%s149 + $0x448] sm:$0xff] %v424
                %v426 = vld [vmem:[%s148 + $0x888] sm:$0xff]
                %427 = vst [vmem:[%s149 + $0x450] sm:$0xff] %v426
                %v428 = vld [vmem:[%s148 + $0x890] sm:$0xff]
                %429 = vst [vmem:[%s149 + $0x458] sm:$0xff] %v428
                %v430 = vld [vmem:[%s148 + $0x898] sm:$0xff]
                %431 = vst [vmem:[%s149 + $0x460] sm:$0xff] %v430
                %v432 = vld [vmem:[%s148 + $0x8a0] sm:$0xff]
                %433 = vst [vmem:[%s149 + $0x468] sm:$0xff] %v432
                %v434 = vld [vmem:[%s148 + $0x8a8] sm:$0xff]
                %435 = vst [vmem:[%s149 + $0x470] sm:$0xff] %v434
                %v436 = vld [vmem:[%s148 + $0x8b0] sm:$0xff]
                %437 = vst [vmem:[%s149 + $0x478] sm:$0xff] %v436
                %v438 = vld [vmem:[%s148 + $0x900] sm:$0xff]
                %439 = vst [vmem:[%s149 + $0x480] sm:$0xff] %v438
                %v440 = vld [vmem:[%s148 + $0x908] sm:$0xff]
                %441 = vst [vmem:[%s149 + $0x488] sm:$0xff] %v440
                %v442 = vld [vmem:[%s148 + $0x910] sm:$0xff]
                %443 = vst [vmem:[%s149 + $0x490] sm:$0xff] %v442
                %v444 = vld [vmem:[%s148 + $0x918] sm:$0xff]
                %445 = vst [vmem:[%s149 + $0x498] sm:$0xff] %v444
                %v446 = vld [vmem:[%s148 + $0x920] sm:$0xff]
                %447 = vst [vmem:[%s149 + $0x4a0] sm:$0xff] %v446
                %v448 = vld [vmem:[%s148 + $0x928] sm:$0xff]
                %449 = vst [vmem:[%s149 + $0x4a8] sm:$0xff] %v448
                %v450 = vld [vmem:[%s148 + $0x930] sm:$0xff]
                %451 = vst [vmem:[%s149 + $0x4b0] sm:$0xff] %v450
                %v452 = vld [vmem:[%s148 + $0x938] sm:$0xff]
                %453 = vst [vmem:[%s149 + $0x4b8] sm:$0xff] %v452
                %v454 = vld [vmem:[%s148 + $0x940] sm:$0xff]
                %455 = vst [vmem:[%s149 + $0x4c0] sm:$0xff] %v454
                %v456 = vld [vmem:[%s148 + $0x990] sm:$0xff]
                %457 = vst [vmem:[%s149 + $0x4c8] sm:$0xff] %v456
                %v458 = vld [vmem:[%s148 + $0x998] sm:$0xff]
                %459 = vst [vmem:[%s149 + $0x4d0] sm:$0xff] %v458
                %v460 = vld [vmem:[%s148 + $0x9a0] sm:$0xff]
                %461 = vst [vmem:[%s149 + $0x4d8] sm:$0xff] %v460
                %v462 = vld [vmem:[%s148 + $0x9a8] sm:$0xff]
                %463 = vst [vmem:[%s149 + $0x4e0] sm:$0xff] %v462
                %v464 = vld [vmem:[%s148 + $0x9b0] sm:$0xff]
                %465 = vst [vmem:[%s149 + $0x4e8] sm:$0xff] %v464
                %v466 = vld [vmem:[%s148 + $0x9b8] sm:$0xff]
                %467 = vst [vmem:[%s149 + $0x4f0] sm:$0xff] %v466
                %v468 = vld [vmem:[%s148 + $0x9c0] sm:$0xff]
                %469 = vst [vmem:[%s149 + $0x4f8] sm:$0xff] %v468
                %v470 = vld [vmem:[%s148 + $0x9c8] sm:$0xff]
                %471 = vst [vmem:[%s149 + $0x500] sm:$0xff] %v470
                %v472 = vld [vmem:[%s148 + $0x9d0] sm:$0xff]
                %473 = vst [vmem:[%s149 + $0x508] sm:$0xff] %v472
              $region41: #{stn_forward_pallas.3} parent=35 // loop_footer
                %s147 = sadd.s32 1, %s143
              $region42: #{stn_forward_pallas.3} parent=35 // loop_footer_branch
                %142 = sbr.rel target = $region38
              $region43: #{stn_forward_pallas.3} parent=35 // loop_exit
                _
            $region36: #{stn_forward_pallas.3} parent=31 // pred_fallthru
              _
            // Predicated region
            $region44: #{stn_forward_pallas.3} parent=31 // pred_check
              _
            $region45: #{stn_forward_pallas.3} parent=31 // pred_check_branch
              %475 = sbr.rel target = $region47
            $region46: #{stn_forward_pallas.3} parent=31 // pred_region
              _
            $region47: #{stn_forward_pallas.3} parent=31 // pred_fallthru
              _
          $region32: #{stn_forward_pallas.3} parent=27 // pred_fallthru
            _
          %476 = vnop
        $region28: #{stn_forward_pallas.3} parent=23 // pred_fallthru
          _
      $region24: #{stn_forward_pallas.3} parent=5 // pred_fallthru
        _
      %p477 = scmp.le.s32.totalorder 1, %s9
      %p478 = scmp.lt.s32.totalorder %s9, 3
      %p479 = pnand %p477, %p478
      %p480 = pneg %p479
      // Predicated region
      $region48: #{stn_forward_pallas.3} parent=5 // pred_check
        _
      $region49: #{stn_forward_pallas.3} parent=5 // pred_check_branch
        %482 = sbr.rel (%p479) target = $region51
      $region50: #{stn_forward_pallas.3} parent=5 // pred_region
        %s483 = ssub.s32 %s9, 1
        %s484 = sand.u32 %s43, 1
        %s485 = sand.u32 %s43, 1
        %s486 = smul.addr %s485, 1296
        %s487 = scalar_lea.vmem [#allocation2], %s486
        // Predicated region
        $region52: #{stn_forward_pallas.3} parent=50 // pred_check
          %p488 = pneg %p56
        $region53: #{stn_forward_pallas.3} parent=50 // pred_check_branch
          %490 = sbr.rel (%p488) target = $region55
        $region54: #{stn_forward_pallas.3} parent=50 // pred_region
          _
        $region55: #{stn_forward_pallas.3} parent=50 // pred_fallthru
          _
        %p491 = pneg %p30
        %p492 = pneg %p27
        %s493 = sand.u32 %s43, 1
        %s494 = sand.u32 %s43, 1
        %s495 = smul.addr %s494, 1296
        %s496 = scalar_lea.vmem [#allocation2], %s495
        %p497 = pneg %p56
        %p498 = pneg %p53
        %p499 = pneg %p77
        %p500 = pneg %p74
        %p501 = pneg %p103
        %p502 = pneg %p100
        %s503 = sand.u32 %s90, 1
        %s504 = sand.u32 %s90, 1
        %s505 = smul.addr %s504, 144
        %s506 = scalar_lea.vmem [#allocation3], %s505
        %s507 = smul.u32 18, %s14
        %s508 = smul.u32 18, %s14
        %v510 = vld [vmem:[%s0] sm:$0xff]
        %v511 = vld [vmem:[%s0 + $0x8] sm:$0xff]
        %v512 = vld [vmem:[%s487] sm:$0xff]
        %v513 = vld [vmem:[%s487 + $0x8] sm:$0xff]
        %v514 = vld [vmem:[%s487 + $0x10] sm:$0xff]
        %v515 = vld [vmem:[%s487 + $0x18] sm:$0xff]
        %v516 = vld [vmem:[%s487 + $0x20] sm:$0xff]
        %v517 = vld [vmem:[%s487 + $0x28] sm:$0xff]
        %v518 = vld [vmem:[%s487 + $0x30] sm:$0xff]
        %v519 = vld [vmem:[%s487 + $0x38] sm:$0xff]
        %v520 = vld [vmem:[%s487 + $0x40] sm:$0xff]
        %v521 = vld [vmem:[%s487 + $0x48] sm:$0xff]
        %v522 = vld [vmem:[%s487 + $0x50] sm:$0xff]
        %v523 = vld [vmem:[%s487 + $0x58] sm:$0xff]
        %v524 = vld [vmem:[%s487 + $0x60] sm:$0xff]
        %v525 = vld [vmem:[%s487 + $0x68] sm:$0xff]
        %v526 = vld [vmem:[%s487 + $0x70] sm:$0xff]
        %v527 = vld [vmem:[%s487 + $0x78] sm:$0xff]
        %v528 = vld [vmem:[%s487 + $0x80] sm:$0xff]
        %v529 = vld [vmem:[%s487 + $0x88] sm:$0xff]
        %v530 = vld [vmem:[%s487 + $0x90] sm:$0xff]
        %v531 = vld [vmem:[%s487 + $0x98] sm:$0xff]
        %v532 = vld [vmem:[%s487 + $0xa0] sm:$0xff]
        %v533 = vld [vmem:[%s487 + $0xa8] sm:$0xff]
        %v534 = vld [vmem:[%s487 + $0xb0] sm:$0xff]
        %v535 = vld [vmem:[%s487 + $0xb8] sm:$0xff]
        %v536 = vld [vmem:[%s487 + $0xc0] sm:$0xff]
        %v537 = vld [vmem:[%s487 + $0xc8] sm:$0xff]
        %v538 = vld [vmem:[%s487 + $0xd0] sm:$0xff]
        %v539 = vld [vmem:[%s487 + $0xd8] sm:$0xff]
        %v540 = vld [vmem:[%s487 + $0xe0] sm:$0xff]
        %v541 = vld [vmem:[%s487 + $0xe8] sm:$0xff]
        %v542 = vld [vmem:[%s487 + $0xf0] sm:$0xff]
        %v543 = vld [vmem:[%s487 + $0xf8] sm:$0xff]
        %v544 = vld [vmem:[%s487 + $0x100] sm:$0xff]
        %v545 = vld [vmem:[%s487 + $0x108] sm:$0xff]
        %v546 = vld [vmem:[%s487 + $0x110] sm:$0xff]
        %v547 = vld [vmem:[%s487 + $0x118] sm:$0xff]
        %v548 = vld [vmem:[%s487 + $0x120] sm:$0xff]
        %v549 = vld [vmem:[%s487 + $0x128] sm:$0xff]
        %v550 = vld [vmem:[%s487 + $0x130] sm:$0xff]
        %v551 = vld [vmem:[%s487 + $0x138] sm:$0xff]
        %v552 = vld [vmem:[%s487 + $0x140] sm:$0xff]
        %v553 = vld [vmem:[%s487 + $0x148] sm:$0xff]
        %v554 = vld [vmem:[%s487 + $0x150] sm:$0xff]
        %v555 = vld [vmem:[%s487 + $0x158] sm:$0xff]
        %v556 = vld [vmem:[%s487 + $0x160] sm:$0xff]
        %v557 = vld [vmem:[%s487 + $0x168] sm:$0xff]
        %v558 = vld [vmem:[%s487 + $0x170] sm:$0xff]
        %v559 = vld [vmem:[%s487 + $0x178] sm:$0xff]
        %v560 = vld [vmem:[%s487 + $0x180] sm:$0xff]
        %v561 = vld [vmem:[%s487 + $0x188] sm:$0xff]
        %v562 = vld [vmem:[%s487 + $0x190] sm:$0xff]
        %v563 = vld [vmem:[%s487 + $0x198] sm:$0xff]
        %v564 = vld [vmem:[%s487 + $0x1a0] sm:$0xff]
        %v565 = vld [vmem:[%s487 + $0x1a8] sm:$0xff]
        %v566 = vld [vmem:[%s487 + $0x1b0] sm:$0xff]
        %v567 = vld [vmem:[%s487 + $0x1b8] sm:$0xff]
        %v568 = vld [vmem:[%s487 + $0x1c0] sm:$0xff]
        %v569 = vld [vmem:[%s487 + $0x1c8] sm:$0xff]
        %v570 = vld [vmem:[%s487 + $0x1d0] sm:$0xff]
        %v571 = vld [vmem:[%s487 + $0x1d8] sm:$0xff]
        %v572 = vld [vmem:[%s487 + $0x1e0] sm:$0xff]
        %v573 = vld [vmem:[%s487 + $0x1e8] sm:$0xff]
        %v574 = vld [vmem:[%s487 + $0x1f0] sm:$0xff]
        %v575 = vld [vmem:[%s487 + $0x1f8] sm:$0xff]
        %v576 = vld [vmem:[%s487 + $0x200] sm:$0xff]
        %v577 = vld [vmem:[%s487 + $0x208] sm:$0xff]
        %v578 = vld [vmem:[%s487 + $0x210] sm:$0xff]
        %v579 = vld [vmem:[%s487 + $0x218] sm:$0xff]
        %v580 = vld [vmem:[%s487 + $0x220] sm:$0xff]
        %v581 = vld [vmem:[%s487 + $0x228] sm:$0xff]
        %v582 = vld [vmem:[%s487 + $0x230] sm:$0xff]
        %v583 = vld [vmem:[%s487 + $0x238] sm:$0xff]
        %v584 = vld [vmem:[%s487 + $0x240] sm:$0xff]
        %v585 = vld [vmem:[%s487 + $0x248] sm:$0xff]
        %v586 = vld [vmem:[%s487 + $0x250] sm:$0xff]
        %v587 = vld [vmem:[%s487 + $0x258] sm:$0xff]
        %v588 = vld [vmem:[%s487 + $0x260] sm:$0xff]
        %v589 = vld [vmem:[%s487 + $0x268] sm:$0xff]
        %v590 = vld [vmem:[%s487 + $0x270] sm:$0xff]
        %v591 = vld [vmem:[%s487 + $0x278] sm:$0xff]
        %v592 = vld [vmem:[%s487 + $0x280] sm:$0xff]
        %v593 = vld [vmem:[%s487 + $0x288] sm:$0xff]
        %v594 = vld [vmem:[%s487 + $0x290] sm:$0xff]
        %v595 = vld [vmem:[%s487 + $0x298] sm:$0xff]
        %v596 = vld [vmem:[%s487 + $0x2a0] sm:$0xff]
        %v597 = vld [vmem:[%s487 + $0x2a8] sm:$0xff]
        %v598 = vld [vmem:[%s487 + $0x2b0] sm:$0xff]
        %v599 = vld [vmem:[%s487 + $0x2b8] sm:$0xff]
        %v600 = vld [vmem:[%s487 + $0x2c0] sm:$0xff]
        %v601 = vld [vmem:[%s487 + $0x2c8] sm:$0xff]
        %v602 = vld [vmem:[%s487 + $0x2d0] sm:$0xff]
        %v603 = vld [vmem:[%s487 + $0x2d8] sm:$0xff]
        %v604 = vld [vmem:[%s487 + $0x2e0] sm:$0xff]
        %v605 = vld [vmem:[%s487 + $0x2e8] sm:$0xff]
        %v606 = vld [vmem:[%s487 + $0x2f0] sm:$0xff]
        %v607 = vld [vmem:[%s487 + $0x2f8] sm:$0xff]
        %v608 = vld [vmem:[%s487 + $0x300] sm:$0xff]
        %v609 = vld [vmem:[%s487 + $0x308] sm:$0xff]
        %v610 = vld [vmem:[%s487 + $0x310] sm:$0xff]
        %v611 = vld [vmem:[%s487 + $0x318] sm:$0xff]
        %v612 = vld [vmem:[%s487 + $0x320] sm:$0xff]
        %v613 = vld [vmem:[%s487 + $0x328] sm:$0xff]
        %v614 = vld [vmem:[%s487 + $0x330] sm:$0xff]
        %v615 = vld [vmem:[%s487 + $0x338] sm:$0xff]
        %v616 = vld [vmem:[%s487 + $0x340] sm:$0xff]
        %v617 = vld [vmem:[%s487 + $0x348] sm:$0xff]
        %v618 = vld [vmem:[%s487 + $0x350] sm:$0xff]
        %v619 = vld [vmem:[%s487 + $0x358] sm:$0xff]
        %v620 = vld [vmem:[%s487 + $0x360] sm:$0xff]
        %v621 = vld [vmem:[%s487 + $0x368] sm:$0xff]
        %v622 = vld [vmem:[%s487 + $0x370] sm:$0xff]
        %v623 = vld [vmem:[%s487 + $0x378] sm:$0xff]
        %v624 = vld [vmem:[%s487 + $0x380] sm:$0xff]
        %v625 = vld [vmem:[%s487 + $0x388] sm:$0xff]
        %v626 = vld [vmem:[%s487 + $0x390] sm:$0xff]
        %v627 = vld [vmem:[%s487 + $0x398] sm:$0xff]
        %v628 = vld [vmem:[%s487 + $0x3a0] sm:$0xff]
        %v629 = vld [vmem:[%s487 + $0x3a8] sm:$0xff]
        %v630 = vld [vmem:[%s487 + $0x3b0] sm:$0xff]
        %v631 = vld [vmem:[%s487 + $0x3b8] sm:$0xff]
        %v632 = vld [vmem:[%s487 + $0x3c0] sm:$0xff]
        %v633 = vld [vmem:[%s487 + $0x3c8] sm:$0xff]
        %v634 = vld [vmem:[%s487 + $0x3d0] sm:$0xff]
        %v635 = vld [vmem:[%s487 + $0x3d8] sm:$0xff]
        %v636 = vld [vmem:[%s487 + $0x3e0] sm:$0xff]
        %v637 = vld [vmem:[%s487 + $0x3e8] sm:$0xff]
        %v638 = vld [vmem:[%s487 + $0x3f0] sm:$0xff]
        %v639 = vld [vmem:[%s487 + $0x3f8] sm:$0xff]
        %v640 = vld [vmem:[%s487 + $0x400] sm:$0xff]
        %v641 = vld [vmem:[%s487 + $0x408] sm:$0xff]
        %v642 = vld [vmem:[%s487 + $0x410] sm:$0xff]
        %v643 = vld [vmem:[%s487 + $0x418] sm:$0xff]
        %v644 = vld [vmem:[%s487 + $0x420] sm:$0xff]
        %v645 = vld [vmem:[%s487 + $0x428] sm:$0xff]
        %v646 = vld [vmem:[%s487 + $0x430] sm:$0xff]
        %v647 = vld [vmem:[%s487 + $0x438] sm:$0xff]
        %v648 = vld [vmem:[%s487 + $0x440] sm:$0xff]
        %v649 = vld [vmem:[%s487 + $0x448] sm:$0xff]
        %v650 = vld [vmem:[%s487 + $0x450] sm:$0xff]
        %v651 = vld [vmem:[%s487 + $0x458] sm:$0xff]
        %v652 = vld [vmem:[%s487 + $0x460] sm:$0xff]
        %v653 = vld [vmem:[%s487 + $0x468] sm:$0xff]
        %v654 = vld [vmem:[%s487 + $0x470] sm:$0xff]
        %v655 = vld [vmem:[%s487 + $0x478] sm:$0xff]
        %v656 = vld [vmem:[%s487 + $0x480] sm:$0xff]
        %v657 = vld [vmem:[%s487 + $0x488] sm:$0xff]
        %v658 = vld [vmem:[%s487 + $0x490] sm:$0xff]
        %v659 = vld [vmem:[%s487 + $0x498] sm:$0xff]
        %v660 = vld [vmem:[%s487 + $0x4a0] sm:$0xff]
        %v661 = vld [vmem:[%s487 + $0x4a8] sm:$0xff]
        %v662 = vld [vmem:[%s487 + $0x4b0] sm:$0xff]
        %v663 = vld [vmem:[%s487 + $0x4b8] sm:$0xff]
        %v664 = vld [vmem:[%s487 + $0x4c0] sm:$0xff]
        %v665 = vld [vmem:[%s487 + $0x4c8] sm:$0xff]
        %v666 = vld [vmem:[%s487 + $0x4d0] sm:$0xff]
        %v667 = vld [vmem:[%s487 + $0x4d8] sm:$0xff]
        %v668 = vld [vmem:[%s487 + $0x4e0] sm:$0xff]
        %v669 = vld [vmem:[%s487 + $0x4e8] sm:$0xff]
        %v670 = vld [vmem:[%s487 + $0x4f0] sm:$0xff]
        %v671 = vld [vmem:[%s487 + $0x4f8] sm:$0xff]
        %v672 = vld [vmem:[%s487 + $0x500] sm:$0xff]
        %v673 = vld [vmem:[%s487 + $0x508] sm:$0xff]
        %v674 = vld [vmem:[%s2] sm:$0xff]
        %v675 = vld [vmem:[%s2 + $0x8] sm:$0xff]
        %677 = vset.pattern.permute.xlu0 0
        %678 = vperm.xlu0 %677, %v674
        %v679 = vpop.permute.xlu0 %678
        %682 = vset.pattern.permute.xlu0 0
        %683 = vperm.xlu0 %682, %v675
        %v684 = vpop.permute.xlu0 %683
        %v688 = vunpack.c.l.b16 %v510
        %v689 = vunpack.c.h.b16 %v510
        %v690 = vunpack.c.l.b16 %v511
        %v691 = vunpack.c.h.b16 %v511
        %v692 = vpack.c.b16 %v690, %v688
        %v693 = vpack.c.b16 %v691, %v689
        %v857 = vunpack.c.l.b16 %v512
        %v858 = vunpack.c.h.b16 %v512
        %v859 = vunpack.c.l.b16 %v513
        %v860 = vunpack.c.h.b16 %v513
        %v861 = vunpack.c.l.b16 %v514
        %v862 = vunpack.c.h.b16 %v514
        %v863 = vunpack.c.l.b16 %v515
        %v864 = vunpack.c.h.b16 %v515
        %v865 = vunpack.c.l.b16 %v516
        %v866 = vunpack.c.h.b16 %v516
        %v867 = vunpack.c.l.b16 %v517
        %v868 = vunpack.c.h.b16 %v517
        %v869 = vunpack.c.l.b16 %v518
        %v870 = vunpack.c.h.b16 %v518
        %v871 = vunpack.c.l.b16 %v519
        %v872 = vunpack.c.h.b16 %v519
        %v873 = vunpack.c.l.b16 %v520
        %v874 = vunpack.c.h.b16 %v520
        %v875 = vunpack.c.l.b16 %v521
        %v876 = vunpack.c.h.b16 %v521
        %v877 = vunpack.c.l.b16 %v522
        %v878 = vunpack.c.h.b16 %v522
        %v879 = vunpack.c.l.b16 %v523
        %v880 = vunpack.c.h.b16 %v523
        %v881 = vunpack.c.l.b16 %v524
        %v882 = vunpack.c.h.b16 %v524
        %v883 = vunpack.c.l.b16 %v525
        %v884 = vunpack.c.h.b16 %v525
        %v885 = vunpack.c.l.b16 %v526
        %v886 = vunpack.c.h.b16 %v526
        %v887 = vunpack.c.l.b16 %v527
        %v888 = vunpack.c.h.b16 %v527
        %v889 = vunpack.c.l.b16 %v528
        %v890 = vunpack.c.h.b16 %v528
        %v891 = vunpack.c.l.b16 %v529
        %v892 = vunpack.c.h.b16 %v529
        %v893 = vunpack.c.l.b16 %v530
        %v894 = vunpack.c.h.b16 %v530
        %v895 = vunpack.c.l.b16 %v531
        %v896 = vunpack.c.h.b16 %v531
        %v897 = vunpack.c.l.b16 %v532
        %v898 = vunpack.c.h.b16 %v532
        %v899 = vunpack.c.l.b16 %v533
        %v900 = vunpack.c.h.b16 %v533
        %v901 = vunpack.c.l.b16 %v534
        %v902 = vunpack.c.h.b16 %v534
        %v903 = vunpack.c.l.b16 %v535
        %v904 = vunpack.c.h.b16 %v535
        %v905 = vunpack.c.l.b16 %v536
        %v906 = vunpack.c.h.b16 %v536
        %v907 = vunpack.c.l.b16 %v537
        %v908 = vunpack.c.h.b16 %v537
        %v909 = vunpack.c.l.b16 %v538
        %v910 = vunpack.c.h.b16 %v538
        %v911 = vunpack.c.l.b16 %v539
        %v912 = vunpack.c.h.b16 %v539
        %v913 = vunpack.c.l.b16 %v540
        %v914 = vunpack.c.h.b16 %v540
        %v915 = vunpack.c.l.b16 %v541
        %v916 = vunpack.c.h.b16 %v541
        %v917 = vunpack.c.l.b16 %v542
        %v918 = vunpack.c.h.b16 %v542
        %v919 = vunpack.c.l.b16 %v543
        %v920 = vunpack.c.h.b16 %v543
        %v921 = vunpack.c.l.b16 %v544
        %v922 = vunpack.c.h.b16 %v544
        %v923 = vunpack.c.l.b16 %v545
        %v924 = vunpack.c.h.b16 %v545
        %v925 = vunpack.c.l.b16 %v546
        %v926 = vunpack.c.h.b16 %v546
        %v927 = vunpack.c.l.b16 %v547
        %v928 = vunpack.c.h.b16 %v547
        %v929 = vunpack.c.l.b16 %v548
        %v930 = vunpack.c.h.b16 %v548
        %v931 = vunpack.c.l.b16 %v549
        %v932 = vunpack.c.h.b16 %v549
        %v933 = vunpack.c.l.b16 %v550
        %v934 = vunpack.c.h.b16 %v550
        %v935 = vunpack.c.l.b16 %v551
        %v936 = vunpack.c.h.b16 %v551
        %v937 = vunpack.c.l.b16 %v552
        %v938 = vunpack.c.h.b16 %v552
        %v939 = vunpack.c.l.b16 %v553
        %v940 = vunpack.c.h.b16 %v553
        %v941 = vunpack.c.l.b16 %v554
        %v942 = vunpack.c.h.b16 %v554
        %v943 = vunpack.c.l.b16 %v555
        %v944 = vunpack.c.h.b16 %v555
        %v945 = vunpack.c.l.b16 %v556
        %v946 = vunpack.c.h.b16 %v556
        %v947 = vunpack.c.l.b16 %v557
        %v948 = vunpack.c.h.b16 %v557
        %v949 = vunpack.c.l.b16 %v558
        %v950 = vunpack.c.h.b16 %v558
        %v951 = vunpack.c.l.b16 %v559
        %v952 = vunpack.c.h.b16 %v559
        %v953 = vunpack.c.l.b16 %v560
        %v954 = vunpack.c.h.b16 %v560
        %v955 = vunpack.c.l.b16 %v561
        %v956 = vunpack.c.h.b16 %v561
        %v957 = vunpack.c.l.b16 %v562
        %v958 = vunpack.c.h.b16 %v562
        %v959 = vunpack.c.l.b16 %v563
        %v960 = vunpack.c.h.b16 %v563
        %v961 = vunpack.c.l.b16 %v564
        %v962 = vunpack.c.h.b16 %v564
        %v963 = vunpack.c.l.b16 %v565
        %v964 = vunpack.c.h.b16 %v565
        %v965 = vunpack.c.l.b16 %v566
        %v966 = vunpack.c.h.b16 %v566
        %v967 = vunpack.c.l.b16 %v567
        %v968 = vunpack.c.h.b16 %v567
        %v969 = vunpack.c.l.b16 %v568
        %v970 = vunpack.c.h.b16 %v568
        %v971 = vunpack.c.l.b16 %v569
        %v972 = vunpack.c.h.b16 %v569
        %v973 = vunpack.c.l.b16 %v570
        %v974 = vunpack.c.h.b16 %v570
        %v975 = vunpack.c.l.b16 %v571
        %v976 = vunpack.c.h.b16 %v571
        %v977 = vunpack.c.l.b16 %v572
        %v978 = vunpack.c.h.b16 %v572
        %v979 = vunpack.c.l.b16 %v573
        %v980 = vunpack.c.h.b16 %v573
        %v981 = vunpack.c.l.b16 %v574
        %v982 = vunpack.c.h.b16 %v574
        %v983 = vunpack.c.l.b16 %v575
        %v984 = vunpack.c.h.b16 %v575
        %v985 = vunpack.c.l.b16 %v576
        %v986 = vunpack.c.h.b16 %v576
        %v987 = vunpack.c.l.b16 %v577
        %v988 = vunpack.c.h.b16 %v577
        %v989 = vunpack.c.l.b16 %v578
        %v990 = vunpack.c.h.b16 %v578
        %v991 = vunpack.c.l.b16 %v579
        %v992 = vunpack.c.h.b16 %v579
        %v993 = vunpack.c.l.b16 %v580
        %v994 = vunpack.c.h.b16 %v580
        %v995 = vunpack.c.l.b16 %v581
        %v996 = vunpack.c.h.b16 %v581
        %v997 = vunpack.c.l.b16 %v582
        %v998 = vunpack.c.h.b16 %v582
        %v999 = vunpack.c.l.b16 %v583
        %v1000 = vunpack.c.h.b16 %v583
        %v1001 = vunpack.c.l.b16 %v584
        %v1002 = vunpack.c.h.b16 %v584
        %v1003 = vunpack.c.l.b16 %v585
        %v1004 = vunpack.c.h.b16 %v585
        %v1005 = vunpack.c.l.b16 %v586
        %v1006 = vunpack.c.h.b16 %v586
        %v1007 = vunpack.c.l.b16 %v587
        %v1008 = vunpack.c.h.b16 %v587
        %v1009 = vunpack.c.l.b16 %v588
        %v1010 = vunpack.c.h.b16 %v588
        %v1011 = vunpack.c.l.b16 %v589
        %v1012 = vunpack.c.h.b16 %v589
        %v1013 = vunpack.c.l.b16 %v590
        %v1014 = vunpack.c.h.b16 %v590
        %v1015 = vunpack.c.l.b16 %v591
        %v1016 = vunpack.c.h.b16 %v591
        %v1017 = vunpack.c.l.b16 %v592
        %v1018 = vunpack.c.h.b16 %v592
        %v1019 = vunpack.c.l.b16 %v593
        %v1020 = vunpack.c.h.b16 %v593
        %v1021 = vunpack.c.l.b16 %v594
        %v1022 = vunpack.c.h.b16 %v594
        %v1023 = vunpack.c.l.b16 %v595
        %v1024 = vunpack.c.h.b16 %v595
        %v1025 = vunpack.c.l.b16 %v596
        %v1026 = vunpack.c.h.b16 %v596
        %v1027 = vunpack.c.l.b16 %v597
        %v1028 = vunpack.c.h.b16 %v597
        %v1029 = vunpack.c.l.b16 %v598
        %v1030 = vunpack.c.h.b16 %v598
        %v1031 = vunpack.c.l.b16 %v599
        %v1032 = vunpack.c.h.b16 %v599
        %v1033 = vunpack.c.l.b16 %v600
        %v1034 = vunpack.c.h.b16 %v600
        %v1035 = vunpack.c.l.b16 %v601
        %v1036 = vunpack.c.h.b16 %v601
        %v1037 = vunpack.c.l.b16 %v602
        %v1038 = vunpack.c.h.b16 %v602
        %v1039 = vunpack.c.l.b16 %v603
        %v1040 = vunpack.c.h.b16 %v603
        %v1041 = vunpack.c.l.b16 %v604
        %v1042 = vunpack.c.h.b16 %v604
        %v1043 = vunpack.c.l.b16 %v605
        %v1044 = vunpack.c.h.b16 %v605
        %v1045 = vunpack.c.l.b16 %v606
        %v1046 = vunpack.c.h.b16 %v606
        %v1047 = vunpack.c.l.b16 %v607
        %v1048 = vunpack.c.h.b16 %v607
        %v1049 = vunpack.c.l.b16 %v608
        %v1050 = vunpack.c.h.b16 %v608
        %v1051 = vunpack.c.l.b16 %v609
        %v1052 = vunpack.c.h.b16 %v609
        %v1053 = vunpack.c.l.b16 %v610
        %v1054 = vunpack.c.h.b16 %v610
        %v1055 = vunpack.c.l.b16 %v611
        %v1056 = vunpack.c.h.b16 %v611
        %v1057 = vunpack.c.l.b16 %v612
        %v1058 = vunpack.c.h.b16 %v612
        %v1059 = vunpack.c.l.b16 %v613
        %v1060 = vunpack.c.h.b16 %v613
        %v1061 = vunpack.c.l.b16 %v614
        %v1062 = vunpack.c.h.b16 %v614
        %v1063 = vunpack.c.l.b16 %v615
        %v1064 = vunpack.c.h.b16 %v615
        %v1065 = vunpack.c.l.b16 %v616
        %v1066 = vunpack.c.h.b16 %v616
        %v1067 = vunpack.c.l.b16 %v617
        %v1068 = vunpack.c.h.b16 %v617
        %v1069 = vunpack.c.l.b16 %v618
        %v1070 = vunpack.c.h.b16 %v618
        %v1071 = vunpack.c.l.b16 %v619
        %v1072 = vunpack.c.h.b16 %v619
        %v1073 = vunpack.c.l.b16 %v620
        %v1074 = vunpack.c.h.b16 %v620
        %v1075 = vunpack.c.l.b16 %v621
        %v1076 = vunpack.c.h.b16 %v621
        %v1077 = vunpack.c.l.b16 %v622
        %v1078 = vunpack.c.h.b16 %v622
        %v1079 = vunpack.c.l.b16 %v623
        %v1080 = vunpack.c.h.b16 %v623
        %v1081 = vunpack.c.l.b16 %v624
        %v1082 = vunpack.c.h.b16 %v624
        %v1083 = vunpack.c.l.b16 %v625
        %v1084 = vunpack.c.h.b16 %v625
        %v1085 = vunpack.c.l.b16 %v626
        %v1086 = vunpack.c.h.b16 %v626
        %v1087 = vunpack.c.l.b16 %v627
        %v1088 = vunpack.c.h.b16 %v627
        %v1089 = vunpack.c.l.b16 %v628
        %v1090 = vunpack.c.h.b16 %v628
        %v1091 = vunpack.c.l.b16 %v629
        %v1092 = vunpack.c.h.b16 %v629
        %v1093 = vunpack.c.l.b16 %v630
        %v1094 = vunpack.c.h.b16 %v630
        %v1095 = vunpack.c.l.b16 %v631
        %v1096 = vunpack.c.h.b16 %v631
        %v1097 = vunpack.c.l.b16 %v632
        %v1098 = vunpack.c.h.b16 %v632
        %v1099 = vunpack.c.l.b16 %v633
        %v1100 = vunpack.c.h.b16 %v633
        %v1101 = vunpack.c.l.b16 %v634
        %v1102 = vunpack.c.h.b16 %v634
        %v1103 = vunpack.c.l.b16 %v635
        %v1104 = vunpack.c.h.b16 %v635
        %v1105 = vunpack.c.l.b16 %v636
        %v1106 = vunpack.c.h.b16 %v636
        %v1107 = vunpack.c.l.b16 %v637
        %v1108 = vunpack.c.h.b16 %v637
        %v1109 = vunpack.c.l.b16 %v638
        %v1110 = vunpack.c.h.b16 %v638
        %v1111 = vunpack.c.l.b16 %v639
        %v1112 = vunpack.c.h.b16 %v639
        %v1113 = vunpack.c.l.b16 %v640
        %v1114 = vunpack.c.h.b16 %v640
        %v1115 = vunpack.c.l.b16 %v641
        %v1116 = vunpack.c.h.b16 %v641
        %v1117 = vunpack.c.l.b16 %v642
        %v1118 = vunpack.c.h.b16 %v642
        %v1119 = vunpack.c.l.b16 %v643
        %v1120 = vunpack.c.h.b16 %v643
        %v1121 = vunpack.c.l.b16 %v644
        %v1122 = vunpack.c.h.b16 %v644
        %v1123 = vunpack.c.l.b16 %v645
        %v1124 = vunpack.c.h.b16 %v645
        %v1125 = vunpack.c.l.b16 %v646
        %v1126 = vunpack.c.h.b16 %v646
        %v1127 = vunpack.c.l.b16 %v647
        %v1128 = vunpack.c.h.b16 %v647
        %v1129 = vunpack.c.l.b16 %v648
        %v1130 = vunpack.c.h.b16 %v648
        %v1131 = vunpack.c.l.b16 %v649
        %v1132 = vunpack.c.h.b16 %v649
        %v1133 = vunpack.c.l.b16 %v650
        %v1134 = vunpack.c.h.b16 %v650
        %v1135 = vunpack.c.l.b16 %v651
        %v1136 = vunpack.c.h.b16 %v651
        %v1137 = vunpack.c.l.b16 %v652
        %v1138 = vunpack.c.h.b16 %v652
        %v1139 = vunpack.c.l.b16 %v653
        %v1140 = vunpack.c.h.b16 %v653
        %v1141 = vunpack.c.l.b16 %v654
        %v1142 = vunpack.c.h.b16 %v654
        %v1143 = vunpack.c.l.b16 %v655
        %v1144 = vunpack.c.h.b16 %v655
        %v1145 = vunpack.c.l.b16 %v656
        %v1146 = vunpack.c.h.b16 %v656
        %v1147 = vunpack.c.l.b16 %v657
        %v1148 = vunpack.c.h.b16 %v657
        %v1149 = vunpack.c.l.b16 %v658
        %v1150 = vunpack.c.h.b16 %v658
        %v1151 = vunpack.c.l.b16 %v659
        %v1152 = vunpack.c.h.b16 %v659
        %v1153 = vunpack.c.l.b16 %v660
        %v1154 = vunpack.c.h.b16 %v660
        %v1155 = vunpack.c.l.b16 %v661
        %v1156 = vunpack.c.h.b16 %v661
        %v1157 = vunpack.c.l.b16 %v662
        %v1158 = vunpack.c.h.b16 %v662
        %v1159 = vunpack.c.l.b16 %v663
        %v1160 = vunpack.c.h.b16 %v663
        %v1161 = vunpack.c.l.b16 %v664
        %v1162 = vunpack.c.h.b16 %v664
        %v1163 = vunpack.c.l.b16 %v665
        %v1164 = vunpack.c.h.b16 %v665
        %v1165 = vunpack.c.l.b16 %v666
        %v1166 = vunpack.c.h.b16 %v666
        %v1167 = vunpack.c.l.b16 %v667
        %v1168 = vunpack.c.h.b16 %v667
        %v1169 = vunpack.c.l.b16 %v668
        %v1170 = vunpack.c.h.b16 %v668
        %v1171 = vunpack.c.l.b16 %v669
        %v1172 = vunpack.c.h.b16 %v669
        %v1173 = vunpack.c.l.b16 %v670
        %v1174 = vunpack.c.h.b16 %v670
        %v1175 = vunpack.c.l.b16 %v671
        %v1176 = vunpack.c.h.b16 %v671
        %v1177 = vunpack.c.l.b16 %v672
        %v1178 = vunpack.c.h.b16 %v672
        %v1179 = vunpack.c.l.b16 %v673
        %v1180 = vunpack.c.h.b16 %v673
        %v1181 = vpack.c.b16 %v875, %v857
        %v1182 = vpack.c.b16 %v876, %v858
        %v1183 = vpack.c.b16 %v877, %v859
        %v1184 = vpack.c.b16 %v878, %v860
        %v1185 = vpack.c.b16 %v879, %v861
        %v1186 = vpack.c.b16 %v880, %v862
        %v1187 = vpack.c.b16 %v881, %v863
        %v1188 = vpack.c.b16 %v882, %v864
        %v1189 = vpack.c.b16 %v883, %v865
        %v1190 = vpack.c.b16 %v884, %v866
        %v1191 = vpack.c.b16 %v885, %v867
        %v1192 = vpack.c.b16 %v886, %v868
        %v1193 = vpack.c.b16 %v887, %v869
        %v1194 = vpack.c.b16 %v888, %v870
        %v1195 = vpack.c.b16 %v889, %v871
        %v1196 = vpack.c.b16 %v890, %v872
        %v1197 = vpack.c.b16 %v891, %v873
        %v1198 = vpack.c.b16 %v892, %v874
        %v1199 = vpack.c.b16 %v911, %v893
        %v1200 = vpack.c.b16 %v912, %v894
        %v1201 = vpack.c.b16 %v913, %v895
        %v1202 = vpack.c.b16 %v914, %v896
        %v1203 = vpack.c.b16 %v915, %v897
        %v1204 = vpack.c.b16 %v916, %v898
        %v1205 = vpack.c.b16 %v917, %v899
        %v1206 = vpack.c.b16 %v918, %v900
        %v1207 = vpack.c.b16 %v919, %v901
        %v1208 = vpack.c.b16 %v920, %v902
        %v1209 = vpack.c.b16 %v921, %v903
        %v1210 = vpack.c.b16 %v922, %v904
        %v1211 = vpack.c.b16 %v923, %v905
        %v1212 = vpack.c.b16 %v924, %v906
        %v1213 = vpack.c.b16 %v925, %v907
        %v1214 = vpack.c.b16 %v926, %v908
        %v1215 = vpack.c.b16 %v927, %v909
        %v1216 = vpack.c.b16 %v928, %v910
        %v1217 = vpack.c.b16 %v947, %v929
        %v1218 = vpack.c.b16 %v948, %v930
        %v1219 = vpack.c.b16 %v949, %v931
        %v1220 = vpack.c.b16 %v950, %v932
        %v1221 = vpack.c.b16 %v951, %v933
        %v1222 = vpack.c.b16 %v952, %v934
        %v1223 = vpack.c.b16 %v953, %v935
        %v1224 = vpack.c.b16 %v954, %v936
        %v1225 = vpack.c.b16 %v955, %v937
        %v1226 = vpack.c.b16 %v956, %v938
        %v1227 = vpack.c.b16 %v957, %v939
        %v1228 = vpack.c.b16 %v958, %v940
        %v1229 = vpack.c.b16 %v959, %v941
        %v1230 = vpack.c.b16 %v960, %v942
        %v1231 = vpack.c.b16 %v961, %v943
        %v1232 = vpack.c.b16 %v962, %v944
        %v1233 = vpack.c.b16 %v963, %v945
        %v1234 = vpack.c.b16 %v964, %v946
        %v1235 = vpack.c.b16 %v983, %v965
        %v1236 = vpack.c.b16 %v984, %v966
        %v1237 = vpack.c.b16 %v985, %v967
        %v1238 = vpack.c.b16 %v986, %v968
        %v1239 = vpack.c.b16 %v987, %v969
        %v1240 = vpack.c.b16 %v988, %v970
        %v1241 = vpack.c.b16 %v989, %v971
        %v1242 = vpack.c.b16 %v990, %v972
        %v1243 = vpack.c.b16 %v991, %v973
        %v1244 = vpack.c.b16 %v992, %v974
        %v1245 = vpack.c.b16 %v993, %v975
        %v1246 = vpack.c.b16 %v994, %v976
        %v1247 = vpack.c.b16 %v995, %v977
        %v1248 = vpack.c.b16 %v996, %v978
        %v1249 = vpack.c.b16 %v997, %v979
        %v1250 = vpack.c.b16 %v998, %v980
        %v1251 = vpack.c.b16 %v999, %v981
        %v1252 = vpack.c.b16 %v1000, %v982
        %v1253 = vpack.c.b16 %v1019, %v1001
        %v1254 = vpack.c.b16 %v1020, %v1002
        %v1255 = vpack.c.b16 %v1021, %v1003
        %v1256 = vpack.c.b16 %v1022, %v1004
        %v1257 = vpack.c.b16 %v1023, %v1005
        %v1258 = vpack.c.b16 %v1024, %v1006
        %v1259 = vpack.c.b16 %v1025, %v1007
        %v1260 = vpack.c.b16 %v1026, %v1008
        %v1261 = vpack.c.b16 %v1027, %v1009
        %v1262 = vpack.c.b16 %v1028, %v1010
        %v1263 = vpack.c.b16 %v1029, %v1011
        %v1264 = vpack.c.b16 %v1030, %v1012
        %v1265 = vpack.c.b16 %v1031, %v1013
        %v1266 = vpack.c.b16 %v1032, %v1014
        %v1267 = vpack.c.b16 %v1033, %v1015
        %v1268 = vpack.c.b16 %v1034, %v1016
        %v1269 = vpack.c.b16 %v1035, %v1017
        %v1270 = vpack.c.b16 %v1036, %v1018
        %v1271 = vpack.c.b16 %v1055, %v1037
        %v1272 = vpack.c.b16 %v1056, %v1038
        %v1273 = vpack.c.b16 %v1057, %v1039
        %v1274 = vpack.c.b16 %v1058, %v1040
        %v1275 = vpack.c.b16 %v1059, %v1041
        %v1276 = vpack.c.b16 %v1060, %v1042
        %v1277 = vpack.c.b16 %v1061, %v1043
        %v1278 = vpack.c.b16 %v1062, %v1044
        %v1279 = vpack.c.b16 %v1063, %v1045
        %v1280 = vpack.c.b16 %v1064, %v1046
        %v1281 = vpack.c.b16 %v1065, %v1047
        %v1282 = vpack.c.b16 %v1066, %v1048
        %v1283 = vpack.c.b16 %v1067, %v1049
        %v1284 = vpack.c.b16 %v1068, %v1050
        %v1285 = vpack.c.b16 %v1069, %v1051
        %v1286 = vpack.c.b16 %v1070, %v1052
        %v1287 = vpack.c.b16 %v1071, %v1053
        %v1288 = vpack.c.b16 %v1072, %v1054
        %v1289 = vpack.c.b16 %v1091, %v1073
        %v1290 = vpack.c.b16 %v1092, %v1074
        %v1291 = vpack.c.b16 %v1093, %v1075
        %v1292 = vpack.c.b16 %v1094, %v1076
        %v1293 = vpack.c.b16 %v1095, %v1077
        %v1294 = vpack.c.b16 %v1096, %v1078
        %v1295 = vpack.c.b16 %v1097, %v1079
        %v1296 = vpack.c.b16 %v1098, %v1080
        %v1297 = vpack.c.b16 %v1099, %v1081
        %v1298 = vpack.c.b16 %v1100, %v1082
        %v1299 = vpack.c.b16 %v1101, %v1083
        %v1300 = vpack.c.b16 %v1102, %v1084
        %v1301 = vpack.c.b16 %v1103, %v1085
        %v1302 = vpack.c.b16 %v1104, %v1086
        %v1303 = vpack.c.b16 %v1105, %v1087
        %v1304 = vpack.c.b16 %v1106, %v1088
        %v1305 = vpack.c.b16 %v1107, %v1089
        %v1306 = vpack.c.b16 %v1108, %v1090
        %v1307 = vpack.c.b16 %v1127, %v1109
        %v1308 = vpack.c.b16 %v1128, %v1110
        %v1309 = vpack.c.b16 %v1129, %v1111
        %v1310 = vpack.c.b16 %v1130, %v1112
        %v1311 = vpack.c.b16 %v1131, %v1113
        %v1312 = vpack.c.b16 %v1132, %v1114
        %v1313 = vpack.c.b16 %v1133, %v1115
        %v1314 = vpack.c.b16 %v1134, %v1116
        %v1315 = vpack.c.b16 %v1135, %v1117
        %v1316 = vpack.c.b16 %v1136, %v1118
        %v1317 = vpack.c.b16 %v1137, %v1119
        %v1318 = vpack.c.b16 %v1138, %v1120
        %v1319 = vpack.c.b16 %v1139, %v1121
        %v1320 = vpack.c.b16 %v1140, %v1122
        %v1321 = vpack.c.b16 %v1141, %v1123
        %v1322 = vpack.c.b16 %v1142, %v1124
        %v1323 = vpack.c.b16 %v1143, %v1125
        %v1324 = vpack.c.b16 %v1144, %v1126
        %v1325 = vpack.c.b16 %v1163, %v1145
        %v1326 = vpack.c.b16 %v1164, %v1146
        %v1327 = vpack.c.b16 %v1165, %v1147
        %v1328 = vpack.c.b16 %v1166, %v1148
        %v1329 = vpack.c.b16 %v1167, %v1149
        %v1330 = vpack.c.b16 %v1168, %v1150
        %v1331 = vpack.c.b16 %v1169, %v1151
        %v1332 = vpack.c.b16 %v1170, %v1152
        %v1333 = vpack.c.b16 %v1171, %v1153
        %v1334 = vpack.c.b16 %v1172, %v1154
        %v1335 = vpack.c.b16 %v1173, %v1155
        %v1336 = vpack.c.b16 %v1174, %v1156
        %v1337 = vpack.c.b16 %v1175, %v1157
        %v1338 = vpack.c.b16 %v1176, %v1158
        %v1339 = vpack.c.b16 %v1177, %v1159
        %v1340 = vpack.c.b16 %v1178, %v1160
        %v1341 = vpack.c.b16 %v1179, %v1161
        %v1342 = vpack.c.b16 %v1180, %v1162
        %vm1505 = vcmask 130048
        %v1507 = vsel %vm1505, %v693, 0
        %1509 = vmatpush.bf16.msra.mxu0 %v1307
        %1510 = vmatpush.bf16.msra.mxu0 %v1289
        %1511 = vmatpush.bf16.msra.mxu0 %v1271
        %1512 = vmatpush.bf16.msra.mxu0 %v1253
        %1513 = vmatpush.bf16.msra.mxu0 %v1235
        %1514 = vmatpush.bf16.msra.mxu0 %v1217
        %1515 = vmatpush.bf16.msra.mxu0 %v1199
        %1516 = vmatpush.bf16.msra.mxu0 %v1181
        %1517 = vmatmul.bf16.gmra.mxu0 %v692
        %v1518 = vpop.f32.mrf.mxu0
        %v1519 = vadd.f32 %v679, %v1518
        %v1520 = vpop.f32.mrf.mxu0
        %v1521 = vadd.f32 %v684, %v1520
        %1522 = vdwg.mxu0
        %1523 = vmatpush.bf16.msra.mxu0 0
        %1524 = vmatpush.bf16.msra.mxu0 0
        %1525 = vmatpush.bf16.msra.mxu0 0
        %1526 = vmatpush.bf16.msra.mxu0 0
        %1527 = vmatpush.bf16.msra.mxu0 0
        %1528 = vmatpush.bf16.msra.mxu0 0
        %1529 = vmatpush.bf16.msra.mxu0 0
        %1530 = vmatpush.bf16.msra.mxu0 %v1325
        %1531 = vmatmul.bf16.gmra.mxu0 %v1507
        %v1532 = vpop.f32.mrf.mxu0
        %v1533 = vadd.f32 %v1519, %v1532
        %v1534 = vpop.f32.mrf.mxu0
        %v1535 = vadd.f32 %v1521, %v1534
        %1536 = vdwg.mxu0
        %1537 = vmatpush.bf16.msra.mxu0 %v1308
        %1538 = vmatpush.bf16.msra.mxu0 %v1290
        %1539 = vmatpush.bf16.msra.mxu0 %v1272
        %1540 = vmatpush.bf16.msra.mxu0 %v1254
        %1541 = vmatpush.bf16.msra.mxu0 %v1236
        %1542 = vmatpush.bf16.msra.mxu0 %v1218
        %1543 = vmatpush.bf16.msra.mxu0 %v1200
        %1544 = vmatpush.bf16.msra.mxu0 %v1182
        %1545 = vmatmul.bf16.gmra.mxu0 %v692
        %v1546 = vpop.f32.mrf.mxu0
        %v1547 = vadd.f32 %v679, %v1546
        %v1548 = vpop.f32.mrf.mxu0
        %v1549 = vadd.f32 %v684, %v1548
        %1550 = vdwg.mxu0
        %1551 = vmatpush.bf16.msra.mxu0 0
        %1552 = vmatpush.bf16.msra.mxu0 0
        %1553 = vmatpush.bf16.msra.mxu0 0
        %1554 = vmatpush.bf16.msra.mxu0 0
        %1555 = vmatpush.bf16.msra.mxu0 0
        %1556 = vmatpush.bf16.msra.mxu0 0
        %1557 = vmatpush.bf16.msra.mxu0 0
        %1558 = vmatpush.bf16.msra.mxu0 %v1326
        %1559 = vmatmul.bf16.gmra.mxu0 %v1507
        %v1560 = vpop.f32.mrf.mxu0
        %v1561 = vadd.f32 %v1547, %v1560
        %v1562 = vpop.f32.mrf.mxu0
        %v1563 = vadd.f32 %v1549, %v1562
        %1564 = vdwg.mxu0
        %1565 = vmatpush.bf16.msra.mxu0 %v1309
        %1566 = vmatpush.bf16.msra.mxu0 %v1291
        %1567 = vmatpush.bf16.msra.mxu0 %v1273
        %1568 = vmatpush.bf16.msra.mxu0 %v1255
        %1569 = vmatpush.bf16.msra.mxu0 %v1237
        %1570 = vmatpush.bf16.msra.mxu0 %v1219
        %1571 = vmatpush.bf16.msra.mxu0 %v1201
        %1572 = vmatpush.bf16.msra.mxu0 %v1183
        %1573 = vmatmul.bf16.gmra.mxu0 %v692
        %v1574 = vpop.f32.mrf.mxu0
        %v1575 = vadd.f32 %v679, %v1574
        %v1576 = vpop.f32.mrf.mxu0
        %v1577 = vadd.f32 %v684, %v1576
        %1578 = vdwg.mxu0
        %1579 = vmatpush.bf16.msra.mxu0 0
        %1580 = vmatpush.bf16.msra.mxu0 0
        %1581 = vmatpush.bf16.msra.mxu0 0
        %1582 = vmatpush.bf16.msra.mxu0 0
        %1583 = vmatpush.bf16.msra.mxu0 0
        %1584 = vmatpush.bf16.msra.mxu0 0
        %1585 = vmatpush.bf16.msra.mxu0 0
        %1586 = vmatpush.bf16.msra.mxu0 %v1327
        %1587 = vmatmul.bf16.gmra.mxu0 %v1507
        %v1588 = vpop.f32.mrf.mxu0
        %v1589 = vadd.f32 %v1575, %v1588
        %v1590 = vpop.f32.mrf.mxu0
        %v1591 = vadd.f32 %v1577, %v1590
        %1592 = vdwg.mxu0
        %1593 = vmatpush.bf16.msra.mxu0 %v1310
        %1594 = vmatpush.bf16.msra.mxu0 %v1292
        %1595 = vmatpush.bf16.msra.mxu0 %v1274
        %1596 = vmatpush.bf16.msra.mxu0 %v1256
        %1597 = vmatpush.bf16.msra.mxu0 %v1238
        %1598 = vmatpush.bf16.msra.mxu0 %v1220
        %1599 = vmatpush.bf16.msra.mxu0 %v1202
        %1600 = vmatpush.bf16.msra.mxu0 %v1184
        %1601 = vmatmul.bf16.gmra.mxu0 %v692
        %v1602 = vpop.f32.mrf.mxu0
        %v1603 = vadd.f32 %v679, %v1602
        %v1604 = vpop.f32.mrf.mxu0
        %v1605 = vadd.f32 %v684, %v1604
        %1606 = vdwg.mxu0
        %1607 = vmatpush.bf16.msra.mxu0 0
        %1608 = vmatpush.bf16.msra.mxu0 0
        %1609 = vmatpush.bf16.msra.mxu0 0
        %1610 = vmatpush.bf16.msra.mxu0 0
        %1611 = vmatpush.bf16.msra.mxu0 0
        %1612 = vmatpush.bf16.msra.mxu0 0
        %1613 = vmatpush.bf16.msra.mxu0 0
        %1614 = vmatpush.bf16.msra.mxu0 %v1328
        %1615 = vmatmul.bf16.gmra.mxu0 %v1507
        %v1616 = vpop.f32.mrf.mxu0
        %v1617 = vadd.f32 %v1603, %v1616
        %v1618 = vpop.f32.mrf.mxu0
        %v1619 = vadd.f32 %v1605, %v1618
        %1620 = vdwg.mxu0
        %1621 = vmatpush.bf16.msra.mxu0 %v1311
        %1622 = vmatpush.bf16.msra.mxu0 %v1293
        %1623 = vmatpush.bf16.msra.mxu0 %v1275
        %1624 = vmatpush.bf16.msra.mxu0 %v1257
        %1625 = vmatpush.bf16.msra.mxu0 %v1239
        %1626 = vmatpush.bf16.msra.mxu0 %v1221
        %1627 = vmatpush.bf16.msra.mxu0 %v1203
        %1628 = vmatpush.bf16.msra.mxu0 %v1185
        %1629 = vmatmul.bf16.gmra.mxu0 %v692
        %v1630 = vpop.f32.mrf.mxu0
        %v1631 = vadd.f32 %v679, %v1630
        %v1632 = vpop.f32.mrf.mxu0
        %v1633 = vadd.f32 %v684, %v1632
        %1634 = vdwg.mxu0
        %1635 = vmatpush.bf16.msra.mxu0 0
        %1636 = vmatpush.bf16.msra.mxu0 0
        %1637 = vmatpush.bf16.msra.mxu0 0
        %1638 = vmatpush.bf16.msra.mxu0 0
        %1639 = vmatpush.bf16.msra.mxu0 0
        %1640 = vmatpush.bf16.msra.mxu0 0
        %1641 = vmatpush.bf16.msra.mxu0 0
        %1642 = vmatpush.bf16.msra.mxu0 %v1329
        %1643 = vmatmul.bf16.gmra.mxu0 %v1507
        %v1644 = vpop.f32.mrf.mxu0
        %v1645 = vadd.f32 %v1631, %v1644
        %v1646 = vpop.f32.mrf.mxu0
        %v1647 = vadd.f32 %v1633, %v1646
        %1648 = vdwg.mxu0
        %1649 = vmatpush.bf16.msra.mxu0 %v1312
        %1650 = vmatpush.bf16.msra.mxu0 %v1294
        %1651 = vmatpush.bf16.msra.mxu0 %v1276
        %1652 = vmatpush.bf16.msra.mxu0 %v1258
        %1653 = vmatpush.bf16.msra.mxu0 %v1240
        %1654 = vmatpush.bf16.msra.mxu0 %v1222
        %1655 = vmatpush.bf16.msra.mxu0 %v1204
        %1656 = vmatpush.bf16.msra.mxu0 %v1186
        %1657 = vmatmul.bf16.gmra.mxu0 %v692
        %v1658 = vpop.f32.mrf.mxu0
        %v1659 = vadd.f32 %v679, %v1658
        %v1660 = vpop.f32.mrf.mxu0
        %v1661 = vadd.f32 %v684, %v1660
        %1662 = vdwg.mxu0
        %1663 = vmatpush.bf16.msra.mxu0 0
        %1664 = vmatpush.bf16.msra.mxu0 0
        %1665 = vmatpush.bf16.msra.mxu0 0
        %1666 = vmatpush.bf16.msra.mxu0 0
        %1667 = vmatpush.bf16.msra.mxu0 0
        %1668 = vmatpush.bf16.msra.mxu0 0
        %1669 = vmatpush.bf16.msra.mxu0 0
        %1670 = vmatpush.bf16.msra.mxu0 %v1330
        %1671 = vmatmul.bf16.gmra.mxu0 %v1507
        %v1672 = vpop.f32.mrf.mxu0
        %v1673 = vadd.f32 %v1659, %v1672
        %v1674 = vpop.f32.mrf.mxu0
        %v1675 = vadd.f32 %v1661, %v1674
        %1676 = vdwg.mxu0
        %1677 = vmatpush.bf16.msra.mxu0 %v1313
        %1678 = vmatpush.bf16.msra.mxu0 %v1295
        %1679 = vmatpush.bf16.msra.mxu0 %v1277
        %1680 = vmatpush.bf16.msra.mxu0 %v1259
        %1681 = vmatpush.bf16.msra.mxu0 %v1241
        %1682 = vmatpush.bf16.msra.mxu0 %v1223
        %1683 = vmatpush.bf16.msra.mxu0 %v1205
        %1684 = vmatpush.bf16.msra.mxu0 %v1187
        %1685 = vmatmul.bf16.gmra.mxu0 %v692
        %v1686 = vpop.f32.mrf.mxu0
        %v1687 = vadd.f32 %v679, %v1686
        %v1688 = vpop.f32.mrf.mxu0
        %v1689 = vadd.f32 %v684, %v1688
        %1690 = vdwg.mxu0
        %1691 = vmatpush.bf16.msra.mxu0 0
        %1692 = vmatpush.bf16.msra.mxu0 0
        %1693 = vmatpush.bf16.msra.mxu0 0
        %1694 = vmatpush.bf16.msra.mxu0 0
        %1695 = vmatpush.bf16.msra.mxu0 0
        %1696 = vmatpush.bf16.msra.mxu0 0
        %1697 = vmatpush.bf16.msra.mxu0 0
        %1698 = vmatpush.bf16.msra.mxu0 %v1331
        %1699 = vmatmul.bf16.gmra.mxu0 %v1507
        %v1700 = vpop.f32.mrf.mxu0
        %v1701 = vadd.f32 %v1687, %v1700
        %v1702 = vpop.f32.mrf.mxu0
        %v1703 = vadd.f32 %v1689, %v1702
        %1704 = vdwg.mxu0
        %1705 = vmatpush.bf16.msra.mxu0 %v1314
        %1706 = vmatpush.bf16.msra.mxu0 %v1296
        %1707 = vmatpush.bf16.msra.mxu0 %v1278
        %1708 = vmatpush.bf16.msra.mxu0 %v1260
        %1709 = vmatpush.bf16.msra.mxu0 %v1242
        %1710 = vmatpush.bf16.msra.mxu0 %v1224
        %1711 = vmatpush.bf16.msra.mxu0 %v1206
        %1712 = vmatpush.bf16.msra.mxu0 %v1188
        %1713 = vmatmul.bf16.gmra.mxu0 %v692
        %v1714 = vpop.f32.mrf.mxu0
        %v1715 = vadd.f32 %v679, %v1714
        %v1716 = vpop.f32.mrf.mxu0
        %v1717 = vadd.f32 %v684, %v1716
        %1718 = vdwg.mxu0
        %1719 = vmatpush.bf16.msra.mxu0 0
        %1720 = vmatpush.bf16.msra.mxu0 0
        %1721 = vmatpush.bf16.msra.mxu0 0
        %1722 = vmatpush.bf16.msra.mxu0 0
        %1723 = vmatpush.bf16.msra.mxu0 0
        %1724 = vmatpush.bf16.msra.mxu0 0
        %1725 = vmatpush.bf16.msra.mxu0 0
        %1726 = vmatpush.bf16.msra.mxu0 %v1332
        %1727 = vmatmul.bf16.gmra.mxu0 %v1507
        %v1728 = vpop.f32.mrf.mxu0
        %v1729 = vadd.f32 %v1715, %v1728
        %v1730 = vpop.f32.mrf.mxu0
        %v1731 = vadd.f32 %v1717, %v1730
        %1732 = vdwg.mxu0
        %1733 = vmatpush.bf16.msra.mxu0 %v1315
        %1734 = vmatpush.bf16.msra.mxu0 %v1297
        %1735 = vmatpush.bf16.msra.mxu0 %v1279
        %1736 = vmatpush.bf16.msra.mxu0 %v1261
        %1737 = vmatpush.bf16.msra.mxu0 %v1243
        %1738 = vmatpush.bf16.msra.mxu0 %v1225
        %1739 = vmatpush.bf16.msra.mxu0 %v1207
        %1740 = vmatpush.bf16.msra.mxu0 %v1189
        %1741 = vmatmul.bf16.gmra.mxu0 %v692
        %v1742 = vpop.f32.mrf.mxu0
        %v1743 = vadd.f32 %v679, %v1742
        %v1744 = vpop.f32.mrf.mxu0
        %v1745 = vadd.f32 %v684, %v1744
        %1746 = vdwg.mxu0
        %1747 = vmatpush.bf16.msra.mxu0 0
        %1748 = vmatpush.bf16.msra.mxu0 0
        %1749 = vmatpush.bf16.msra.mxu0 0
        %1750 = vmatpush.bf16.msra.mxu0 0
        %1751 = vmatpush.bf16.msra.mxu0 0
        %1752 = vmatpush.bf16.msra.mxu0 0
        %1753 = vmatpush.bf16.msra.mxu0 0
        %1754 = vmatpush.bf16.msra.mxu0 %v1333
        %1755 = vmatmul.bf16.gmra.mxu0 %v1507
        %v1756 = vpop.f32.mrf.mxu0
        %v1757 = vadd.f32 %v1743, %v1756
        %v1758 = vpop.f32.mrf.mxu0
        %v1759 = vadd.f32 %v1745, %v1758
        %1760 = vdwg.mxu0
        %1761 = vmatpush.bf16.msra.mxu0 %v1316
        %1762 = vmatpush.bf16.msra.mxu0 %v1298
        %1763 = vmatpush.bf16.msra.mxu0 %v1280
        %1764 = vmatpush.bf16.msra.mxu0 %v1262
        %1765 = vmatpush.bf16.msra.mxu0 %v1244
        %1766 = vmatpush.bf16.msra.mxu0 %v1226
        %1767 = vmatpush.bf16.msra.mxu0 %v1208
        %1768 = vmatpush.bf16.msra.mxu0 %v1190
        %1769 = vmatmul.bf16.gmra.mxu0 %v692
        %v1770 = vpop.f32.mrf.mxu0
        %v1771 = vadd.f32 %v679, %v1770
        %v1772 = vpop.f32.mrf.mxu0
        %v1773 = vadd.f32 %v684, %v1772
        %1774 = vdwg.mxu0
        %1775 = vmatpush.bf16.msra.mxu0 0
        %1776 = vmatpush.bf16.msra.mxu0 0
        %1777 = vmatpush.bf16.msra.mxu0 0
        %1778 = vmatpush.bf16.msra.mxu0 0
        %1779 = vmatpush.bf16.msra.mxu0 0
        %1780 = vmatpush.bf16.msra.mxu0 0
        %1781 = vmatpush.bf16.msra.mxu0 0
        %1782 = vmatpush.bf16.msra.mxu0 %v1334
        %1783 = vmatmul.bf16.gmra.mxu0 %v1507
        %v1784 = vpop.f32.mrf.mxu0
        %v1785 = vadd.f32 %v1771, %v1784
        %v1786 = vpop.f32.mrf.mxu0
        %v1787 = vadd.f32 %v1773, %v1786
        %1788 = vdwg.mxu0
        %1789 = vmatpush.bf16.msra.mxu0 %v1317
        %1790 = vmatpush.bf16.msra.mxu0 %v1299
        %1791 = vmatpush.bf16.msra.mxu0 %v1281
        %1792 = vmatpush.bf16.msra.mxu0 %v1263
        %1793 = vmatpush.bf16.msra.mxu0 %v1245
        %1794 = vmatpush.bf16.msra.mxu0 %v1227
        %1795 = vmatpush.bf16.msra.mxu0 %v1209
        %1796 = vmatpush.bf16.msra.mxu0 %v1191
        %1797 = vmatmul.bf16.gmra.mxu0 %v692
        %v1798 = vpop.f32.mrf.mxu0
        %v1799 = vadd.f32 %v679, %v1798
        %v1800 = vpop.f32.mrf.mxu0
        %v1801 = vadd.f32 %v684, %v1800
        %1802 = vdwg.mxu0
        %1803 = vmatpush.bf16.msra.mxu0 0
        %1804 = vmatpush.bf16.msra.mxu0 0
        %1805 = vmatpush.bf16.msra.mxu0 0
        %1806 = vmatpush.bf16.msra.mxu0 0
        %1807 = vmatpush.bf16.msra.mxu0 0
        %1808 = vmatpush.bf16.msra.mxu0 0
        %1809 = vmatpush.bf16.msra.mxu0 0
        %1810 = vmatpush.bf16.msra.mxu0 %v1335
        %1811 = vmatmul.bf16.gmra.mxu0 %v1507
        %v1812 = vpop.f32.mrf.mxu0
        %v1813 = vadd.f32 %v1799, %v1812
        %v1814 = vpop.f32.mrf.mxu0
        %v1815 = vadd.f32 %v1801, %v1814
        %1816 = vdwg.mxu0
        %1817 = vmatpush.bf16.msra.mxu0 %v1318
        %1818 = vmatpush.bf16.msra.mxu0 %v1300
        %1819 = vmatpush.bf16.msra.mxu0 %v1282
        %1820 = vmatpush.bf16.msra.mxu0 %v1264
        %1821 = vmatpush.bf16.msra.mxu0 %v1246
        %1822 = vmatpush.bf16.msra.mxu0 %v1228
        %1823 = vmatpush.bf16.msra.mxu0 %v1210
        %1824 = vmatpush.bf16.msra.mxu0 %v1192
        %1825 = vmatmul.bf16.gmra.mxu0 %v692
        %v1826 = vpop.f32.mrf.mxu0
        %v1827 = vadd.f32 %v679, %v1826
        %v1828 = vpop.f32.mrf.mxu0
        %v1829 = vadd.f32 %v684, %v1828
        %1830 = vdwg.mxu0
        %1831 = vmatpush.bf16.msra.mxu0 0
        %1832 = vmatpush.bf16.msra.mxu0 0
        %1833 = vmatpush.bf16.msra.mxu0 0
        %1834 = vmatpush.bf16.msra.mxu0 0
        %1835 = vmatpush.bf16.msra.mxu0 0
        %1836 = vmatpush.bf16.msra.mxu0 0
        %1837 = vmatpush.bf16.msra.mxu0 0
        %1838 = vmatpush.bf16.msra.mxu0 %v1336
        %1839 = vmatmul.bf16.gmra.mxu0 %v1507
        %v1840 = vpop.f32.mrf.mxu0
        %v1841 = vadd.f32 %v1827, %v1840
        %v1842 = vpop.f32.mrf.mxu0
        %v1843 = vadd.f32 %v1829, %v1842
        %1844 = vdwg.mxu0
        %1845 = vmatpush.bf16.msra.mxu0 %v1319
        %1846 = vmatpush.bf16.msra.mxu0 %v1301
        %1847 = vmatpush.bf16.msra.mxu0 %v1283
        %1848 = vmatpush.bf16.msra.mxu0 %v1265
        %1849 = vmatpush.bf16.msra.mxu0 %v1247
        %1850 = vmatpush.bf16.msra.mxu0 %v1229
        %1851 = vmatpush.bf16.msra.mxu0 %v1211
        %1852 = vmatpush.bf16.msra.mxu0 %v1193
        %1853 = vmatmul.bf16.gmra.mxu0 %v692
        %v1854 = vpop.f32.mrf.mxu0
        %v1855 = vadd.f32 %v679, %v1854
        %v1856 = vpop.f32.mrf.mxu0
        %v1857 = vadd.f32 %v684, %v1856
        %1858 = vdwg.mxu0
        %1859 = vmatpush.bf16.msra.mxu0 0
        %1860 = vmatpush.bf16.msra.mxu0 0
        %1861 = vmatpush.bf16.msra.mxu0 0
        %1862 = vmatpush.bf16.msra.mxu0 0
        %1863 = vmatpush.bf16.msra.mxu0 0
        %1864 = vmatpush.bf16.msra.mxu0 0
        %1865 = vmatpush.bf16.msra.mxu0 0
        %1866 = vmatpush.bf16.msra.mxu0 %v1337
        %1867 = vmatmul.bf16.gmra.mxu0 %v1507
        %v1868 = vpop.f32.mrf.mxu0
        %v1869 = vadd.f32 %v1855, %v1868
        %v1870 = vpop.f32.mrf.mxu0
        %v1871 = vadd.f32 %v1857, %v1870
        %1872 = vdwg.mxu0
        %1873 = vmatpush.bf16.msra.mxu0 %v1320
        %1874 = vmatpush.bf16.msra.mxu0 %v1302
        %1875 = vmatpush.bf16.msra.mxu0 %v1284
        %1876 = vmatpush.bf16.msra.mxu0 %v1266
        %1877 = vmatpush.bf16.msra.mxu0 %v1248
        %1878 = vmatpush.bf16.msra.mxu0 %v1230
        %1879 = vmatpush.bf16.msra.mxu0 %v1212
        %1880 = vmatpush.bf16.msra.mxu0 %v1194
        %1881 = vmatmul.bf16.gmra.mxu0 %v692
        %v1882 = vpop.f32.mrf.mxu0
        %v1883 = vadd.f32 %v679, %v1882
        %v1884 = vpop.f32.mrf.mxu0
        %v1885 = vadd.f32 %v684, %v1884
        %1886 = vdwg.mxu0
        %1887 = vmatpush.bf16.msra.mxu0 0
        %1888 = vmatpush.bf16.msra.mxu0 0
        %1889 = vmatpush.bf16.msra.mxu0 0
        %1890 = vmatpush.bf16.msra.mxu0 0
        %1891 = vmatpush.bf16.msra.mxu0 0
        %1892 = vmatpush.bf16.msra.mxu0 0
        %1893 = vmatpush.bf16.msra.mxu0 0
        %1894 = vmatpush.bf16.msra.mxu0 %v1338
        %1895 = vmatmul.bf16.gmra.mxu0 %v1507
        %v1896 = vpop.f32.mrf.mxu0
        %v1897 = vadd.f32 %v1883, %v1896
        %v1898 = vpop.f32.mrf.mxu0
        %v1899 = vadd.f32 %v1885, %v1898
        %1900 = vdwg.mxu0
        %1901 = vmatpush.bf16.msra.mxu0 %v1321
        %1902 = vmatpush.bf16.msra.mxu0 %v1303
        %1903 = vmatpush.bf16.msra.mxu0 %v1285
        %1904 = vmatpush.bf16.msra.mxu0 %v1267
        %1905 = vmatpush.bf16.msra.mxu0 %v1249
        %1906 = vmatpush.bf16.msra.mxu0 %v1231
        %1907 = vmatpush.bf16.msra.mxu0 %v1213
        %1908 = vmatpush.bf16.msra.mxu0 %v1195
        %1909 = vmatmul.bf16.gmra.mxu0 %v692
        %v1910 = vpop.f32.mrf.mxu0
        %v1911 = vadd.f32 %v679, %v1910
        %v1912 = vpop.f32.mrf.mxu0
        %v1913 = vadd.f32 %v684, %v1912
        %1914 = vdwg.mxu0
        %1915 = vmatpush.bf16.msra.mxu0 0
        %1916 = vmatpush.bf16.msra.mxu0 0
        %1917 = vmatpush.bf16.msra.mxu0 0
        %1918 = vmatpush.bf16.msra.mxu0 0
        %1919 = vmatpush.bf16.msra.mxu0 0
        %1920 = vmatpush.bf16.msra.mxu0 0
        %1921 = vmatpush.bf16.msra.mxu0 0
        %1922 = vmatpush.bf16.msra.mxu0 %v1339
        %1923 = vmatmul.bf16.gmra.mxu0 %v1507
        %v1924 = vpop.f32.mrf.mxu0
        %v1925 = vadd.f32 %v1911, %v1924
        %v1926 = vpop.f32.mrf.mxu0
        %v1927 = vadd.f32 %v1913, %v1926
        %1928 = vdwg.mxu0
        %1929 = vmatpush.bf16.msra.mxu0 %v1322
        %1930 = vmatpush.bf16.msra.mxu0 %v1304
        %1931 = vmatpush.bf16.msra.mxu0 %v1286
        %1932 = vmatpush.bf16.msra.mxu0 %v1268
        %1933 = vmatpush.bf16.msra.mxu0 %v1250
        %1934 = vmatpush.bf16.msra.mxu0 %v1232
        %1935 = vmatpush.bf16.msra.mxu0 %v1214
        %1936 = vmatpush.bf16.msra.mxu0 %v1196
        %1937 = vmatmul.bf16.gmra.mxu0 %v692
        %v1938 = vpop.f32.mrf.mxu0
        %v1939 = vadd.f32 %v679, %v1938
        %v1940 = vpop.f32.mrf.mxu0
        %v1941 = vadd.f32 %v684, %v1940
        %1942 = vdwg.mxu0
        %1943 = vmatpush.bf16.msra.mxu0 0
        %1944 = vmatpush.bf16.msra.mxu0 0
        %1945 = vmatpush.bf16.msra.mxu0 0
        %1946 = vmatpush.bf16.msra.mxu0 0
        %1947 = vmatpush.bf16.msra.mxu0 0
        %1948 = vmatpush.bf16.msra.mxu0 0
        %1949 = vmatpush.bf16.msra.mxu0 0
        %1950 = vmatpush.bf16.msra.mxu0 %v1340
        %1951 = vmatmul.bf16.gmra.mxu0 %v1507
        %v1952 = vpop.f32.mrf.mxu0
        %v1953 = vadd.f32 %v1939, %v1952
        %v1954 = vpop.f32.mrf.mxu0
        %v1955 = vadd.f32 %v1941, %v1954
        %1956 = vdwg.mxu0
        %1957 = vmatpush.bf16.msra.mxu0 %v1323
        %1958 = vmatpush.bf16.msra.mxu0 %v1305
        %1959 = vmatpush.bf16.msra.mxu0 %v1287
        %1960 = vmatpush.bf16.msra.mxu0 %v1269
        %1961 = vmatpush.bf16.msra.mxu0 %v1251
        %1962 = vmatpush.bf16.msra.mxu0 %v1233
        %1963 = vmatpush.bf16.msra.mxu0 %v1215
        %1964 = vmatpush.bf16.msra.mxu0 %v1197
        %1965 = vmatmul.bf16.gmra.mxu0 %v692
        %v1966 = vpop.f32.mrf.mxu0
        %v1967 = vadd.f32 %v679, %v1966
        %v1968 = vpop.f32.mrf.mxu0
        %v1969 = vadd.f32 %v684, %v1968
        %1970 = vdwg.mxu0
        %1971 = vmatpush.bf16.msra.mxu0 0
        %1972 = vmatpush.bf16.msra.mxu0 0
        %1973 = vmatpush.bf16.msra.mxu0 0
        %1974 = vmatpush.bf16.msra.mxu0 0
        %1975 = vmatpush.bf16.msra.mxu0 0
        %1976 = vmatpush.bf16.msra.mxu0 0
        %1977 = vmatpush.bf16.msra.mxu0 0
        %1978 = vmatpush.bf16.msra.mxu0 %v1341
        %1979 = vmatmul.bf16.gmra.mxu0 %v1507
        %v1980 = vpop.f32.mrf.mxu0
        %v1981 = vadd.f32 %v1967, %v1980
        %v1982 = vpop.f32.mrf.mxu0
        %v1983 = vadd.f32 %v1969, %v1982
        %1984 = vdwg.mxu0
        %1985 = vmatpush.bf16.msra.mxu0 %v1324
        %1986 = vmatpush.bf16.msra.mxu0 %v1306
        %1987 = vmatpush.bf16.msra.mxu0 %v1288
        %1988 = vmatpush.bf16.msra.mxu0 %v1270
        %1989 = vmatpush.bf16.msra.mxu0 %v1252
        %1990 = vmatpush.bf16.msra.mxu0 %v1234
        %1991 = vmatpush.bf16.msra.mxu0 %v1216
        %1992 = vmatpush.bf16.msra.mxu0 %v1198
        %1993 = vmatmul.bf16.gmra.mxu0 %v692
        %v1994 = vpop.f32.mrf.mxu0
        %v1995 = vadd.f32 %v679, %v1994
        %v1996 = vpop.f32.mrf.mxu0
        %v1997 = vadd.f32 %v684, %v1996
        %1998 = vdwg.mxu0
        %1999 = vmatpush.bf16.msra.mxu0 0
        %2000 = vmatpush.bf16.msra.mxu0 0
        %2001 = vmatpush.bf16.msra.mxu0 0
        %2002 = vmatpush.bf16.msra.mxu0 0
        %2003 = vmatpush.bf16.msra.mxu0 0
        %2004 = vmatpush.bf16.msra.mxu0 0
        %2005 = vmatpush.bf16.msra.mxu0 0
        %2006 = vmatpush.bf16.msra.mxu0 %v1342
        %2007 = vmatmul.bf16.gmra.mxu0 %v1507
        %v2008 = vpop.f32.mrf.mxu0
        %v2009 = vadd.f32 %v1995, %v2008
        %v2010 = vpop.f32.mrf.mxu0
        %v2011 = vadd.f32 %v1997, %v2010
        %2012 = vdwg.mxu0
        %vm2013 = vcmp.ge.f32.partialorder %v1533, 0.0
        %vm2014 = vcmp.ge.f32.partialorder %v1561, 0.0
        %vm2015 = vcmp.ge.f32.partialorder %v1589, 0.0
        %vm2016 = vcmp.ge.f32.partialorder %v1617, 0.0
        %vm2017 = vcmp.ge.f32.partialorder %v1645, 0.0
        %vm2018 = vcmp.ge.f32.partialorder %v1673, 0.0
        %vm2019 = vcmp.ge.f32.partialorder %v1701, 0.0
        %vm2020 = vcmp.ge.f32.partialorder %v1729, 0.0
        %vm2021 = vcmp.ge.f32.partialorder %v1757, 0.0
        %vm2022 = vcmp.ge.f32.partialorder %v1785, 0.0
        %vm2023 = vcmp.ge.f32.partialorder %v1813, 0.0
        %vm2024 = vcmp.ge.f32.partialorder %v1841, 0.0
        %vm2025 = vcmp.ge.f32.partialorder %v1869, 0.0
        %vm2026 = vcmp.ge.f32.partialorder %v1897, 0.0
        %vm2027 = vcmp.ge.f32.partialorder %v1925, 0.0
        %vm2028 = vcmp.ge.f32.partialorder %v1953, 0.0
        %vm2029 = vcmp.ge.f32.partialorder %v1981, 0.0
        %vm2030 = vcmp.ge.f32.partialorder %v2009, 0.0
        %vm2031 = vcmp.ge.f32.partialorder %v1535, 0.0
        %vm2032 = vcmp.ge.f32.partialorder %v1563, 0.0
        %vm2033 = vcmp.ge.f32.partialorder %v1591, 0.0
        %vm2034 = vcmp.ge.f32.partialorder %v1619, 0.0
        %vm2035 = vcmp.ge.f32.partialorder %v1647, 0.0
        %vm2036 = vcmp.ge.f32.partialorder %v1675, 0.0
        %vm2037 = vcmp.ge.f32.partialorder %v1703, 0.0
        %vm2038 = vcmp.ge.f32.partialorder %v1731, 0.0
        %vm2039 = vcmp.ge.f32.partialorder %v1759, 0.0
        %vm2040 = vcmp.ge.f32.partialorder %v1787, 0.0
        %vm2041 = vcmp.ge.f32.partialorder %v1815, 0.0
        %vm2042 = vcmp.ge.f32.partialorder %v1843, 0.0
        %vm2043 = vcmp.ge.f32.partialorder %v1871, 0.0
        %vm2044 = vcmp.ge.f32.partialorder %v1899, 0.0
        %vm2045 = vcmp.ge.f32.partialorder %v1927, 0.0
        %vm2046 = vcmp.ge.f32.partialorder %v1955, 0.0
        %vm2047 = vcmp.ge.f32.partialorder %v1983, 0.0
        %vm2048 = vcmp.ge.f32.partialorder %v2011, 0.0
        %v2049 = vmul.f32 %v1533, 0.2
        %v2050 = vmul.f32 %v1561, 0.2
        %v2051 = vmul.f32 %v1589, 0.2
        %v2052 = vmul.f32 %v1617, 0.2
        %v2053 = vmul.f32 %v1645, 0.2
        %v2054 = vmul.f32 %v1673, 0.2
        %v2055 = vmul.f32 %v1701, 0.2
        %v2056 = vmul.f32 %v1729, 0.2
        %v2057 = vmul.f32 %v1757, 0.2
        %v2058 = vmul.f32 %v1785, 0.2
        %v2059 = vmul.f32 %v1813, 0.2
        %v2060 = vmul.f32 %v1841, 0.2
        %v2061 = vmul.f32 %v1869, 0.2
        %v2062 = vmul.f32 %v1897, 0.2
        %v2063 = vmul.f32 %v1925, 0.2
        %v2064 = vmul.f32 %v1953, 0.2
        %v2065 = vmul.f32 %v1981, 0.2
        %v2066 = vmul.f32 %v2009, 0.2
        %v2067 = vmul.f32 %v1535, 0.2
        %v2068 = vmul.f32 %v1563, 0.2
        %v2069 = vmul.f32 %v1591, 0.2
        %v2070 = vmul.f32 %v1619, 0.2
        %v2071 = vmul.f32 %v1647, 0.2
        %v2072 = vmul.f32 %v1675, 0.2
        %v2073 = vmul.f32 %v1703, 0.2
        %v2074 = vmul.f32 %v1731, 0.2
        %v2075 = vmul.f32 %v1759, 0.2
        %v2076 = vmul.f32 %v1787, 0.2
        %v2077 = vmul.f32 %v1815, 0.2
        %v2078 = vmul.f32 %v1843, 0.2
        %v2079 = vmul.f32 %v1871, 0.2
        %v2080 = vmul.f32 %v1899, 0.2
        %v2081 = vmul.f32 %v1927, 0.2
        %v2082 = vmul.f32 %v1955, 0.2
        %v2083 = vmul.f32 %v1983, 0.2
        %v2084 = vmul.f32 %v2011, 0.2
        %v2085 = vsel %vm2013, %v1533, %v2049
        %v2086 = vsel %vm2014, %v1561, %v2050
        %v2087 = vsel %vm2015, %v1589, %v2051
        %v2088 = vsel %vm2016, %v1617, %v2052
        %v2089 = vsel %vm2017, %v1645, %v2053
        %v2090 = vsel %vm2018, %v1673, %v2054
        %v2091 = vsel %vm2019, %v1701, %v2055
        %v2092 = vsel %vm2020, %v1729, %v2056
        %v2093 = vsel %vm2021, %v1757, %v2057
        %v2094 = vsel %vm2022, %v1785, %v2058
        %v2095 = vsel %vm2023, %v1813, %v2059
        %v2096 = vsel %vm2024, %v1841, %v2060
        %v2097 = vsel %vm2025, %v1869, %v2061
        %v2098 = vsel %vm2026, %v1897, %v2062
        %v2099 = vsel %vm2027, %v1925, %v2063
        %v2100 = vsel %vm2028, %v1953, %v2064
        %v2101 = vsel %vm2029, %v1981, %v2065
        %v2102 = vsel %vm2030, %v2009, %v2066
        %v2103 = vsel %vm2031, %v1535, %v2067
        %v2104 = vsel %vm2032, %v1563, %v2068
        %v2105 = vsel %vm2033, %v1591, %v2069
        %v2106 = vsel %vm2034, %v1619, %v2070
        %v2107 = vsel %vm2035, %v1647, %v2071
        %v2108 = vsel %vm2036, %v1675, %v2072
        %v2109 = vsel %vm2037, %v1703, %v2073
        %v2110 = vsel %vm2038, %v1731, %v2074
        %v2111 = vsel %vm2039, %v1759, %v2075
        %v2112 = vsel %vm2040, %v1787, %v2076
        %v2113 = vsel %vm2041, %v1815, %v2077
        %v2114 = vsel %vm2042, %v1843, %v2078
        %v2115 = vsel %vm2043, %v1871, %v2079
        %v2116 = vsel %vm2044, %v1899, %v2080
        %v2117 = vsel %vm2045, %v1927, %v2081
        %v2118 = vsel %vm2046, %v1955, %v2082
        %v2119 = vsel %vm2047, %v1983, %v2083
        %v2120 = vsel %vm2048, %v2011, %v2084
        %v2121 = vpack.c.bf16 %v2086, %v2085
        %v2122 = vpack.c.bf16 %v2088, %v2087
        %v2123 = vpack.c.bf16 %v2090, %v2089
        %v2124 = vpack.c.bf16 %v2092, %v2091
        %v2125 = vpack.c.bf16 %v2094, %v2093
        %v2126 = vpack.c.bf16 %v2096, %v2095
        %v2127 = vpack.c.bf16 %v2098, %v2097
        %v2128 = vpack.c.bf16 %v2100, %v2099
        %v2129 = vpack.c.bf16 %v2102, %v2101
        %v2130 = vpack.c.bf16 %v2104, %v2103
        %v2131 = vpack.c.bf16 %v2106, %v2105
        %v2132 = vpack.c.bf16 %v2108, %v2107
        %v2133 = vpack.c.bf16 %v2110, %v2109
        %v2134 = vpack.c.bf16 %v2112, %v2111
        %v2135 = vpack.c.bf16 %v2114, %v2113
        %v2136 = vpack.c.bf16 %v2116, %v2115
        %v2137 = vpack.c.bf16 %v2118, %v2117
        %v2138 = vpack.c.bf16 %v2120, %v2119
        %2139 = vst [vmem:[%s506] sm:$0xff] %v2121
        %2140 = vst [vmem:[%s506 + $0x8] sm:$0xff] %v2122
        %2141 = vst [vmem:[%s506 + $0x10] sm:$0xff] %v2123
        %2142 = vst [vmem:[%s506 + $0x18] sm:$0xff] %v2124
        %2143 = vst [vmem:[%s506 + $0x20] sm:$0xff] %v2125
        %2144 = vst [vmem:[%s506 + $0x28] sm:$0xff] %v2126
        %2145 = vst [vmem:[%s506 + $0x30] sm:$0xff] %v2127
        %2146 = vst [vmem:[%s506 + $0x38] sm:$0xff] %v2128
        %2147 = vst [vmem:[%s506 + $0x40] sm:$0xff] %v2129
        %2148 = vst [vmem:[%s506 + $0x48] sm:$0xff] %v2130
        %2149 = vst [vmem:[%s506 + $0x50] sm:$0xff] %v2131
        %2150 = vst [vmem:[%s506 + $0x58] sm:$0xff] %v2132
        %2151 = vst [vmem:[%s506 + $0x60] sm:$0xff] %v2133
        %2152 = vst [vmem:[%s506 + $0x68] sm:$0xff] %v2134
        %2153 = vst [vmem:[%s506 + $0x70] sm:$0xff] %v2135
        %2154 = vst [vmem:[%s506 + $0x78] sm:$0xff] %v2136
        %2155 = vst [vmem:[%s506 + $0x80] sm:$0xff] %v2137
        %2156 = vst [vmem:[%s506 + $0x88] sm:$0xff] %v2138
        %s2157 = sand.u32 %s90, 1
        %s2158 = sand.u32 %s90, 1
        %s2159 = smul.addr %s2158, 144
        %s2160 = scalar_lea.vmem [#allocation3], %s2159
        // Predicated region
        $region56: #{stn_forward_pallas.3} parent=50 // pred_check
          %p2161 = pneg %p100
        $region57: #{stn_forward_pallas.3} parent=50 // pred_check_branch
          %2163 = sbr.rel (%p2161) target = $region59
        $region58: #{stn_forward_pallas.3} parent=50 // pred_region
          %s2164 = smul.u32 18, %s14
          %s2165 = smul.addr %s2164, 4
          %s2166 = scalar_lea.vmem %s3, %s2165
          // Predicated region
          $region60: #{stn_forward_pallas.3} parent=58 // pred_check
            _
          $region61: #{stn_forward_pallas.3} parent=58 // pred_check_branch
            %2168 = sbr.rel (0) target = $region63
          $region62: #{stn_forward_pallas.3} parent=58 // pred_region
            // Predicated region
            $region64: #{stn_forward_pallas.3} parent=62 // pred_check
              _
            $region65: #{stn_forward_pallas.3} parent=62 // pred_check_branch
              %2170 = sbr.rel (0) target = $region67
            $region66: #{stn_forward_pallas.3} parent=62 // pred_region
              loop: start=0, step=1, limit=1
              $region68: #{stn_forward_pallas.3} parent=66 // loop_pre_header
                _
              $region69: #{stn_forward_pallas.3} parent=66 // loop_header
                %s2172 = sphi 0, %s2176
                %p2173 = scmp.ge.s32.totalorder %s2172, 1
                %s2177 = sphi %s2160, %s2160
                %s2178 = sphi %s2166, %s2166
              $region70: #{stn_forward_pallas.3} parent=66 // loop_header_branch
                %2175 = sbr.rel (%p2173) target = $region74
              $region71: #{stn_forward_pallas.3} parent=66 // loop_body
                %v2179 = vld [vmem:[%s2177] sm:$0xff]
                %2180 = vst [vmem:[%s2178] sm:$0xff] %v2179
                %v2181 = vld [vmem:[%s2177 + $0x8] sm:$0xff]
                %2182 = vst [vmem:[%s2178 + $0x8] sm:$0xff] %v2181
                %v2183 = vld [vmem:[%s2177 + $0x10] sm:$0xff]
                %2184 = vst [vmem:[%s2178 + $0x10] sm:$0xff] %v2183
                %v2185 = vld [vmem:[%s2177 + $0x18] sm:$0xff]
                %2186 = vst [vmem:[%s2178 + $0x18] sm:$0xff] %v2185
                %v2187 = vld [vmem:[%s2177 + $0x20] sm:$0xff]
                %2188 = vst [vmem:[%s2178 + $0x20] sm:$0xff] %v2187
                %v2189 = vld [vmem:[%s2177 + $0x28] sm:$0xff]
                %2190 = vst [vmem:[%s2178 + $0x28] sm:$0xff] %v2189
                %v2191 = vld [vmem:[%s2177 + $0x30] sm:$0xff]
                %2192 = vst [vmem:[%s2178 + $0x30] sm:$0xff] %v2191
                %v2193 = vld [vmem:[%s2177 + $0x38] sm:$0xff]
                %2194 = vst [vmem:[%s2178 + $0x38] sm:$0xff] %v2193
                %v2195 = vld [vmem:[%s2177 + $0x40] sm:$0xff]
                %2196 = vst [vmem:[%s2178 + $0x40] sm:$0xff] %v2195
                %v2197 = vld [vmem:[%s2177 + $0x48] sm:$0xff]
                %2198 = vst [vmem:[%s2178 + $0x90] sm:$0xff] %v2197
                %v2199 = vld [vmem:[%s2177 + $0x50] sm:$0xff]
                %2200 = vst [vmem:[%s2178 + $0x98] sm:$0xff] %v2199
                %v2201 = vld [vmem:[%s2177 + $0x58] sm:$0xff]
                %2202 = vst [vmem:[%s2178 + $0xa0] sm:$0xff] %v2201
                %v2203 = vld [vmem:[%s2177 + $0x60] sm:$0xff]
                %2204 = vst [vmem:[%s2178 + $0xa8] sm:$0xff] %v2203
                %v2205 = vld [vmem:[%s2177 + $0x68] sm:$0xff]
                %2206 = vst [vmem:[%s2178 + $0xb0] sm:$0xff] %v2205
                %v2207 = vld [vmem:[%s2177 + $0x70] sm:$0xff]
                %2208 = vst [vmem:[%s2178 + $0xb8] sm:$0xff] %v2207
                %v2209 = vld [vmem:[%s2177 + $0x78] sm:$0xff]
                %2210 = vst [vmem:[%s2178 + $0xc0] sm:$0xff] %v2209
                %v2211 = vld [vmem:[%s2177 + $0x80] sm:$0xff]
                %2212 = vst [vmem:[%s2178 + $0xc8] sm:$0xff] %v2211
                %v2213 = vld [vmem:[%s2177 + $0x88] sm:$0xff]
                %2214 = vst [vmem:[%s2178 + $0xd0] sm:$0xff] %v2213
              $region72: #{stn_forward_pallas.3} parent=66 // loop_footer
                %s2176 = sadd.s32 1, %s2172
              $region73: #{stn_forward_pallas.3} parent=66 // loop_footer_branch
                %2171 = sbr.rel target = $region69
              $region74: #{stn_forward_pallas.3} parent=66 // loop_exit
                _
            $region67: #{stn_forward_pallas.3} parent=62 // pred_fallthru
              _
            // Predicated region
            $region75: #{stn_forward_pallas.3} parent=62 // pred_check
              _
            $region76: #{stn_forward_pallas.3} parent=62 // pred_check_branch
              %2216 = sbr.rel target = $region78
            $region77: #{stn_forward_pallas.3} parent=62 // pred_region
              _
            $region78: #{stn_forward_pallas.3} parent=62 // pred_fallthru
              _
          $region63: #{stn_forward_pallas.3} parent=58 // pred_fallthru
            _
          %2217 = vnop
        $region59: #{stn_forward_pallas.3} parent=50 // pred_fallthru
          _
      $region51: #{stn_forward_pallas.3} parent=5 // pred_fallthru
        _
      %p2218 = scmp.le.s32.totalorder 2, %s9
      // Predicated region
      $region79: #{stn_forward_pallas.3} parent=5 // pred_check
        %p2219 = pneg %p2218
      $region80: #{stn_forward_pallas.3} parent=5 // pred_check_branch
        %2221 = sbr.rel (%p2219) target = $region82
      $region81: #{stn_forward_pallas.3} parent=5 // pred_region
        %s2222 = ssub.s32 %s9, 2
        // Predicated region
        $region83: #{stn_forward_pallas.3} parent=81 // pred_check
          %p2223 = pneg %p106
        $region84: #{stn_forward_pallas.3} parent=81 // pred_check_branch
          %2225 = sbr.rel (%p2223) target = $region86
        $region85: #{stn_forward_pallas.3} parent=81 // pred_region
          %s2226 = sand.u32 %s91, 1
          %s2227 = sand.u32 %s91, 1
          %s2228 = smul.addr %s2227, 144
          %s2229 = scalar_lea.vmem [#allocation3], %s2228
        $region86: #{stn_forward_pallas.3} parent=81 // pred_fallthru
          _
      $region82: #{stn_forward_pallas.3} parent=5 // pred_fallthru
        _
    $region6: #{stn_forward_pallas.3} parent=1 // loop_footer
      %s13 = sadd.s32 1, %s9
    $region7: #{stn_forward_pallas.3} parent=1 // loop_footer_branch
      %8 = sbr.rel target = $region3
    $region8: #{stn_forward_pallas.3} parent=1 // loop_exit
      _

</llo_original>
